<compile_context>
chip_gen: v5e
topology: v5e:2x2
jax: 0.10.0
libtpu: 0.0.40
codegen_flags: <defaults>
</compile_context>

<pallas_src>
from typing import NamedTuple

import jax
import jax.numpy as jnp
from jax import lax
from jax.experimental import pallas as pl
from jax.experimental.pallas import tpu as pltpu


# --------------------------------------------------------------------------
# Settings container (mirrors GaussianRasterizationSettings)
# --------------------------------------------------------------------------
class GaussianRasterizationSettings(NamedTuple):
    image_height: int
    image_width: int
    tanfovx: float
    tanfovy: float
    bg: jnp.ndarray            # (3,)
    scale_modifier: float
    viewmatrix: jnp.ndarray    # (4, 4)
    projmatrix: jnp.ndarray    # (4, 4) full projection (view @ proj)
    projmatrix_raw: jnp.ndarray
    sh_degree: int
    campos: jnp.ndarray        # (3,)
    prefiltered: bool
    debug: bool


def _round_up(x, m):
    return ((x + m - 1) // m) * m


# --------------------------------------------------------------------------
# Pallas kernel: per-pixel front-to-back alpha blending, strip-binned gaussians
# --------------------------------------------------------------------------
_GF = 14    # packed per-gaussian feature rows, table layout (_GF, N):
#  0 px, 1 py, 2 (-0.5*conic_a), 3 (-conic_b), 4 (-0.5*conic_c), 5 opacity,
#  6 r, 7 g, 8 b, 9 depth, 10 nx, 11 ny, 12 nz, 13 radius
_TH = 8     # pixel-tile rows (one row strip)
_TW = 256   # pixel-tile lanes (lane-dense output stores)
_K = 8      # gaussians per early-exit block (manual unroll factor)


def _render_kernel(counts_ref, idx_ref, g_ref, bg_ref,
                   color_ref, depth_ref, normal_ref, opac_ref):
    TH = color_ref.shape[1]
    TW = color_ref.shape[2]
    strip = pl.program_id(0)
    ctile = pl.program_id(1)

    row0 = (strip * TH).astype(jnp.float32)
    col0 = (ctile * TW).astype(jnp.float32)
    col_hi = col0 + float(TW - 1)
    py = row0 + lax.broadcasted_iota(jnp.int32, (TH, TW), 0).astype(jnp.float32)
    px = col0 + lax.broadcasted_iota(jnp.int32, (TH, TW), 1).astype(jnp.float32)

    count = counts_ref[strip]           # gaussians binned to this row strip

    zeros = jnp.zeros((TH, TW), jnp.float32)
    init = (jnp.int32(0),                       # next gaussian-block start
            jnp.ones((TH, TW), jnp.float32),    # transmittance T (sign = done flag)
            zeros, zeros, zeros,                # RGB accumulators
            zeros,                              # depth accumulator
            zeros, zeros, zeros)                # normal accumulators

    def blend_one(j, carry):
        gi = idx_ref[strip, j]
        gx = g_ref[0, gi]
        rad = g_ref[13, gi]
        # scalar column-tile footprint test (row-strip + image-x overlap were
        # already guaranteed by the host-side binning)
        hit = (j < count) & (gx + rad >= col0) & (gx - rad <= col_hi)

        def do_blend(c):
            T, ar, ag, ab, ad, anx, any_, anz = c
            gy = g_ref[1, gi]
            qa = g_ref[2, gi]     # -0.5 * conic_a   (pre-folded in the wrapper)
            qb = g_ref[3, gi]     # -conic_b
            qc = g_ref[4, gi]     # -0.5 * conic_c
            op = g_ref[5, gi]
            fr = g_ref[6, gi]
            fg = g_ref[7, gi]
            fb = g_ref[8, gi]
            fd = g_ref[9, gi]
            fnx = g_ref[10, gi]
            fny = g_ref[11, gi]
            fnz = g_ref[12, gi]

            dx = gx - px
            dy = gy - py
            power = qa * (dx * dx) + qc * (dy * dy) + qb * (dx * dy)
            alpha = jnp.minimum(0.99, op * jnp.exp(power))        # exp -> EUP slot
            live = T > 0.0                                        # sign-encoded done
            gate = live & (power <= 0.0) & (alpha >= (1.0 / 255.0))
            test_T = T * (1.0 - alpha)
            contrib = gate & (test_T >= 1e-4)
            done_now = gate & (test_T < 1e-4)
            w = jnp.where(contrib, alpha * T, 0.0)
            T_new = jnp.where(contrib, test_T, jnp.where(done_now, -T, T))
            return (T_new,
                    ar + fr * w, ag + fg * w, ab + fb * w,
                    ad + fd * w,
                    anx + fnx * w, any_ + fny * w, anz + fnz * w)

        return lax.cond(hit, do_blend, lambda c: c, carry)

    def block_cond(state):
        base, T = state[0], state[1]
        # early exit once all pixels in the tile have terminated (T < 0 encodes done)
        return (base < count) & (jnp.max(T) > 0.0)

    def block_body(state):
        base = state[0]
        carry = state[1:]
        for k in range(_K):                    # manual unroll over the block
            carry = blend_one(base + k, carry)
        return (base + _K,) + carry

    final = lax.while_loop(block_cond, block_body, init)
    _, T, ar, ag, ab, ad, anx, any_, anz = final

    T = jnp.abs(T)                             # undo the done-flag sign encoding
    # epilogue: composite over background, single lane-dense store per plane
    color_ref[0, :, :] = ar + T * bg_ref[0]
    color_ref[1, :, :] = ag + T * bg_ref[1]
    color_ref[2, :, :] = ab + T * bg_ref[2]
    depth_ref[0, :, :] = ad
    normal_ref[0, :, :] = anx
    normal_ref[1, :, :] = any_
    normal_ref[2, :, :] = anz
    opac_ref[0, :, :] = 1.0 - T


def _render(packed, bg, H, W):
    """packed: (_GF, N) depth-sorted, sanitized, pre-folded feature table."""
    TH, TW, K = _TH, _TW, _K
    N = packed.shape[1]

    H_pad = _round_up(max(H, 1), 2 * TH)   # even strip count (v7x megacore balance)
    W_pad = _round_up(max(W, 1), TW)
    num_strips = H_pad // TH
    num_ctiles = W_pad // TW

    # -------- host-side row-strip binning (front-to-back order preserved) --------
    xs, ys, rs = packed[0], packed[1], packed[13]
    y0 = (jnp.arange(num_strips, dtype=jnp.float32) * TH)[:, None]
    y1 = y0 + float(TH - 1)
    hit = ((rs > 0.0)[None, :]
           & (ys[None, :] + rs[None, :] >= y0)
           & (ys[None, :] - rs[None, :] <= y1)
           & (xs + rs >= 0.0)[None, :]
           & (xs - rs <= float(W - 1))[None, :])
    counts = jnp.sum(hit, axis=1).astype(jnp.int32)
    # stable sort of (miss=1, hit=0) keys: hits first, depth order preserved
    idx = jnp.argsort((~hit).astype(jnp.int32), axis=1, stable=True).astype(jnp.int32)

    NI = _round_up(max(N, K), K)
    idx = jnp.pad(idx, ((0, 0), (0, NI - N)))
    NP = _round_up(max(N, 8), 8)
    g_packed = jnp.pad(packed, ((0, 0), (0, NP - N)))

    smem_spec = pl.BlockSpec(memory_space=pltpu.MemorySpace.SMEM)
    out_shapes = (
        jax.ShapeDtypeStruct((3, H_pad, W_pad), jnp.float32),
        jax.ShapeDtypeStruct((1, H_pad, W_pad), jnp.float32),
        jax.ShapeDtypeStruct((3, H_pad, W_pad), jnp.float32),
        jax.ShapeDtypeStruct((1, H_pad, W_pad), jnp.float32),
    )
    out_specs = [
        pl.BlockSpec((3, TH, TW), lambda s, c, *_: (0, s, c)),
        pl.BlockSpec((1, TH, TW), lambda s, c, *_: (0, s, c)),
        pl.BlockSpec((3, TH, TW), lambda s, c, *_: (0, s, c)),
        pl.BlockSpec((1, TH, TW), lambda s, c, *_: (0, s, c)),
    ]

    color, depth_img, normal_img, opac_img = pl.pallas_call(
        _render_kernel,
        out_shape=out_shapes,
        grid_spec=pltpu.PrefetchScalarGridSpec(
            num_scalar_prefetch=2,              # per-strip counts + index table
            grid=(num_strips, num_ctiles),
            in_specs=[smem_spec, smem_spec],    # feature table, background (SMEM)
            out_specs=out_specs,
        ),
        compiler_params=pltpu.CompilerParams(
            dimension_semantics=("parallel", "parallel")),
    )(counts, idx, g_packed, bg.astype(jnp.float32))

    return (color[:, :H, :W], depth_img[:, :H, :W],
            normal_img[:, :H, :W], opac_img[:, :H, :W])


# --------------------------------------------------------------------------
# JAX glue: geometric preprocessing (projection, EWA covariance, SH eval)
# --------------------------------------------------------------------------
SH_C0 = 0.28209479177387814
SH_C1 = 0.4886025119029199
SH_C2 = (1.0925484305920792, -1.0925484305920792, 0.31539156525252005,
         -1.0925484305920792, 0.5462742152960396)
SH_C3 = (-0.5900435899266435, 2.890611442640554, -0.4570457994644658,
         0.3731763325901154, -0.4570457994644658, 1.445305721320277,
         -0.5900435899266435)


def _quat_to_rotmat(q):
    q = q / (jnp.linalg.norm(q, axis=-1, keepdims=True) + 1e-12)
    r, x, y, z = q[:, 0], q[:, 1], q[:, 2], q[:, 3]
    R = jnp.stack([
        jnp.stack([1 - 2 * (y * y + z * z), 2 * (x * y - r * z), 2 * (x * z + r * y)], -1),
        jnp.stack([2 * (x * y + r * z), 1 - 2 * (x * x + z * z), 2 * (y * z - r * x)], -1),
        jnp.stack([2 * (x * z - r * y), 2 * (y * z + r * x), 1 - 2 * (x * x + y * y)], -1),
    ], axis=1)
    return R  # (N, 3, 3)


def _eval_sh(deg, sh, dirs):
    result = SH_C0 * sh[:, 0]
    if deg > 0:
        x, y, z = dirs[:, 0:1], dirs[:, 1:2], dirs[:, 2:3]
        result = result - SH_C1 * y * sh[:, 1] + SH_C1 * z * sh[:, 2] - SH_C1 * x * sh[:, 3]
        if deg > 1:
            xx, yy, zz = x * x, y * y, z * z
            xy, yz, xz = x * y, y * z, x * z
            result = (result
                      + SH_C2[0] * xy * sh[:, 4]
                      + SH_C2[1] * yz * sh[:, 5]
                      + SH_C2[2] * (2.0 * zz - xx - yy) * sh[:, 6]
                      + SH_C2[3] * xz * sh[:, 7]
                      + SH_C2[4] * (xx - yy) * sh[:, 8])
            if deg > 2:
                result = (result
                          + SH_C3[0] * y * (3.0 * xx - yy) * sh[:, 9]
                          + SH_C3[1] * xy * z * sh[:, 10]
                          + SH_C3[2] * y * (4.0 * zz - xx - yy) * sh[:, 11]
                          + SH_C3[3] * z * (2.0 * zz - 3.0 * xx - 3.0 * yy) * sh[:, 12]
                          + SH_C3[4] * x * (4.0 * zz - xx - yy) * sh[:, 13]
                          + SH_C3[5] * z * (xx - yy) * sh[:, 14]
                          + SH_C3[6] * x * (xx - 3.0 * yy) * sh[:, 15])
    result = result + 0.5
    return jnp.maximum(result, 0.0)


def _preprocess(means3D, scales, rotations, cov3D_precomp, settings):
    H, W = settings.image_height, settings.image_width
    view = settings.viewmatrix
    proj = settings.projmatrix
    fx = W / (2.0 * settings.tanfovx)
    fy = H / (2.0 * settings.tanfovy)

    ones = jnp.ones((means3D.shape[0], 1), jnp.float32)
    hom = jnp.concatenate([means3D.astype(jnp.float32), ones], axis=1)
    p_view = hom @ view
    p_proj = hom @ proj
    p_w = 1.0 / (p_proj[:, 3:4] + 1e-7)
    ndc = p_proj[:, :3] * p_w
    px = ((ndc[:, 0] + 1.0) * W - 1.0) * 0.5
    py = ((ndc[:, 1] + 1.0) * H - 1.0) * 0.5
    depth = p_view[:, 2]

    if cov3D_precomp is not None:
        c = cov3D_precomp
        cov3d = jnp.stack([
            jnp.stack([c[:, 0], c[:, 1], c[:, 2]], -1),
            jnp.stack([c[:, 1], c[:, 3], c[:, 4]], -1),
            jnp.stack([c[:, 2], c[:, 4], c[:, 5]], -1)], axis=1)
    else:
        R = _quat_to_rotmat(rotations)
        S = scales * settings.scale_modifier
        M = R * S[:, None, :]              # R @ diag(s)
        cov3d = M @ jnp.swapaxes(M, 1, 2)  # R S^2 R^T

    # EWA splatting: project 3D covariance to 2D screen space
    limx = 1.3 * settings.tanfovx
    limy = 1.3 * settings.tanfovy
    tz = depth
    txtz = p_view[:, 0] / tz
    tytz = p_view[:, 1] / tz
    tx = jnp.clip(txtz, -limx, limx) * tz
    ty = jnp.clip(tytz, -limy, limy) * tz
    zeros = jnp.zeros_like(tz)
    J = jnp.stack([
        jnp.stack([fx / tz, zeros, -fx * tx / (tz * tz)], -1),
        jnp.stack([zeros, fy / tz, -fy * ty / (tz * tz)], -1),
        jnp.stack([zeros, zeros, zeros], -1)], axis=1)
    Wrot = view[:3, :3].T                  # world->view rotation (column-vector form)
    Tm = J @ Wrot[None]
    cov2d = Tm @ cov3d @ jnp.swapaxes(Tm, 1, 2)
    a = cov2d[:, 0, 0] + 0.3
    b = cov2d[:, 0, 1]
    c2 = cov2d[:, 1, 1] + 0.3

    det = a * c2 - b * b
    det_inv = jnp.where(det != 0.0, 1.0 / det, 0.0)
    conic_a = c2 * det_inv
    conic_b = -b * det_inv
    conic_c = a * det_inv

    mid = 0.5 * (a + c2)
    lam1 = mid + jnp.sqrt(jnp.maximum(0.1, mid * mid - det))
    radius = jnp.ceil(3.0 * jnp.sqrt(lam1))
    valid = (depth > 0.2) & (det != 0.0)
    radii = jnp.where(valid, radius, 0.0)

    return px, py, conic_a, conic_b, conic_c, depth, radii, valid


def rasterize_gaussians(means3D, means2D, shs, colors_precomp, opacities,
                        scales, rotations, cov3Ds_precomp, theta, rho,
                        raster_settings):
    settings = raster_settings
    N = means3D.shape[0]
    H, W = settings.image_height, settings.image_width

    def _nonempty(x):
        return x is not None and x.size > 0

    # Per-gaussian RGB colors
    if _nonempty(colors_precomp):
        colors = colors_precomp.astype(jnp.float32)
    else:
        dirs = means3D - settings.campos[None]
        dirs = dirs / (jnp.linalg.norm(dirs, axis=-1, keepdims=True) + 1e-12)
        colors = _eval_sh(settings.sh_degree, shs.astype(jnp.float32), dirs)

    # Per-gaussian normals (shortest ellipsoid axis, oriented toward camera)
    if _nonempty(scales) and _nonempty(rotations):
        R = _quat_to_rotmat(rotations)
        sidx = jnp.argmin(scales, axis=-1)
        normal = jnp.take_along_axis(R, sidx[:, None, None], axis=2)[:, :, 0]
        vdir = settings.campos[None] - means3D
        sgn = jnp.sign(jnp.sum(normal * vdir, axis=-1, keepdims=True))
        sgn = jnp.where(sgn == 0, 1.0, sgn)
        normal = normal * sgn
    else:
        # TODO(synk): normal convention for the cov3D_precomp path is not defined here.
        normal = jnp.zeros((N, 3), jnp.float32)

    cov3d_pre = cov3Ds_precomp if _nonempty(cov3Ds_precomp) else None
    px, py, ca, cb, cc, depth, radii, valid = _preprocess(
        means3D, scales, rotations, cov3d_pre, settings)

    # Sanitize culled gaussians (keeps NaN/Inf conics out of the kernel), pre-fold
    # the quadratic-form constants, and depth-sort front-to-back (culled to the back).
    def _col(x):
        return jnp.where(valid, x.astype(jnp.float32), 0.0)

    feats = [_col(px), _col(py),
             _col(-0.5 * ca), _col(-cb), _col(-0.5 * cc),
             _col(opacities[:, 0]),
             _col(colors[:, 0]), _col(colors[:, 1]), _col(colors[:, 2]),
             _col(depth),
             _col(normal[:, 0]), _col(normal[:, 1]), _col(normal[:, 2]),
             _col(radii)]
    order = jnp.argsort(jnp.where(valid, depth, jnp.inf))
    packed = jnp.stack([f[order] for f in feats], axis=0)        # (_GF, N)

    color, depth_img, normal_img, opac_img = _render(
        packed, settings.bg.astype(jnp.float32), H, W)

    radii_out = radii.astype(jnp.int32)
    # TODO(synk): the CUDA rasterizer counts per-gaussian usage during blending;
    # approximated here as "has a non-zero screen footprint".
    is_used = (radii > 0).astype(jnp.int32)
    # TODO(synk): depth/normal are alpha-weighted accumulations (not normalized by
    # 1-T); verify against the exact diff_gaussian_rasterization_n convention.
    return color, radii_out, depth_img, normal_img, opac_img, is_used


class GaussianRasterizer:
    """JAX/Pallas equivalent of diff_gaussian_rasterization_n.GaussianRasterizer."""

    def __init__(self, raster_settings):
        self.raster_settings = raster_settings

    def markVisible(self, positions):
        s = self.raster_settings
        hom = jnp.concatenate(
            [positions, jnp.ones((positions.shape[0], 1), positions.dtype)], axis=1)
        p_view = hom @ s.viewmatrix
        return p_view[:, 2] > 0.2

    def __call__(self, means3D, means2D, opacities, shs=None, colors_precomp=None,
                 scales=None, rotations=None, cov3D_precomp=None, theta=None, rho=None):
        if (shs is None and colors_precomp is None) or \
           (shs is not None and colors_precomp is not None):
            raise Exception('Please provide exactly one of SHs or precomputed colors!')
        if ((scales is None or rotations is None) and cov3D_precomp is None) or \
           ((scales is not None or rotations is not None) and cov3D_precomp is not None):
            raise Exception('Please provide exactly one of scale/rotation pair or '
                            'precomputed 3D covariance!')
        empty = jnp.zeros((0,), jnp.float32)
        shs = shs if shs is not None else empty
        colors_precomp = colors_precomp if colors_precomp is not None else empty
        scales = scales if scales is not None else empty
        rotations = rotations if rotations is not None else empty
        cov3D_precomp = cov3D_precomp if cov3D_precomp is not None else empty
        theta = theta if theta is not None else empty
        rho = rho if rho is not None else empty
        return rasterize_gaussians(means3D, means2D, shs, colors_precomp, opacities,
                                   scales, rotations, cov3D_precomp, theta, rho,
                                   self.raster_settings)


# --------------------------------------------------------------------------
# Example / smoke test
# --------------------------------------------------------------------------
if __name__ == "__main__":
    key = jax.random.PRNGKey(0)
    k1, k2, k3, k4, k5, k6 = jax.random.split(key, 6)

    N = 64
    H = 32
    W = 32
    tanfovx = tanfovy = 0.7
    znear, zfar = 0.01, 100.0

    xy = jax.random.uniform(k1, (N, 2), minval=-1.5, maxval=1.5)
    z = jax.random.uniform(k2, (N, 1), minval=2.0, maxval=6.0)
    means3D = jnp.concatenate([xy, z], axis=1).astype(jnp.float32)
    means2D = jnp.zeros((N, 2), jnp.float32)
    opacities = jax.random.uniform(k3, (N, 1), minval=0.4, maxval=0.95).astype(jnp.float32)
    scales = jax.random.uniform(k4, (N, 3), minval=0.05, maxval=0.3).astype(jnp.float32)
    rotations = jax.random.normal(k5, (N, 4)).astype(jnp.float32)
    sh_degree = 1
    shs = (0.3 * jax.random.normal(k6, (N, (sh_degree + 1) ** 2, 3))).astype(jnp.float32)

    viewmatrix = jnp.eye(4, dtype=jnp.float32)  # camera at origin, looking down +z
    # row-vector perspective projection (transpose of the column-vector 3DGS matrix)
    projmatrix = jnp.zeros((4, 4), jnp.float32)
    projmatrix = projmatrix.at[0, 0].set(1.0 / tanfovx)
    projmatrix = projmatrix.at[1, 1].set(1.0 / tanfovy)
    projmatrix = projmatrix.at[2, 2].set(zfar / (zfar - znear))
    projmatrix = projmatrix.at[2, 3].set(1.0)
    projmatrix = projmatrix.at[3, 2].set(-(zfar * znear) / (zfar - znear))
    full_proj = viewmatrix @ projmatrix

    settings = GaussianRasterizationSettings(
        image_height=H, image_width=W,
        tanfovx=tanfovx, tanfovy=tanfovy,
        bg=jnp.zeros((3,), jnp.float32),
        scale_modifier=1.0,
        viewmatrix=viewmatrix,
        projmatrix=full_proj,
        projmatrix_raw=projmatrix,
        sh_degree=sh_degree,
        campos=jnp.zeros((3,), jnp.float32),
        prefiltered=False,
        debug=False,
    )

    rasterizer = GaussianRasterizer(settings)
    color, radii, depth, normal, opacity, is_used = rasterizer(
        means3D, means2D, opacities, shs=shs, scales=scales, rotations=rotations)

    outs = jax.block_until_ready((color, radii, depth, normal, opacity, is_used))
    color, radii, depth, normal, opacity, is_used = outs

    assert color.shape == (3, H, W) and depth.shape == (1, H, W)
    assert normal.shape == (3, H, W) and opacity.shape == (1, H, W)
    assert radii.shape == (N,) and is_used.shape == (N,)
    assert bool(jnp.all(jnp.isfinite(color)))
    assert bool(jnp.all(jnp.isfinite(depth)))
    assert bool(jnp.all(jnp.isfinite(opacity)))
    assert bool(jnp.all((opacity >= 0.0) & (opacity <= 1.0)))

    print("KERNEL_OK")
</pallas_src>

<mosaic_0001>
module attributes {stable_mosaic.version = 11 : i64} {
  func.func @_render_kernel(%arg0: i32, %arg1: i32, %arg2: memref<4xi32, #tpu.memory_space<smem>>, %arg3: memref<4x64xi32, #tpu.memory_space<smem>>, %arg4: memref<14x64xf32, #tpu.memory_space<smem>>, %arg5: memref<3xf32, #tpu.memory_space<smem>>, %arg6: memref<3x8x256xf32, #tpu.memory_space<vmem>>, %arg7: memref<1x8x256xf32, #tpu.memory_space<vmem>>, %arg8: memref<3x8x256xf32, #tpu.memory_space<vmem>>, %arg9: memref<1x8x256xf32, #tpu.memory_space<vmem>>) attributes {dimension_semantics = [#tpu.dimension_semantics<parallel>, #tpu.dimension_semantics<parallel>], iteration_bounds = array<i64: 4, 1>, scalar_prefetch = 2 : i64, scratch_operands = 0 : i64, tpu.core_type = #tpu.core_type<tc>, window_params = [{transform_indices = @transform_0, window_bounds = array<i64: 14, 64>}, {transform_indices = @transform_1, window_bounds = array<i64: 3>}, {transform_indices = @transform_2, window_bounds = array<i64: 3, 8, 256>}, {transform_indices = @transform_3, window_bounds = array<i64: 1, 8, 256>}, {transform_indices = @transform_4, window_bounds = array<i64: 3, 8, 256>}, {transform_indices = @transform_5, window_bounds = array<i64: 1, 8, 256>}]} {
    %c8_i32 = arith.constant 8 : i32
    %0 = arith.muli %arg0, %c8_i32 : i32
    %1 = arith.sitofp %0 : i32 to f32
    %c256_i32 = arith.constant 256 : i32
    %2 = arith.muli %arg1, %c256_i32 : i32
    %3 = arith.sitofp %2 : i32 to f32
    %cst = arith.constant 2.550000e+02 : f32
    %4 = arith.addf %3, %cst : f32
    %5 = tpu.iota {dimensions = array<i32: 0>} : vector<8x256xi32>
    %6 = arith.sitofp %5 : vector<8x256xi32> to vector<8x256xf32>
    %7 = vector.broadcast %1 : f32 to vector<8x256xf32>
    %8 = arith.addf %7, %6 : vector<8x256xf32>
    %9 = tpu.iota {dimensions = array<i32: 1>} : vector<8x256xi32>
    %10 = arith.sitofp %9 : vector<8x256xi32> to vector<8x256xf32>
    %11 = vector.broadcast %3 : f32 to vector<8x256xf32>
    %12 = arith.addf %11, %10 : vector<8x256xf32>
    %13 = arith.index_cast %arg0 : i32 to index
    %14 = memref.load %arg2[%13] : memref<4xi32, #tpu.memory_space<smem>>
    %cst_0 = arith.constant 0.000000e+00 : f32
    %15 = vector.broadcast %cst_0 : f32 to vector<8x256xf32>
    %cst_1 = arith.constant 1.000000e+00 : f32
    %16 = vector.broadcast %cst_1 : f32 to vector<8x256xf32>
    %c0_i32 = arith.constant 0 : i32
    %17:9 = scf.while (%arg10 = %c0_i32, %arg11 = %16, %arg12 = %15, %arg13 = %15, %arg14 = %15, %arg15 = %15, %arg16 = %15, %arg17 = %15, %arg18 = %15) : (i32, vector<8x256xf32>, vector<8x256xf32>, vector<8x256xf32>, vector<8x256xf32>, vector<8x256xf32>, vector<8x256xf32>, vector<8x256xf32>, vector<8x256xf32>) -> (i32, vector<8x256xf32>, vector<8x256xf32>, vector<8x256xf32>, vector<8x256xf32>, vector<8x256xf32>, vector<8x256xf32>, vector<8x256xf32>, vector<8x256xf32>) {
      %57 = arith.cmpi slt, %arg10, %14 : i32
      %58 = vector.shape_cast %arg11 : vector<8x256xf32> to vector<1x8x256xf32>
      %cst_27 = arith.constant dense<0xFF800000> : vector<1xf32>
      %59 = vector.multi_reduction <maximumf>, %58, %cst_27 [1, 2] : vector<1x8x256xf32> to vector<1xf32>
      %60 = vector.shape_cast %59 : vector<1xf32> to vector<1x1x1xf32>
      %61 = vector.extract %60[0, 0, 0] : f32 from vector<1x1x1xf32>
      %cst_28 = arith.constant 0.000000e+00 : f32
      %62 = arith.cmpf ogt, %61, %cst_28 : f32
      %63 = arith.andi %57, %62 : i1
      scf.condition(%63) %arg10, %arg11, %arg12, %arg13, %arg14, %arg15, %arg16, %arg17, %arg18 : i32, vector<8x256xf32>, vector<8x256xf32>, vector<8x256xf32>, vector<8x256xf32>, vector<8x256xf32>, vector<8x256xf32>, vector<8x256xf32>, vector<8x256xf32>
    } do {
    ^bb0(%arg10: i32, %arg11: vector<8x256xf32>, %arg12: vector<8x256xf32>, %arg13: vector<8x256xf32>, %arg14: vector<8x256xf32>, %arg15: vector<8x256xf32>, %arg16: vector<8x256xf32>, %arg17: vector<8x256xf32>, %arg18: vector<8x256xf32>):
      %c0_i32_27 = arith.constant 0 : i32
      %57 = arith.addi %arg10, %c0_i32_27 : i32
      %58 = arith.index_cast %arg0 : i32 to index
      %59 = arith.index_cast %57 : i32 to index
      %60 = memref.load %arg3[%58, %59] : memref<4x64xi32, #tpu.memory_space<smem>>
      %c0_28 = arith.constant 0 : index
      %61 = arith.index_cast %60 : i32 to index
      %62 = memref.load %arg4[%c0_28, %61] : memref<14x64xf32, #tpu.memory_space<smem>>
      %c13 = arith.constant 13 : index
      %63 = arith.index_cast %60 : i32 to index
      %64 = memref.load %arg4[%c13, %63] : memref<14x64xf32, #tpu.memory_space<smem>>
      %65 = arith.cmpi slt, %57, %14 : i32
      %66 = arith.addf %62, %64 : f32
      %67 = arith.cmpf oge, %66, %3 : f32
      %68 = arith.andi %65, %67 : i1
      %69 = arith.subf %62, %64 : f32
      %70 = arith.cmpf ole, %69, %4 : f32
      %71 = arith.andi %68, %70 : i1
      %72 = arith.extui %71 : i1 to i32
      %c0_i32_29 = arith.constant 0 : i32
      %73 = arith.cmpi ne, %72, %c0_i32_29 : i32
      %74:8 = scf.if %73 -> (vector<8x256xf32>, vector<8x256xf32>, vector<8x256xf32>, vector<8x256xf32>, vector<8x256xf32>, vector<8x256xf32>, vector<8x256xf32>, vector<8x256xf32>) {
        %c1_52 = arith.constant 1 : index
        %202 = arith.index_cast %60 : i32 to index
        %203 = memref.load %arg4[%c1_52, %202] : memref<14x64xf32, #tpu.memory_space<smem>>
        %c2_53 = arith.constant 2 : index
        %204 = arith.index_cast %60 : i32 to index
        %205 = memref.load %arg4[%c2_53, %204] : memref<14x64xf32, #tpu.memory_space<smem>>
        %c3 = arith.constant 3 : index
        %206 = arith.index_cast %60 : i32 to index
        %207 = memref.load %arg4[%c3, %206] : memref<14x64xf32, #tpu.memory_space<smem>>
        %c4 = arith.constant 4 : index
        %208 = arith.index_cast %60 : i32 to index
        %209 = memref.load %arg4[%c4, %208] : memref<14x64xf32, #tpu.memory_space<smem>>
        %c5 = arith.constant 5 : index
        %210 = arith.index_cast %60 : i32 to index
        %211 = memref.load %arg4[%c5, %210] : memref<14x64xf32, #tpu.memory_space<smem>>
        %c6 = arith.constant 6 : index
        %212 = arith.index_cast %60 : i32 to index
        %213 = memref.load %arg4[%c6, %212] : memref<14x64xf32, #tpu.memory_space<smem>>
        %c7 = arith.constant 7 : index
        %214 = arith.index_cast %60 : i32 to index
        %215 = memref.load %arg4[%c7, %214] : memref<14x64xf32, #tpu.memory_space<smem>>
        %c8 = arith.constant 8 : index
        %216 = arith.index_cast %60 : i32 to index
        %217 = memref.load %arg4[%c8, %216] : memref<14x64xf32, #tpu.memory_space<smem>>
        %c9 = arith.constant 9 : index
        %218 = arith.index_cast %60 : i32 to index
        %219 = memref.load %arg4[%c9, %218] : memref<14x64xf32, #tpu.memory_space<smem>>
        %c10 = arith.constant 10 : index
        %220 = arith.index_cast %60 : i32 to index
        %221 = memref.load %arg4[%c10, %220] : memref<14x64xf32, #tpu.memory_space<smem>>
        %c11 = arith.constant 11 : index
        %222 = arith.index_cast %60 : i32 to index
        %223 = memref.load %arg4[%c11, %222] : memref<14x64xf32, #tpu.memory_space<smem>>
        %c12 = arith.constant 12 : index
        %224 = arith.index_cast %60 : i32 to index
        %225 = memref.load %arg4[%c12, %224] : memref<14x64xf32, #tpu.memory_space<smem>>
        %226 = vector.broadcast %62 : f32 to vector<8x256xf32>
        %227 = arith.subf %226, %12 : vector<8x256xf32>
        %228 = vector.broadcast %203 : f32 to vector<8x256xf32>
        %229 = arith.subf %228, %8 : vector<8x256xf32>
        %230 = arith.mulf %227, %227 : vector<8x256xf32>
        %231 = vector.broadcast %205 : f32 to vector<8x256xf32>
        %232 = arith.mulf %231, %230 : vector<8x256xf32>
        %233 = arith.mulf %229, %229 : vector<8x256xf32>
        %234 = vector.broadcast %209 : f32 to vector<8x256xf32>
        %235 = arith.mulf %234, %233 : vector<8x256xf32>
        %236 = arith.addf %232, %235 : vector<8x256xf32>
        %237 = arith.mulf %227, %229 : vector<8x256xf32>
        %238 = vector.broadcast %207 : f32 to vector<8x256xf32>
        %239 = arith.mulf %238, %237 : vector<8x256xf32>
        %240 = arith.addf %236, %239 : vector<8x256xf32>
        %241 = math.exp %240 : vector<8x256xf32>
        %242 = vector.broadcast %211 : f32 to vector<8x256xf32>
        %243 = arith.mulf %242, %241 : vector<8x256xf32>
        %cst_54 = arith.constant 9.900000e-01 : f32
        %244 = vector.broadcast %cst_54 : f32 to vector<8x256xf32>
        %245 = arith.minimumf %244, %243 : vector<8x256xf32>
        %cst_55 = arith.constant 0.000000e+00 : f32
        %246 = vector.broadcast %cst_55 : f32 to vector<8x256xf32>
        %247 = arith.cmpf ogt, %arg11, %246 : vector<8x256xf32>
        %cst_56 = arith.constant 0.000000e+00 : f32
        %248 = vector.broadcast %cst_56 : f32 to vector<8x256xf32>
        %249 = arith.cmpf ole, %240, %248 : vector<8x256xf32>
        %250 = arith.andi %247, %249 : vector<8x256xi1>
        %cst_57 = arith.constant 0.00392156886 : f32
        %251 = vector.broadcast %cst_57 : f32 to vector<8x256xf32>
        %252 = arith.cmpf oge, %245, %251 : vector<8x256xf32>
        %253 = arith.andi %250, %252 : vector<8x256xi1>
        %cst_58 = arith.constant 1.000000e+00 : f32
        %254 = vector.broadcast %cst_58 : f32 to vector<8x256xf32>
        %255 = arith.subf %254, %245 : vector<8x256xf32>
        %256 = arith.mulf %arg11, %255 : vector<8x256xf32>
        %cst_59 = arith.constant 9.99999974E-5 : f32
        %257 = vector.broadcast %cst_59 : f32 to vector<8x256xf32>
        %258 = arith.cmpf oge, %256, %257 : vector<8x256xf32>
        %259 = arith.andi %253, %258 : vector<8x256xi1>
        %cst_60 = arith.constant 9.99999974E-5 : f32
        %260 = vector.broadcast %cst_60 : f32 to vector<8x256xf32>
        %261 = arith.cmpf olt, %256, %260 : vector<8x256xf32>
        %262 = arith.andi %253, %261 : vector<8x256xi1>
        %263 = arith.mulf %245, %arg11 : vector<8x256xf32>
        %cst_61 = arith.constant 0.000000e+00 : f32
        %264 = vector.broadcast %cst_61 : f32 to vector<8x256xf32>
        %265 = arith.select %259, %263, %264 : vector<8x256xi1>, vector<8x256xf32>
        %cst_62 = arith.constant 0.000000e+00 : f32
        %266 = vector.broadcast %cst_62 : f32 to vector<8x256xf32>
        %267 = arith.subf %266, %arg11 : vector<8x256xf32>
        %268 = arith.select %262, %267, %arg11 : vector<8x256xi1>, vector<8x256xf32>
        %269 = arith.select %259, %256, %268 : vector<8x256xi1>, vector<8x256xf32>
        %270 = vector.broadcast %213 : f32 to vector<8x256xf32>
        %271 = arith.mulf %270, %265 : vector<8x256xf32>
        %272 = arith.addf %arg12, %271 : vector<8x256xf32>
        %273 = vector.broadcast %215 : f32 to vector<8x256xf32>
        %274 = arith.mulf %273, %265 : vector<8x256xf32>
        %275 = arith.addf %arg13, %274 : vector<8x256xf32>
        %276 = vector.broadcast %217 : f32 to vector<8x256xf32>
        %277 = arith.mulf %276, %265 : vector<8x256xf32>
        %278 = arith.addf %arg14, %277 : vector<8x256xf32>
        %279 = vector.broadcast %219 : f32 to vector<8x256xf32>
        %280 = arith.mulf %279, %265 : vector<8x256xf32>
        %281 = arith.addf %arg15, %280 : vector<8x256xf32>
        %282 = vector.broadcast %221 : f32 to vector<8x256xf32>
        %283 = arith.mulf %282, %265 : vector<8x256xf32>
        %284 = arith.addf %arg16, %283 : vector<8x256xf32>
        %285 = vector.broadcast %223 : f32 to vector<8x256xf32>
        %286 = arith.mulf %285, %265 : vector<8x256xf32>
        %287 = arith.addf %arg17, %286 : vector<8x256xf32>
        %288 = vector.broadcast %225 : f32 to vector<8x256xf32>
        %289 = arith.mulf %288, %265 : vector<8x256xf32>
        %290 = arith.addf %arg18, %289 : vector<8x256xf32>
        scf.yield %269, %272, %275, %278, %281, %284, %287, %290 : vector<8x256xf32>, vector<8x256xf32>, vector<8x256xf32>, vector<8x256xf32>, vector<8x256xf32>, vector<8x256xf32>, vector<8x256xf32>, vector<8x256xf32>
      } else {
        scf.yield %arg11, %arg12, %arg13, %arg14, %arg15, %arg16, %arg17, %arg18 : vector<8x256xf32>, vector<8x256xf32>, vector<8x256xf32>, vector<8x256xf32>, vector<8x256xf32>, vector<8x256xf32>, vector<8x256xf32>, vector<8x256xf32>
      }
      %c1_i32 = arith.constant 1 : i32
      %75 = arith.addi %arg10, %c1_i32 : i32
      %76 = arith.index_cast %arg0 : i32 to index
      %77 = arith.index_cast %75 : i32 to index
      %78 = memref.load %arg3[%76, %77] : memref<4x64xi32, #tpu.memory_space<smem>>
      %c0_30 = arith.constant 0 : index
      %79 = arith.index_cast %78 : i32 to index
      %80 = memref.load %arg4[%c0_30, %79] : memref<14x64xf32, #tpu.memory_space<smem>>
      %c13_31 = arith.constant 13 : index
      %81 = arith.index_cast %78 : i32 to index
      %82 = memref.load %arg4[%c13_31, %81] : memref<14x64xf32, #tpu.memory_space<smem>>
      %83 = arith.cmpi slt, %75, %14 : i32
      %84 = arith.addf %80, %82 : f32
      %85 = arith.cmpf oge, %84, %3 : f32
      %86 = arith.andi %83, %85 : i1
      %87 = arith.subf %80, %82 : f32
      %88 = arith.cmpf ole, %87, %4 : f32
      %89 = arith.andi %86, %88 : i1
      %90 = arith.extui %89 : i1 to i32
      %c0_i32_32 = arith.constant 0 : i32
      %91 = arith.cmpi ne, %90, %c0_i32_32 : i32
      %92:8 = scf.if %91 -> (vector<8x256xf32>, vector<8x256xf32>, vector<8x256xf32>, vector<8x256xf32>, vector<8x256xf32>, vector<8x256xf32>, vector<8x256xf32>, vector<8x256xf32>) {
        %c1_52 = arith.constant 1 : index
        %202 = arith.index_cast %78 : i32 to index
        %203 = memref.load %arg4[%c1_52, %202] : memref<14x64xf32, #tpu.memory_space<smem>>
        %c2_53 = arith.constant 2 : index
        %204 = arith.index_cast %78 : i32 to index
        %205 = memref.load %arg4[%c2_53, %204] : memref<14x64xf32, #tpu.memory_space<smem>>
        %c3 = arith.constant 3 : index
        %206 = arith.index_cast %78 : i32 to index
        %207 = memref.load %arg4[%c3, %206] : memref<14x64xf32, #tpu.memory_space<smem>>
        %c4 = arith.constant 4 : index
        %208 = arith.index_cast %78 : i32 to index
        %209 = memref.load %arg4[%c4, %208] : memref<14x64xf32, #tpu.memory_space<smem>>
        %c5 = arith.constant 5 : index
        %210 = arith.index_cast %78 : i32 to index
        %211 = memref.load %arg4[%c5, %210] : memref<14x64xf32, #tpu.memory_space<smem>>
        %c6 = arith.constant 6 : index
        %212 = arith.index_cast %78 : i32 to index
        %213 = memref.load %arg4[%c6, %212] : memref<14x64xf32, #tpu.memory_space<smem>>
        %c7 = arith.constant 7 : index
        %214 = arith.index_cast %78 : i32 to index
        %215 = memref.load %arg4[%c7, %214] : memref<14x64xf32, #tpu.memory_space<smem>>
        %c8 = arith.constant 8 : index
        %216 = arith.index_cast %78 : i32 to index
        %217 = memref.load %arg4[%c8, %216] : memref<14x64xf32, #tpu.memory_space<smem>>
        %c9 = arith.constant 9 : index
        %218 = arith.index_cast %78 : i32 to index
        %219 = memref.load %arg4[%c9, %218] : memref<14x64xf32, #tpu.memory_space<smem>>
        %c10 = arith.constant 10 : index
        %220 = arith.index_cast %78 : i32 to index
        %221 = memref.load %arg4[%c10, %220] : memref<14x64xf32, #tpu.memory_space<smem>>
        %c11 = arith.constant 11 : index
        %222 = arith.index_cast %78 : i32 to index
        %223 = memref.load %arg4[%c11, %222] : memref<14x64xf32, #tpu.memory_space<smem>>
        %c12 = arith.constant 12 : index
        %224 = arith.index_cast %78 : i32 to index
        %225 = memref.load %arg4[%c12, %224] : memref<14x64xf32, #tpu.memory_space<smem>>
        %226 = vector.broadcast %80 : f32 to vector<8x256xf32>
        %227 = arith.subf %226, %12 : vector<8x256xf32>
        %228 = vector.broadcast %203 : f32 to vector<8x256xf32>
        %229 = arith.subf %228, %8 : vector<8x256xf32>
        %230 = arith.mulf %227, %227 : vector<8x256xf32>
        %231 = vector.broadcast %205 : f32 to vector<8x256xf32>
        %232 = arith.mulf %231, %230 : vector<8x256xf32>
        %233 = arith.mulf %229, %229 : vector<8x256xf32>
        %234 = vector.broadcast %209 : f32 to vector<8x256xf32>
        %235 = arith.mulf %234, %233 : vector<8x256xf32>
        %236 = arith.addf %232, %235 : vector<8x256xf32>
        %237 = arith.mulf %227, %229 : vector<8x256xf32>
        %238 = vector.broadcast %207 : f32 to vector<8x256xf32>
        %239 = arith.mulf %238, %237 : vector<8x256xf32>
        %240 = arith.addf %236, %239 : vector<8x256xf32>
        %241 = math.exp %240 : vector<8x256xf32>
        %242 = vector.broadcast %211 : f32 to vector<8x256xf32>
        %243 = arith.mulf %242, %241 : vector<8x256xf32>
        %cst_54 = arith.constant 9.900000e-01 : f32
        %244 = vector.broadcast %cst_54 : f32 to vector<8x256xf32>
        %245 = arith.minimumf %244, %243 : vector<8x256xf32>
        %cst_55 = arith.constant 0.000000e+00 : f32
        %246 = vector.broadcast %cst_55 : f32 to vector<8x256xf32>
        %247 = arith.cmpf ogt, %74#0, %246 : vector<8x256xf32>
        %cst_56 = arith.constant 0.000000e+00 : f32
        %248 = vector.broadcast %cst_56 : f32 to vector<8x256xf32>
        %249 = arith.cmpf ole, %240, %248 : vector<8x256xf32>
        %250 = arith.andi %247, %249 : vector<8x256xi1>
        %cst_57 = arith.constant 0.00392156886 : f32
        %251 = vector.broadcast %cst_57 : f32 to vector<8x256xf32>
        %252 = arith.cmpf oge, %245, %251 : vector<8x256xf32>
        %253 = arith.andi %250, %252 : vector<8x256xi1>
        %cst_58 = arith.constant 1.000000e+00 : f32
        %254 = vector.broadcast %cst_58 : f32 to vector<8x256xf32>
        %255 = arith.subf %254, %245 : vector<8x256xf32>
        %256 = arith.mulf %74#0, %255 : vector<8x256xf32>
        %cst_59 = arith.constant 9.99999974E-5 : f32
        %257 = vector.broadcast %cst_59 : f32 to vector<8x256xf32>
        %258 = arith.cmpf oge, %256, %257 : vector<8x256xf32>
        %259 = arith.andi %253, %258 : vector<8x256xi1>
        %cst_60 = arith.constant 9.99999974E-5 : f32
        %260 = vector.broadcast %cst_60 : f32 to vector<8x256xf32>
        %261 = arith.cmpf olt, %256, %260 : vector<8x256xf32>
        %262 = arith.andi %253, %261 : vector<8x256xi1>
        %263 = arith.mulf %245, %74#0 : vector<8x256xf32>
        %cst_61 = arith.constant 0.000000e+00 : f32
        %264 = vector.broadcast %cst_61 : f32 to vector<8x256xf32>
        %265 = arith.select %259, %263, %264 : vector<8x256xi1>, vector<8x256xf32>
        %cst_62 = arith.constant 0.000000e+00 : f32
        %266 = vector.broadcast %cst_62 : f32 to vector<8x256xf32>
        %267 = arith.subf %266, %74#0 : vector<8x256xf32>
        %268 = arith.select %262, %267, %74#0 : vector<8x256xi1>, vector<8x256xf32>
        %269 = arith.select %259, %256, %268 : vector<8x256xi1>, vector<8x256xf32>
        %270 = vector.broadcast %213 : f32 to vector<8x256xf32>
        %271 = arith.mulf %270, %265 : vector<8x256xf32>
        %272 = arith.addf %74#1, %271 : vector<8x256xf32>
        %273 = vector.broadcast %215 : f32 to vector<8x256xf32>
        %274 = arith.mulf %273, %265 : vector<8x256xf32>
        %275 = arith.addf %74#2, %274 : vector<8x256xf32>
        %276 = vector.broadcast %217 : f32 to vector<8x256xf32>
        %277 = arith.mulf %276, %265 : vector<8x256xf32>
        %278 = arith.addf %74#3, %277 : vector<8x256xf32>
        %279 = vector.broadcast %219 : f32 to vector<8x256xf32>
        %280 = arith.mulf %279, %265 : vector<8x256xf32>
        %281 = arith.addf %74#4, %280 : vector<8x256xf32>
        %282 = vector.broadcast %221 : f32 to vector<8x256xf32>
        %283 = arith.mulf %282, %265 : vector<8x256xf32>
        %284 = arith.addf %74#5, %283 : vector<8x256xf32>
        %285 = vector.broadcast %223 : f32 to vector<8x256xf32>
        %286 = arith.mulf %285, %265 : vector<8x256xf32>
        %287 = arith.addf %74#6, %286 : vector<8x256xf32>
        %288 = vector.broadcast %225 : f32 to vector<8x256xf32>
        %289 = arith.mulf %288, %265 : vector<8x256xf32>
        %290 = arith.addf %74#7, %289 : vector<8x256xf32>
        scf.yield %269, %272, %275, %278, %281, %284, %287, %290 : vector<8x256xf32>, vector<8x256xf32>, vector<8x256xf32>, vector<8x256xf32>, vector<8x256xf32>, vector<8x256xf32>, vector<8x256xf32>, vector<8x256xf32>
      } else {
        scf.yield %74#0, %74#1, %74#2, %74#3, %74#4, %74#5, %74#6, %74#7 : vector<8x256xf32>, vector<8x256xf32>, vector<8x256xf32>, vector<8x256xf32>, vector<8x256xf32>, vector<8x256xf32>, vector<8x256xf32>, vector<8x256xf32>
      }
      %c2_i32 = arith.constant 2 : i32
      %93 = arith.addi %arg10, %c2_i32 : i32
      %94 = arith.index_cast %arg0 : i32 to index
      %95 = arith.index_cast %93 : i32 to index
      %96 = memref.load %arg3[%94, %95] : memref<4x64xi32, #tpu.memory_space<smem>>
      %c0_33 = arith.constant 0 : index
      %97 = arith.index_cast %96 : i32 to index
      %98 = memref.load %arg4[%c0_33, %97] : memref<14x64xf32, #tpu.memory_space<smem>>
      %c13_34 = arith.constant 13 : index
      %99 = arith.index_cast %96 : i32 to index
      %100 = memref.load %arg4[%c13_34, %99] : memref<14x64xf32, #tpu.memory_space<smem>>
      %101 = arith.cmpi slt, %93, %14 : i32
      %102 = arith.addf %98, %100 : f32
      %103 = arith.cmpf oge, %102, %3 : f32
      %104 = arith.andi %101, %103 : i1
      %105 = arith.subf %98, %100 : f32
      %106 = arith.cmpf ole, %105, %4 : f32
      %107 = arith.andi %104, %106 : i1
      %108 = arith.extui %107 : i1 to i32
      %c0_i32_35 = arith.constant 0 : i32
      %109 = arith.cmpi ne, %108, %c0_i32_35 : i32
      %110:8 = scf.if %109 -> (vector<8x256xf32>, vector<8x256xf32>, vector<8x256xf32>, vector<8x256xf32>, vector<8x256xf32>, vector<8x256xf32>, vector<8x256xf32>, vector<8x256xf32>) {
        %c1_52 = arith.constant 1 : index
        %202 = arith.index_cast %96 : i32 to index
        %203 = memref.load %arg4[%c1_52, %202] : memref<14x64xf32, #tpu.memory_space<smem>>
        %c2_53 = arith.constant 2 : index
        %204 = arith.index_cast %96 : i32 to index
        %205 = memref.load %arg4[%c2_53, %204] : memref<14x64xf32, #tpu.memory_space<smem>>
        %c3 = arith.constant 3 : index
        %206 = arith.index_cast %96 : i32 to index
        %207 = memref.load %arg4[%c3, %206] : memref<14x64xf32, #tpu.memory_space<smem>>
        %c4 = arith.constant 4 : index
        %208 = arith.index_cast %96 : i32 to index
        %209 = memref.load %arg4[%c4, %208] : memref<14x64xf32, #tpu.memory_space<smem>>
        %c5 = arith.constant 5 : index
        %210 = arith.index_cast %96 : i32 to index
        %211 = memref.load %arg4[%c5, %210] : memref<14x64xf32, #tpu.memory_space<smem>>
        %c6 = arith.constant 6 : index
        %212 = arith.index_cast %96 : i32 to index
        %213 = memref.load %arg4[%c6, %212] : memref<14x64xf32, #tpu.memory_space<smem>>
        %c7 = arith.constant 7 : index
        %214 = arith.index_cast %96 : i32 to index
        %215 = memref.load %arg4[%c7, %214] : memref<14x64xf32, #tpu.memory_space<smem>>
        %c8 = arith.constant 8 : index
        %216 = arith.index_cast %96 : i32 to index
        %217 = memref.load %arg4[%c8, %216] : memref<14x64xf32, #tpu.memory_space<smem>>
        %c9 = arith.constant 9 : index
        %218 = arith.index_cast %96 : i32 to index
        %219 = memref.load %arg4[%c9, %218] : memref<14x64xf32, #tpu.memory_space<smem>>
        %c10 = arith.constant 10 : index
        %220 = arith.index_cast %96 : i32 to index
        %221 = memref.load %arg4[%c10, %220] : memref<14x64xf32, #tpu.memory_space<smem>>
        %c11 = arith.constant 11 : index
        %222 = arith.index_cast %96 : i32 to index
        %223 = memref.load %arg4[%c11, %222] : memref<14x64xf32, #tpu.memory_space<smem>>
        %c12 = arith.constant 12 : index
        %224 = arith.index_cast %96 : i32 to index
        %225 = memref.load %arg4[%c12, %224] : memref<14x64xf32, #tpu.memory_space<smem>>
        %226 = vector.broadcast %98 : f32 to vector<8x256xf32>
        %227 = arith.subf %226, %12 : vector<8x256xf32>
        %228 = vector.broadcast %203 : f32 to vector<8x256xf32>
        %229 = arith.subf %228, %8 : vector<8x256xf32>
        %230 = arith.mulf %227, %227 : vector<8x256xf32>
        %231 = vector.broadcast %205 : f32 to vector<8x256xf32>
        %232 = arith.mulf %231, %230 : vector<8x256xf32>
        %233 = arith.mulf %229, %229 : vector<8x256xf32>
        %234 = vector.broadcast %209 : f32 to vector<8x256xf32>
        %235 = arith.mulf %234, %233 : vector<8x256xf32>
        %236 = arith.addf %232, %235 : vector<8x256xf32>
        %237 = arith.mulf %227, %229 : vector<8x256xf32>
        %238 = vector.broadcast %207 : f32 to vector<8x256xf32>
        %239 = arith.mulf %238, %237 : vector<8x256xf32>
        %240 = arith.addf %236, %239 : vector<8x256xf32>
        %241 = math.exp %240 : vector<8x256xf32>
        %242 = vector.broadcast %211 : f32 to vector<8x256xf32>
        %243 = arith.mulf %242, %241 : vector<8x256xf32>
        %cst_54 = arith.constant 9.900000e-01 : f32
        %244 = vector.broadcast %cst_54 : f32 to vector<8x256xf32>
        %245 = arith.minimumf %244, %243 : vector<8x256xf32>
        %cst_55 = arith.constant 0.000000e+00 : f32
        %246 = vector.broadcast %cst_55 : f32 to vector<8x256xf32>
        %247 = arith.cmpf ogt, %92#0, %246 : vector<8x256xf32>
        %cst_56 = arith.constant 0.000000e+00 : f32
        %248 = vector.broadcast %cst_56 : f32 to vector<8x256xf32>
        %249 = arith.cmpf ole, %240, %248 : vector<8x256xf32>
        %250 = arith.andi %247, %249 : vector<8x256xi1>
        %cst_57 = arith.constant 0.00392156886 : f32
        %251 = vector.broadcast %cst_57 : f32 to vector<8x256xf32>
        %252 = arith.cmpf oge, %245, %251 : vector<8x256xf32>
        %253 = arith.andi %250, %252 : vector<8x256xi1>
        %cst_58 = arith.constant 1.000000e+00 : f32
        %254 = vector.broadcast %cst_58 : f32 to vector<8x256xf32>
        %255 = arith.subf %254, %245 : vector<8x256xf32>
        %256 = arith.mulf %92#0, %255 : vector<8x256xf32>
        %cst_59 = arith.constant 9.99999974E-5 : f32
        %257 = vector.broadcast %cst_59 : f32 to vector<8x256xf32>
        %258 = arith.cmpf oge, %256, %257 : vector<8x256xf32>
        %259 = arith.andi %253, %258 : vector<8x256xi1>
        %cst_60 = arith.constant 9.99999974E-5 : f32
        %260 = vector.broadcast %cst_60 : f32 to vector<8x256xf32>
        %261 = arith.cmpf olt, %256, %260 : vector<8x256xf32>
        %262 = arith.andi %253, %261 : vector<8x256xi1>
        %263 = arith.mulf %245, %92#0 : vector<8x256xf32>
        %cst_61 = arith.constant 0.000000e+00 : f32
        %264 = vector.broadcast %cst_61 : f32 to vector<8x256xf32>
        %265 = arith.select %259, %263, %264 : vector<8x256xi1>, vector<8x256xf32>
        %cst_62 = arith.constant 0.000000e+00 : f32
        %266 = vector.broadcast %cst_62 : f32 to vector<8x256xf32>
        %267 = arith.subf %266, %92#0 : vector<8x256xf32>
        %268 = arith.select %262, %267, %92#0 : vector<8x256xi1>, vector<8x256xf32>
        %269 = arith.select %259, %256, %268 : vector<8x256xi1>, vector<8x256xf32>
        %270 = vector.broadcast %213 : f32 to vector<8x256xf32>
        %271 = arith.mulf %270, %265 : vector<8x256xf32>
        %272 = arith.addf %92#1, %271 : vector<8x256xf32>
        %273 = vector.broadcast %215 : f32 to vector<8x256xf32>
        %274 = arith.mulf %273, %265 : vector<8x256xf32>
        %275 = arith.addf %92#2, %274 : vector<8x256xf32>
        %276 = vector.broadcast %217 : f32 to vector<8x256xf32>
        %277 = arith.mulf %276, %265 : vector<8x256xf32>
        %278 = arith.addf %92#3, %277 : vector<8x256xf32>
        %279 = vector.broadcast %219 : f32 to vector<8x256xf32>
        %280 = arith.mulf %279, %265 : vector<8x256xf32>
        %281 = arith.addf %92#4, %280 : vector<8x256xf32>
        %282 = vector.broadcast %221 : f32 to vector<8x256xf32>
        %283 = arith.mulf %282, %265 : vector<8x256xf32>
        %284 = arith.addf %92#5, %283 : vector<8x256xf32>
        %285 = vector.broadcast %223 : f32 to vector<8x256xf32>
        %286 = arith.mulf %285, %265 : vector<8x256xf32>
        %287 = arith.addf %92#6, %286 : vector<8x256xf32>
        %288 = vector.broadcast %225 : f32 to vector<8x256xf32>
        %289 = arith.mulf %288, %265 : vector<8x256xf32>
        %290 = arith.addf %92#7, %289 : vector<8x256xf32>
        scf.yield %269, %272, %275, %278, %281, %284, %287, %290 : vector<8x256xf32>, vector<8x256xf32>, vector<8x256xf32>, vector<8x256xf32>, vector<8x256xf32>, vector<8x256xf32>, vector<8x256xf32>, vector<8x256xf32>
      } else {
        scf.yield %92#0, %92#1, %92#2, %92#3, %92#4, %92#5, %92#6, %92#7 : vector<8x256xf32>, vector<8x256xf32>, vector<8x256xf32>, vector<8x256xf32>, vector<8x256xf32>, vector<8x256xf32>, vector<8x256xf32>, vector<8x256xf32>
      }
      %c3_i32 = arith.constant 3 : i32
      %111 = arith.addi %arg10, %c3_i32 : i32
      %112 = arith.index_cast %arg0 : i32 to index
      %113 = arith.index_cast %111 : i32 to index
      %114 = memref.load %arg3[%112, %113] : memref<4x64xi32, #tpu.memory_space<smem>>
      %c0_36 = arith.constant 0 : index
      %115 = arith.index_cast %114 : i32 to index
      %116 = memref.load %arg4[%c0_36, %115] : memref<14x64xf32, #tpu.memory_space<smem>>
      %c13_37 = arith.constant 13 : index
      %117 = arith.index_cast %114 : i32 to index
      %118 = memref.load %arg4[%c13_37, %117] : memref<14x64xf32, #tpu.memory_space<smem>>
      %119 = arith.cmpi slt, %111, %14 : i32
      %120 = arith.addf %116, %118 : f32
      %121 = arith.cmpf oge, %120, %3 : f32
      %122 = arith.andi %119, %121 : i1
      %123 = arith.subf %116, %118 : f32
      %124 = arith.cmpf ole, %123, %4 : f32
      %125 = arith.andi %122, %124 : i1
      %126 = arith.extui %125 : i1 to i32
      %c0_i32_38 = arith.constant 0 : i32
      %127 = arith.cmpi ne, %126, %c0_i32_38 : i32
      %128:8 = scf.if %127 -> (vector<8x256xf32>, vector<8x256xf32>, vector<8x256xf32>, vector<8x256xf32>, vector<8x256xf32>, vector<8x256xf32>, vector<8x256xf32>, vector<8x256xf32>) {
        %c1_52 = arith.constant 1 : index
        %202 = arith.index_cast %114 : i32 to index
        %203 = memref.load %arg4[%c1_52, %202] : memref<14x64xf32, #tpu.memory_space<smem>>
        %c2_53 = arith.constant 2 : index
        %204 = arith.index_cast %114 : i32 to index
        %205 = memref.load %arg4[%c2_53, %204] : memref<14x64xf32, #tpu.memory_space<smem>>
        %c3 = arith.constant 3 : index
        %206 = arith.index_cast %114 : i32 to index
        %207 = memref.load %arg4[%c3, %206] : memref<14x64xf32, #tpu.memory_space<smem>>
        %c4 = arith.constant 4 : index
        %208 = arith.index_cast %114 : i32 to index
        %209 = memref.load %arg4[%c4, %208] : memref<14x64xf32, #tpu.memory_space<smem>>
        %c5 = arith.constant 5 : index
        %210 = arith.index_cast %114 : i32 to index
        %211 = memref.load %arg4[%c5, %210] : memref<14x64xf32, #tpu.memory_space<smem>>
        %c6 = arith.constant 6 : index
        %212 = arith.index_cast %114 : i32 to index
        %213 = memref.load %arg4[%c6, %212] : memref<14x64xf32, #tpu.memory_space<smem>>
        %c7 = arith.constant 7 : index
        %214 = arith.index_cast %114 : i32 to index
        %215 = memref.load %arg4[%c7, %214] : memref<14x64xf32, #tpu.memory_space<smem>>
        %c8 = arith.constant 8 : index
        %216 = arith.index_cast %114 : i32 to index
        %217 = memref.load %arg4[%c8, %216] : memref<14x64xf32, #tpu.memory_space<smem>>
        %c9 = arith.constant 9 : index
        %218 = arith.index_cast %114 : i32 to index
        %219 = memref.load %arg4[%c9, %218] : memref<14x64xf32, #tpu.memory_space<smem>>
        %c10 = arith.constant 10 : index
        %220 = arith.index_cast %114 : i32 to index
        %221 = memref.load %arg4[%c10, %220] : memref<14x64xf32, #tpu.memory_space<smem>>
        %c11 = arith.constant 11 : index
        %222 = arith.index_cast %114 : i32 to index
        %223 = memref.load %arg4[%c11, %222] : memref<14x64xf32, #tpu.memory_space<smem>>
        %c12 = arith.constant 12 : index
        %224 = arith.index_cast %114 : i32 to index
        %225 = memref.load %arg4[%c12, %224] : memref<14x64xf32, #tpu.memory_space<smem>>
        %226 = vector.broadcast %116 : f32 to vector<8x256xf32>
        %227 = arith.subf %226, %12 : vector<8x256xf32>
        %228 = vector.broadcast %203 : f32 to vector<8x256xf32>
        %229 = arith.subf %228, %8 : vector<8x256xf32>
        %230 = arith.mulf %227, %227 : vector<8x256xf32>
        %231 = vector.broadcast %205 : f32 to vector<8x256xf32>
        %232 = arith.mulf %231, %230 : vector<8x256xf32>
        %233 = arith.mulf %229, %229 : vector<8x256xf32>
        %234 = vector.broadcast %209 : f32 to vector<8x256xf32>
        %235 = arith.mulf %234, %233 : vector<8x256xf32>
        %236 = arith.addf %232, %235 : vector<8x256xf32>
        %237 = arith.mulf %227, %229 : vector<8x256xf32>
        %238 = vector.broadcast %207 : f32 to vector<8x256xf32>
        %239 = arith.mulf %238, %237 : vector<8x256xf32>
        %240 = arith.addf %236, %239 : vector<8x256xf32>
        %241 = math.exp %240 : vector<8x256xf32>
        %242 = vector.broadcast %211 : f32 to vector<8x256xf32>
        %243 = arith.mulf %242, %241 : vector<8x256xf32>
        %cst_54 = arith.constant 9.900000e-01 : f32
        %244 = vector.broadcast %cst_54 : f32 to vector<8x256xf32>
        %245 = arith.minimumf %244, %243 : vector<8x256xf32>
        %cst_55 = arith.constant 0.000000e+00 : f32
        %246 = vector.broadcast %cst_55 : f32 to vector<8x256xf32>
        %247 = arith.cmpf ogt, %110#0, %246 : vector<8x256xf32>
        %cst_56 = arith.constant 0.000000e+00 : f32
        %248 = vector.broadcast %cst_56 : f32 to vector<8x256xf32>
        %249 = arith.cmpf ole, %240, %248 : vector<8x256xf32>
        %250 = arith.andi %247, %249 : vector<8x256xi1>
        %cst_57 = arith.constant 0.00392156886 : f32
        %251 = vector.broadcast %cst_57 : f32 to vector<8x256xf32>
        %252 = arith.cmpf oge, %245, %251 : vector<8x256xf32>
        %253 = arith.andi %250, %252 : vector<8x256xi1>
        %cst_58 = arith.constant 1.000000e+00 : f32
        %254 = vector.broadcast %cst_58 : f32 to vector<8x256xf32>
        %255 = arith.subf %254, %245 : vector<8x256xf32>
        %256 = arith.mulf %110#0, %255 : vector<8x256xf32>
        %cst_59 = arith.constant 9.99999974E-5 : f32
        %257 = vector.broadcast %cst_59 : f32 to vector<8x256xf32>
        %258 = arith.cmpf oge, %256, %257 : vector<8x256xf32>
        %259 = arith.andi %253, %258 : vector<8x256xi1>
        %cst_60 = arith.constant 9.99999974E-5 : f32
        %260 = vector.broadcast %cst_60 : f32 to vector<8x256xf32>
        %261 = arith.cmpf olt, %256, %260 : vector<8x256xf32>
        %262 = arith.andi %253, %261 : vector<8x256xi1>
        %263 = arith.mulf %245, %110#0 : vector<8x256xf32>
        %cst_61 = arith.constant 0.000000e+00 : f32
        %264 = vector.broadcast %cst_61 : f32 to vector<8x256xf32>
        %265 = arith.select %259, %263, %264 : vector<8x256xi1>, vector<8x256xf32>
        %cst_62 = arith.constant 0.000000e+00 : f32
        %266 = vector.broadcast %cst_62 : f32 to vector<8x256xf32>
        %267 = arith.subf %266, %110#0 : vector<8x256xf32>
        %268 = arith.select %262, %267, %110#0 : vector<8x256xi1>, vector<8x256xf32>
        %269 = arith.select %259, %256, %268 : vector<8x256xi1>, vector<8x256xf32>
        %270 = vector.broadcast %213 : f32 to vector<8x256xf32>
        %271 = arith.mulf %270, %265 : vector<8x256xf32>
        %272 = arith.addf %110#1, %271 : vector<8x256xf32>
        %273 = vector.broadcast %215 : f32 to vector<8x256xf32>
        %274 = arith.mulf %273, %265 : vector<8x256xf32>
        %275 = arith.addf %110#2, %274 : vector<8x256xf32>
        %276 = vector.broadcast %217 : f32 to vector<8x256xf32>
        %277 = arith.mulf %276, %265 : vector<8x256xf32>
        %278 = arith.addf %110#3, %277 : vector<8x256xf32>
        %279 = vector.broadcast %219 : f32 to vector<8x256xf32>
        %280 = arith.mulf %279, %265 : vector<8x256xf32>
        %281 = arith.addf %110#4, %280 : vector<8x256xf32>
        %282 = vector.broadcast %221 : f32 to vector<8x256xf32>
        %283 = arith.mulf %282, %265 : vector<8x256xf32>
        %284 = arith.addf %110#5, %283 : vector<8x256xf32>
        %285 = vector.broadcast %223 : f32 to vector<8x256xf32>
        %286 = arith.mulf %285, %265 : vector<8x256xf32>
        %287 = arith.addf %110#6, %286 : vector<8x256xf32>
        %288 = vector.broadcast %225 : f32 to vector<8x256xf32>
        %289 = arith.mulf %288, %265 : vector<8x256xf32>
        %290 = arith.addf %110#7, %289 : vector<8x256xf32>
        scf.yield %269, %272, %275, %278, %281, %284, %287, %290 : vector<8x256xf32>, vector<8x256xf32>, vector<8x256xf32>, vector<8x256xf32>, vector<8x256xf32>, vector<8x256xf32>, vector<8x256xf32>, vector<8x256xf32>
      } else {
        scf.yield %110#0, %110#1, %110#2, %110#3, %110#4, %110#5, %110#6, %110#7 : vector<8x256xf32>, vector<8x256xf32>, vector<8x256xf32>, vector<8x256xf32>, vector<8x256xf32>, vector<8x256xf32>, vector<8x256xf32>, vector<8x256xf32>
      }
      %c4_i32 = arith.constant 4 : i32
      %129 = arith.addi %arg10, %c4_i32 : i32
      %130 = arith.index_cast %arg0 : i32 to index
      %131 = arith.index_cast %129 : i32 to index
      %132 = memref.load %arg3[%130, %131] : memref<4x64xi32, #tpu.memory_space<smem>>
      %c0_39 = arith.constant 0 : index
      %133 = arith.index_cast %132 : i32 to index
      %134 = memref.load %arg4[%c0_39, %133] : memref<14x64xf32, #tpu.memory_space<smem>>
      %c13_40 = arith.constant 13 : index
      %135 = arith.index_cast %132 : i32 to index
      %136 = memref.load %arg4[%c13_40, %135] : memref<14x64xf32, #tpu.memory_space<smem>>
      %137 = arith.cmpi slt, %129, %14 : i32
      %138 = arith.addf %134, %136 : f32
      %139 = arith.cmpf oge, %138, %3 : f32
      %140 = arith.andi %137, %139 : i1
      %141 = arith.subf %134, %136 : f32
      %142 = arith.cmpf ole, %141, %4 : f32
      %143 = arith.andi %140, %142 : i1
      %144 = arith.extui %143 : i1 to i32
      %c0_i32_41 = arith.constant 0 : i32
      %145 = arith.cmpi ne, %144, %c0_i32_41 : i32
      %146:8 = scf.if %145 -> (vector<8x256xf32>, vector<8x256xf32>, vector<8x256xf32>, vector<8x256xf32>, vector<8x256xf32>, vector<8x256xf32>, vector<8x256xf32>, vector<8x256xf32>) {
        %c1_52 = arith.constant 1 : index
        %202 = arith.index_cast %132 : i32 to index
        %203 = memref.load %arg4[%c1_52, %202] : memref<14x64xf32, #tpu.memory_space<smem>>
        %c2_53 = arith.constant 2 : index
        %204 = arith.index_cast %132 : i32 to index
        %205 = memref.load %arg4[%c2_53, %204] : memref<14x64xf32, #tpu.memory_space<smem>>
        %c3 = arith.constant 3 : index
        %206 = arith.index_cast %132 : i32 to index
        %207 = memref.load %arg4[%c3, %206] : memref<14x64xf32, #tpu.memory_space<smem>>
        %c4 = arith.constant 4 : index
        %208 = arith.index_cast %132 : i32 to index
        %209 = memref.load %arg4[%c4, %208] : memref<14x64xf32, #tpu.memory_space<smem>>
        %c5 = arith.constant 5 : index
        %210 = arith.index_cast %132 : i32 to index
        %211 = memref.load %arg4[%c5, %210] : memref<14x64xf32, #tpu.memory_space<smem>>
        %c6 = arith.constant 6 : index
        %212 = arith.index_cast %132 : i32 to index
        %213 = memref.load %arg4[%c6, %212] : memref<14x64xf32, #tpu.memory_space<smem>>
        %c7 = arith.constant 7 : index
        %214 = arith.index_cast %132 : i32 to index
        %215 = memref.load %arg4[%c7, %214] : memref<14x64xf32, #tpu.memory_space<smem>>
        %c8 = arith.constant 8 : index
        %216 = arith.index_cast %132 : i32 to index
        %217 = memref.load %arg4[%c8, %216] : memref<14x64xf32, #tpu.memory_space<smem>>
        %c9 = arith.constant 9 : index
        %218 = arith.index_cast %132 : i32 to index
        %219 = memref.load %arg4[%c9, %218] : memref<14x64xf32, #tpu.memory_space<smem>>
        %c10 = arith.constant 10 : index
        %220 = arith.index_cast %132 : i32 to index
        %221 = memref.load %arg4[%c10, %220] : memref<14x64xf32, #tpu.memory_space<smem>>
        %c11 = arith.constant 11 : index
        %222 = arith.index_cast %132 : i32 to index
        %223 = memref.load %arg4[%c11, %222] : memref<14x64xf32, #tpu.memory_space<smem>>
        %c12 = arith.constant 12 : index
        %224 = arith.index_cast %132 : i32 to index
        %225 = memref.load %arg4[%c12, %224] : memref<14x64xf32, #tpu.memory_space<smem>>
        %226 = vector.broadcast %134 : f32 to vector<8x256xf32>
        %227 = arith.subf %226, %12 : vector<8x256xf32>
        %228 = vector.broadcast %203 : f32 to vector<8x256xf32>
        %229 = arith.subf %228, %8 : vector<8x256xf32>
        %230 = arith.mulf %227, %227 : vector<8x256xf32>
        %231 = vector.broadcast %205 : f32 to vector<8x256xf32>
        %232 = arith.mulf %231, %230 : vector<8x256xf32>
        %233 = arith.mulf %229, %229 : vector<8x256xf32>
        %234 = vector.broadcast %209 : f32 to vector<8x256xf32>
        %235 = arith.mulf %234, %233 : vector<8x256xf32>
        %236 = arith.addf %232, %235 : vector<8x256xf32>
        %237 = arith.mulf %227, %229 : vector<8x256xf32>
        %238 = vector.broadcast %207 : f32 to vector<8x256xf32>
        %239 = arith.mulf %238, %237 : vector<8x256xf32>
        %240 = arith.addf %236, %239 : vector<8x256xf32>
        %241 = math.exp %240 : vector<8x256xf32>
        %242 = vector.broadcast %211 : f32 to vector<8x256xf32>
        %243 = arith.mulf %242, %241 : vector<8x256xf32>
        %cst_54 = arith.constant 9.900000e-01 : f32
        %244 = vector.broadcast %cst_54 : f32 to vector<8x256xf32>
        %245 = arith.minimumf %244, %243 : vector<8x256xf32>
        %cst_55 = arith.constant 0.000000e+00 : f32
        %246 = vector.broadcast %cst_55 : f32 to vector<8x256xf32>
        %247 = arith.cmpf ogt, %128#0, %246 : vector<8x256xf32>
        %cst_56 = arith.constant 0.000000e+00 : f32
        %248 = vector.broadcast %cst_56 : f32 to vector<8x256xf32>
        %249 = arith.cmpf ole, %240, %248 : vector<8x256xf32>
        %250 = arith.andi %247, %249 : vector<8x256xi1>
        %cst_57 = arith.constant 0.00392156886 : f32
        %251 = vector.broadcast %cst_57 : f32 to vector<8x256xf32>
        %252 = arith.cmpf oge, %245, %251 : vector<8x256xf32>
        %253 = arith.andi %250, %252 : vector<8x256xi1>
        %cst_58 = arith.constant 1.000000e+00 : f32
        %254 = vector.broadcast %cst_58 : f32 to vector<8x256xf32>
        %255 = arith.subf %254, %245 : vector<8x256xf32>
        %256 = arith.mulf %128#0, %255 : vector<8x256xf32>
        %cst_59 = arith.constant 9.99999974E-5 : f32
        %257 = vector.broadcast %cst_59 : f32 to vector<8x256xf32>
        %258 = arith.cmpf oge, %256, %257 : vector<8x256xf32>
        %259 = arith.andi %253, %258 : vector<8x256xi1>
        %cst_60 = arith.constant 9.99999974E-5 : f32
        %260 = vector.broadcast %cst_60 : f32 to vector<8x256xf32>
        %261 = arith.cmpf olt, %256, %260 : vector<8x256xf32>
        %262 = arith.andi %253, %261 : vector<8x256xi1>
        %263 = arith.mulf %245, %128#0 : vector<8x256xf32>
        %cst_61 = arith.constant 0.000000e+00 : f32
        %264 = vector.broadcast %cst_61 : f32 to vector<8x256xf32>
        %265 = arith.select %259, %263, %264 : vector<8x256xi1>, vector<8x256xf32>
        %cst_62 = arith.constant 0.000000e+00 : f32
        %266 = vector.broadcast %cst_62 : f32 to vector<8x256xf32>
        %267 = arith.subf %266, %128#0 : vector<8x256xf32>
        %268 = arith.select %262, %267, %128#0 : vector<8x256xi1>, vector<8x256xf32>
        %269 = arith.select %259, %256, %268 : vector<8x256xi1>, vector<8x256xf32>
        %270 = vector.broadcast %213 : f32 to vector<8x256xf32>
        %271 = arith.mulf %270, %265 : vector<8x256xf32>
        %272 = arith.addf %128#1, %271 : vector<8x256xf32>
        %273 = vector.broadcast %215 : f32 to vector<8x256xf32>
        %274 = arith.mulf %273, %265 : vector<8x256xf32>
        %275 = arith.addf %128#2, %274 : vector<8x256xf32>
        %276 = vector.broadcast %217 : f32 to vector<8x256xf32>
        %277 = arith.mulf %276, %265 : vector<8x256xf32>
        %278 = arith.addf %128#3, %277 : vector<8x256xf32>
        %279 = vector.broadcast %219 : f32 to vector<8x256xf32>
        %280 = arith.mulf %279, %265 : vector<8x256xf32>
        %281 = arith.addf %128#4, %280 : vector<8x256xf32>
        %282 = vector.broadcast %221 : f32 to vector<8x256xf32>
        %283 = arith.mulf %282, %265 : vector<8x256xf32>
        %284 = arith.addf %128#5, %283 : vector<8x256xf32>
        %285 = vector.broadcast %223 : f32 to vector<8x256xf32>
        %286 = arith.mulf %285, %265 : vector<8x256xf32>
        %287 = arith.addf %128#6, %286 : vector<8x256xf32>
        %288 = vector.broadcast %225 : f32 to vector<8x256xf32>
        %289 = arith.mulf %288, %265 : vector<8x256xf32>
        %290 = arith.addf %128#7, %289 : vector<8x256xf32>
        scf.yield %269, %272, %275, %278, %281, %284, %287, %290 : vector<8x256xf32>, vector<8x256xf32>, vector<8x256xf32>, vector<8x256xf32>, vector<8x256xf32>, vector<8x256xf32>, vector<8x256xf32>, vector<8x256xf32>
      } else {
        scf.yield %128#0, %128#1, %128#2, %128#3, %128#4, %128#5, %128#6, %128#7 : vector<8x256xf32>, vector<8x256xf32>, vector<8x256xf32>, vector<8x256xf32>, vector<8x256xf32>, vector<8x256xf32>, vector<8x256xf32>, vector<8x256xf32>
      }
      %c5_i32 = arith.constant 5 : i32
      %147 = arith.addi %arg10, %c5_i32 : i32
      %148 = arith.index_cast %arg0 : i32 to index
      %149 = arith.index_cast %147 : i32 to index
      %150 = memref.load %arg3[%148, %149] : memref<4x64xi32, #tpu.memory_space<smem>>
      %c0_42 = arith.constant 0 : index
      %151 = arith.index_cast %150 : i32 to index
      %152 = memref.load %arg4[%c0_42, %151] : memref<14x64xf32, #tpu.memory_space<smem>>
      %c13_43 = arith.constant 13 : index
      %153 = arith.index_cast %150 : i32 to index
      %154 = memref.load %arg4[%c13_43, %153] : memref<14x64xf32, #tpu.memory_space<smem>>
      %155 = arith.cmpi slt, %147, %14 : i32
      %156 = arith.addf %152, %154 : f32
      %157 = arith.cmpf oge, %156, %3 : f32
      %158 = arith.andi %155, %157 : i1
      %159 = arith.subf %152, %154 : f32
      %160 = arith.cmpf ole, %159, %4 : f32
      %161 = arith.andi %158, %160 : i1
      %162 = arith.extui %161 : i1 to i32
      %c0_i32_44 = arith.constant 0 : i32
      %163 = arith.cmpi ne, %162, %c0_i32_44 : i32
      %164:8 = scf.if %163 -> (vector<8x256xf32>, vector<8x256xf32>, vector<8x256xf32>, vector<8x256xf32>, vector<8x256xf32>, vector<8x256xf32>, vector<8x256xf32>, vector<8x256xf32>) {
        %c1_52 = arith.constant 1 : index
        %202 = arith.index_cast %150 : i32 to index
        %203 = memref.load %arg4[%c1_52, %202] : memref<14x64xf32, #tpu.memory_space<smem>>
        %c2_53 = arith.constant 2 : index
        %204 = arith.index_cast %150 : i32 to index
        %205 = memref.load %arg4[%c2_53, %204] : memref<14x64xf32, #tpu.memory_space<smem>>
        %c3 = arith.constant 3 : index
        %206 = arith.index_cast %150 : i32 to index
        %207 = memref.load %arg4[%c3, %206] : memref<14x64xf32, #tpu.memory_space<smem>>
        %c4 = arith.constant 4 : index
        %208 = arith.index_cast %150 : i32 to index
        %209 = memref.load %arg4[%c4, %208] : memref<14x64xf32, #tpu.memory_space<smem>>
        %c5 = arith.constant 5 : index
        %210 = arith.index_cast %150 : i32 to index
        %211 = memref.load %arg4[%c5, %210] : memref<14x64xf32, #tpu.memory_space<smem>>
        %c6 = arith.constant 6 : index
        %212 = arith.index_cast %150 : i32 to index
        %213 = memref.load %arg4[%c6, %212] : memref<14x64xf32, #tpu.memory_space<smem>>
        %c7 = arith.constant 7 : index
        %214 = arith.index_cast %150 : i32 to index
        %215 = memref.load %arg4[%c7, %214] : memref<14x64xf32, #tpu.memory_space<smem>>
        %c8 = arith.constant 8 : index
        %216 = arith.index_cast %150 : i32 to index
        %217 = memref.load %arg4[%c8, %216] : memref<14x64xf32, #tpu.memory_space<smem>>
        %c9 = arith.constant 9 : index
        %218 = arith.index_cast %150 : i32 to index
        %219 = memref.load %arg4[%c9, %218] : memref<14x64xf32, #tpu.memory_space<smem>>
        %c10 = arith.constant 10 : index
        %220 = arith.index_cast %150 : i32 to index
        %221 = memref.load %arg4[%c10, %220] : memref<14x64xf32, #tpu.memory_space<smem>>
        %c11 = arith.constant 11 : index
        %222 = arith.index_cast %150 : i32 to index
        %223 = memref.load %arg4[%c11, %222] : memref<14x64xf32, #tpu.memory_space<smem>>
        %c12 = arith.constant 12 : index
        %224 = arith.index_cast %150 : i32 to index
        %225 = memref.load %arg4[%c12, %224] : memref<14x64xf32, #tpu.memory_space<smem>>
        %226 = vector.broadcast %152 : f32 to vector<8x256xf32>
        %227 = arith.subf %226, %12 : vector<8x256xf32>
        %228 = vector.broadcast %203 : f32 to vector<8x256xf32>
        %229 = arith.subf %228, %8 : vector<8x256xf32>
        %230 = arith.mulf %227, %227 : vector<8x256xf32>
        %231 = vector.broadcast %205 : f32 to vector<8x256xf32>
        %232 = arith.mulf %231, %230 : vector<8x256xf32>
        %233 = arith.mulf %229, %229 : vector<8x256xf32>
        %234 = vector.broadcast %209 : f32 to vector<8x256xf32>
        %235 = arith.mulf %234, %233 : vector<8x256xf32>
        %236 = arith.addf %232, %235 : vector<8x256xf32>
        %237 = arith.mulf %227, %229 : vector<8x256xf32>
        %238 = vector.broadcast %207 : f32 to vector<8x256xf32>
        %239 = arith.mulf %238, %237 : vector<8x256xf32>
        %240 = arith.addf %236, %239 : vector<8x256xf32>
        %241 = math.exp %240 : vector<8x256xf32>
        %242 = vector.broadcast %211 : f32 to vector<8x256xf32>
        %243 = arith.mulf %242, %241 : vector<8x256xf32>
        %cst_54 = arith.constant 9.900000e-01 : f32
        %244 = vector.broadcast %cst_54 : f32 to vector<8x256xf32>
        %245 = arith.minimumf %244, %243 : vector<8x256xf32>
        %cst_55 = arith.constant 0.000000e+00 : f32
        %246 = vector.broadcast %cst_55 : f32 to vector<8x256xf32>
        %247 = arith.cmpf ogt, %146#0, %246 : vector<8x256xf32>
        %cst_56 = arith.constant 0.000000e+00 : f32
        %248 = vector.broadcast %cst_56 : f32 to vector<8x256xf32>
        %249 = arith.cmpf ole, %240, %248 : vector<8x256xf32>
        %250 = arith.andi %247, %249 : vector<8x256xi1>
        %cst_57 = arith.constant 0.00392156886 : f32
        %251 = vector.broadcast %cst_57 : f32 to vector<8x256xf32>
        %252 = arith.cmpf oge, %245, %251 : vector<8x256xf32>
        %253 = arith.andi %250, %252 : vector<8x256xi1>
        %cst_58 = arith.constant 1.000000e+00 : f32
        %254 = vector.broadcast %cst_58 : f32 to vector<8x256xf32>
        %255 = arith.subf %254, %245 : vector<8x256xf32>
        %256 = arith.mulf %146#0, %255 : vector<8x256xf32>
        %cst_59 = arith.constant 9.99999974E-5 : f32
        %257 = vector.broadcast %cst_59 : f32 to vector<8x256xf32>
        %258 = arith.cmpf oge, %256, %257 : vector<8x256xf32>
        %259 = arith.andi %253, %258 : vector<8x256xi1>
        %cst_60 = arith.constant 9.99999974E-5 : f32
        %260 = vector.broadcast %cst_60 : f32 to vector<8x256xf32>
        %261 = arith.cmpf olt, %256, %260 : vector<8x256xf32>
        %262 = arith.andi %253, %261 : vector<8x256xi1>
        %263 = arith.mulf %245, %146#0 : vector<8x256xf32>
        %cst_61 = arith.constant 0.000000e+00 : f32
        %264 = vector.broadcast %cst_61 : f32 to vector<8x256xf32>
        %265 = arith.select %259, %263, %264 : vector<8x256xi1>, vector<8x256xf32>
        %cst_62 = arith.constant 0.000000e+00 : f32
        %266 = vector.broadcast %cst_62 : f32 to vector<8x256xf32>
        %267 = arith.subf %266, %146#0 : vector<8x256xf32>
        %268 = arith.select %262, %267, %146#0 : vector<8x256xi1>, vector<8x256xf32>
        %269 = arith.select %259, %256, %268 : vector<8x256xi1>, vector<8x256xf32>
        %270 = vector.broadcast %213 : f32 to vector<8x256xf32>
        %271 = arith.mulf %270, %265 : vector<8x256xf32>
        %272 = arith.addf %146#1, %271 : vector<8x256xf32>
        %273 = vector.broadcast %215 : f32 to vector<8x256xf32>
        %274 = arith.mulf %273, %265 : vector<8x256xf32>
        %275 = arith.addf %146#2, %274 : vector<8x256xf32>
        %276 = vector.broadcast %217 : f32 to vector<8x256xf32>
        %277 = arith.mulf %276, %265 : vector<8x256xf32>
        %278 = arith.addf %146#3, %277 : vector<8x256xf32>
        %279 = vector.broadcast %219 : f32 to vector<8x256xf32>
        %280 = arith.mulf %279, %265 : vector<8x256xf32>
        %281 = arith.addf %146#4, %280 : vector<8x256xf32>
        %282 = vector.broadcast %221 : f32 to vector<8x256xf32>
        %283 = arith.mulf %282, %265 : vector<8x256xf32>
        %284 = arith.addf %146#5, %283 : vector<8x256xf32>
        %285 = vector.broadcast %223 : f32 to vector<8x256xf32>
        %286 = arith.mulf %285, %265 : vector<8x256xf32>
        %287 = arith.addf %146#6, %286 : vector<8x256xf32>
        %288 = vector.broadcast %225 : f32 to vector<8x256xf32>
        %289 = arith.mulf %288, %265 : vector<8x256xf32>
        %290 = arith.addf %146#7, %289 : vector<8x256xf32>
        scf.yield %269, %272, %275, %278, %281, %284, %287, %290 : vector<8x256xf32>, vector<8x256xf32>, vector<8x256xf32>, vector<8x256xf32>, vector<8x256xf32>, vector<8x256xf32>, vector<8x256xf32>, vector<8x256xf32>
      } else {
        scf.yield %146#0, %146#1, %146#2, %146#3, %146#4, %146#5, %146#6, %146#7 : vector<8x256xf32>, vector<8x256xf32>, vector<8x256xf32>, vector<8x256xf32>, vector<8x256xf32>, vector<8x256xf32>, vector<8x256xf32>, vector<8x256xf32>
      }
      %c6_i32 = arith.constant 6 : i32
      %165 = arith.addi %arg10, %c6_i32 : i32
      %166 = arith.index_cast %arg0 : i32 to index
      %167 = arith.index_cast %165 : i32 to index
      %168 = memref.load %arg3[%166, %167] : memref<4x64xi32, #tpu.memory_space<smem>>
      %c0_45 = arith.constant 0 : index
      %169 = arith.index_cast %168 : i32 to index
      %170 = memref.load %arg4[%c0_45, %169] : memref<14x64xf32, #tpu.memory_space<smem>>
      %c13_46 = arith.constant 13 : index
      %171 = arith.index_cast %168 : i32 to index
      %172 = memref.load %arg4[%c13_46, %171] : memref<14x64xf32, #tpu.memory_space<smem>>
      %173 = arith.cmpi slt, %165, %14 : i32
      %174 = arith.addf %170, %172 : f32
      %175 = arith.cmpf oge, %174, %3 : f32
      %176 = arith.andi %173, %175 : i1
      %177 = arith.subf %170, %172 : f32
      %178 = arith.cmpf ole, %177, %4 : f32
      %179 = arith.andi %176, %178 : i1
      %180 = arith.extui %179 : i1 to i32
      %c0_i32_47 = arith.constant 0 : i32
      %181 = arith.cmpi ne, %180, %c0_i32_47 : i32
      %182:8 = scf.if %181 -> (vector<8x256xf32>, vector<8x256xf32>, vector<8x256xf32>, vector<8x256xf32>, vector<8x256xf32>, vector<8x256xf32>, vector<8x256xf32>, vector<8x256xf32>) {
        %c1_52 = arith.constant 1 : index
        %202 = arith.index_cast %168 : i32 to index
        %203 = memref.load %arg4[%c1_52, %202] : memref<14x64xf32, #tpu.memory_space<smem>>
        %c2_53 = arith.constant 2 : index
        %204 = arith.index_cast %168 : i32 to index
        %205 = memref.load %arg4[%c2_53, %204] : memref<14x64xf32, #tpu.memory_space<smem>>
        %c3 = arith.constant 3 : index
        %206 = arith.index_cast %168 : i32 to index
        %207 = memref.load %arg4[%c3, %206] : memref<14x64xf32, #tpu.memory_space<smem>>
        %c4 = arith.constant 4 : index
        %208 = arith.index_cast %168 : i32 to index
        %209 = memref.load %arg4[%c4, %208] : memref<14x64xf32, #tpu.memory_space<smem>>
        %c5 = arith.constant 5 : index
        %210 = arith.index_cast %168 : i32 to index
        %211 = memref.load %arg4[%c5, %210] : memref<14x64xf32, #tpu.memory_space<smem>>
        %c6 = arith.constant 6 : index
        %212 = arith.index_cast %168 : i32 to index
        %213 = memref.load %arg4[%c6, %212] : memref<14x64xf32, #tpu.memory_space<smem>>
        %c7 = arith.constant 7 : index
        %214 = arith.index_cast %168 : i32 to index
        %215 = memref.load %arg4[%c7, %214] : memref<14x64xf32, #tpu.memory_space<smem>>
        %c8 = arith.constant 8 : index
        %216 = arith.index_cast %168 : i32 to index
        %217 = memref.load %arg4[%c8, %216] : memref<14x64xf32, #tpu.memory_space<smem>>
        %c9 = arith.constant 9 : index
        %218 = arith.index_cast %168 : i32 to index
        %219 = memref.load %arg4[%c9, %218] : memref<14x64xf32, #tpu.memory_space<smem>>
        %c10 = arith.constant 10 : index
        %220 = arith.index_cast %168 : i32 to index
        %221 = memref.load %arg4[%c10, %220] : memref<14x64xf32, #tpu.memory_space<smem>>
        %c11 = arith.constant 11 : index
        %222 = arith.index_cast %168 : i32 to index
        %223 = memref.load %arg4[%c11, %222] : memref<14x64xf32, #tpu.memory_space<smem>>
        %c12 = arith.constant 12 : index
        %224 = arith.index_cast %168 : i32 to index
        %225 = memref.load %arg4[%c12, %224] : memref<14x64xf32, #tpu.memory_space<smem>>
        %226 = vector.broadcast %170 : f32 to vector<8x256xf32>
        %227 = arith.subf %226, %12 : vector<8x256xf32>
        %228 = vector.broadcast %203 : f32 to vector<8x256xf32>
        %229 = arith.subf %228, %8 : vector<8x256xf32>
        %230 = arith.mulf %227, %227 : vector<8x256xf32>
        %231 = vector.broadcast %205 : f32 to vector<8x256xf32>
        %232 = arith.mulf %231, %230 : vector<8x256xf32>
        %233 = arith.mulf %229, %229 : vector<8x256xf32>
        %234 = vector.broadcast %209 : f32 to vector<8x256xf32>
        %235 = arith.mulf %234, %233 : vector<8x256xf32>
        %236 = arith.addf %232, %235 : vector<8x256xf32>
        %237 = arith.mulf %227, %229 : vector<8x256xf32>
        %238 = vector.broadcast %207 : f32 to vector<8x256xf32>
        %239 = arith.mulf %238, %237 : vector<8x256xf32>
        %240 = arith.addf %236, %239 : vector<8x256xf32>
        %241 = math.exp %240 : vector<8x256xf32>
        %242 = vector.broadcast %211 : f32 to vector<8x256xf32>
        %243 = arith.mulf %242, %241 : vector<8x256xf32>
        %cst_54 = arith.constant 9.900000e-01 : f32
        %244 = vector.broadcast %cst_54 : f32 to vector<8x256xf32>
        %245 = arith.minimumf %244, %243 : vector<8x256xf32>
        %cst_55 = arith.constant 0.000000e+00 : f32
        %246 = vector.broadcast %cst_55 : f32 to vector<8x256xf32>
        %247 = arith.cmpf ogt, %164#0, %246 : vector<8x256xf32>
        %cst_56 = arith.constant 0.000000e+00 : f32
        %248 = vector.broadcast %cst_56 : f32 to vector<8x256xf32>
        %249 = arith.cmpf ole, %240, %248 : vector<8x256xf32>
        %250 = arith.andi %247, %249 : vector<8x256xi1>
        %cst_57 = arith.constant 0.00392156886 : f32
        %251 = vector.broadcast %cst_57 : f32 to vector<8x256xf32>
        %252 = arith.cmpf oge, %245, %251 : vector<8x256xf32>
        %253 = arith.andi %250, %252 : vector<8x256xi1>
        %cst_58 = arith.constant 1.000000e+00 : f32
        %254 = vector.broadcast %cst_58 : f32 to vector<8x256xf32>
        %255 = arith.subf %254, %245 : vector<8x256xf32>
        %256 = arith.mulf %164#0, %255 : vector<8x256xf32>
        %cst_59 = arith.constant 9.99999974E-5 : f32
        %257 = vector.broadcast %cst_59 : f32 to vector<8x256xf32>
        %258 = arith.cmpf oge, %256, %257 : vector<8x256xf32>
        %259 = arith.andi %253, %258 : vector<8x256xi1>
        %cst_60 = arith.constant 9.99999974E-5 : f32
        %260 = vector.broadcast %cst_60 : f32 to vector<8x256xf32>
        %261 = arith.cmpf olt, %256, %260 : vector<8x256xf32>
        %262 = arith.andi %253, %261 : vector<8x256xi1>
        %263 = arith.mulf %245, %164#0 : vector<8x256xf32>
        %cst_61 = arith.constant 0.000000e+00 : f32
        %264 = vector.broadcast %cst_61 : f32 to vector<8x256xf32>
        %265 = arith.select %259, %263, %264 : vector<8x256xi1>, vector<8x256xf32>
        %cst_62 = arith.constant 0.000000e+00 : f32
        %266 = vector.broadcast %cst_62 : f32 to vector<8x256xf32>
        %267 = arith.subf %266, %164#0 : vector<8x256xf32>
        %268 = arith.select %262, %267, %164#0 : vector<8x256xi1>, vector<8x256xf32>
        %269 = arith.select %259, %256, %268 : vector<8x256xi1>, vector<8x256xf32>
        %270 = vector.broadcast %213 : f32 to vector<8x256xf32>
        %271 = arith.mulf %270, %265 : vector<8x256xf32>
        %272 = arith.addf %164#1, %271 : vector<8x256xf32>
        %273 = vector.broadcast %215 : f32 to vector<8x256xf32>
        %274 = arith.mulf %273, %265 : vector<8x256xf32>
        %275 = arith.addf %164#2, %274 : vector<8x256xf32>
        %276 = vector.broadcast %217 : f32 to vector<8x256xf32>
        %277 = arith.mulf %276, %265 : vector<8x256xf32>
        %278 = arith.addf %164#3, %277 : vector<8x256xf32>
        %279 = vector.broadcast %219 : f32 to vector<8x256xf32>
        %280 = arith.mulf %279, %265 : vector<8x256xf32>
        %281 = arith.addf %164#4, %280 : vector<8x256xf32>
        %282 = vector.broadcast %221 : f32 to vector<8x256xf32>
        %283 = arith.mulf %282, %265 : vector<8x256xf32>
        %284 = arith.addf %164#5, %283 : vector<8x256xf32>
        %285 = vector.broadcast %223 : f32 to vector<8x256xf32>
        %286 = arith.mulf %285, %265 : vector<8x256xf32>
        %287 = arith.addf %164#6, %286 : vector<8x256xf32>
        %288 = vector.broadcast %225 : f32 to vector<8x256xf32>
        %289 = arith.mulf %288, %265 : vector<8x256xf32>
        %290 = arith.addf %164#7, %289 : vector<8x256xf32>
        scf.yield %269, %272, %275, %278, %281, %284, %287, %290 : vector<8x256xf32>, vector<8x256xf32>, vector<8x256xf32>, vector<8x256xf32>, vector<8x256xf32>, vector<8x256xf32>, vector<8x256xf32>, vector<8x256xf32>
      } else {
        scf.yield %164#0, %164#1, %164#2, %164#3, %164#4, %164#5, %164#6, %164#7 : vector<8x256xf32>, vector<8x256xf32>, vector<8x256xf32>, vector<8x256xf32>, vector<8x256xf32>, vector<8x256xf32>, vector<8x256xf32>, vector<8x256xf32>
      }
      %c7_i32 = arith.constant 7 : i32
      %183 = arith.addi %arg10, %c7_i32 : i32
      %184 = arith.index_cast %arg0 : i32 to index
      %185 = arith.index_cast %183 : i32 to index
      %186 = memref.load %arg3[%184, %185] : memref<4x64xi32, #tpu.memory_space<smem>>
      %c0_48 = arith.constant 0 : index
      %187 = arith.index_cast %186 : i32 to index
      %188 = memref.load %arg4[%c0_48, %187] : memref<14x64xf32, #tpu.memory_space<smem>>
      %c13_49 = arith.constant 13 : index
      %189 = arith.index_cast %186 : i32 to index
      %190 = memref.load %arg4[%c13_49, %189] : memref<14x64xf32, #tpu.memory_space<smem>>
      %191 = arith.cmpi slt, %183, %14 : i32
      %192 = arith.addf %188, %190 : f32
      %193 = arith.cmpf oge, %192, %3 : f32
      %194 = arith.andi %191, %193 : i1
      %195 = arith.subf %188, %190 : f32
      %196 = arith.cmpf ole, %195, %4 : f32
      %197 = arith.andi %194, %196 : i1
      %198 = arith.extui %197 : i1 to i32
      %c0_i32_50 = arith.constant 0 : i32
      %199 = arith.cmpi ne, %198, %c0_i32_50 : i32
      %200:8 = scf.if %199 -> (vector<8x256xf32>, vector<8x256xf32>, vector<8x256xf32>, vector<8x256xf32>, vector<8x256xf32>, vector<8x256xf32>, vector<8x256xf32>, vector<8x256xf32>) {
        %c1_52 = arith.constant 1 : index
        %202 = arith.index_cast %186 : i32 to index
        %203 = memref.load %arg4[%c1_52, %202] : memref<14x64xf32, #tpu.memory_space<smem>>
        %c2_53 = arith.constant 2 : index
        %204 = arith.index_cast %186 : i32 to index
        %205 = memref.load %arg4[%c2_53, %204] : memref<14x64xf32, #tpu.memory_space<smem>>
        %c3 = arith.constant 3 : index
        %206 = arith.index_cast %186 : i32 to index
        %207 = memref.load %arg4[%c3, %206] : memref<14x64xf32, #tpu.memory_space<smem>>
        %c4 = arith.constant 4 : index
        %208 = arith.index_cast %186 : i32 to index
        %209 = memref.load %arg4[%c4, %208] : memref<14x64xf32, #tpu.memory_space<smem>>
        %c5 = arith.constant 5 : index
        %210 = arith.index_cast %186 : i32 to index
        %211 = memref.load %arg4[%c5, %210] : memref<14x64xf32, #tpu.memory_space<smem>>
        %c6 = arith.constant 6 : index
        %212 = arith.index_cast %186 : i32 to index
        %213 = memref.load %arg4[%c6, %212] : memref<14x64xf32, #tpu.memory_space<smem>>
        %c7 = arith.constant 7 : index
        %214 = arith.index_cast %186 : i32 to index
        %215 = memref.load %arg4[%c7, %214] : memref<14x64xf32, #tpu.memory_space<smem>>
        %c8 = arith.constant 8 : index
        %216 = arith.index_cast %186 : i32 to index
        %217 = memref.load %arg4[%c8, %216] : memref<14x64xf32, #tpu.memory_space<smem>>
        %c9 = arith.constant 9 : index
        %218 = arith.index_cast %186 : i32 to index
        %219 = memref.load %arg4[%c9, %218] : memref<14x64xf32, #tpu.memory_space<smem>>
        %c10 = arith.constant 10 : index
        %220 = arith.index_cast %186 : i32 to index
        %221 = memref.load %arg4[%c10, %220] : memref<14x64xf32, #tpu.memory_space<smem>>
        %c11 = arith.constant 11 : index
        %222 = arith.index_cast %186 : i32 to index
        %223 = memref.load %arg4[%c11, %222] : memref<14x64xf32, #tpu.memory_space<smem>>
        %c12 = arith.constant 12 : index
        %224 = arith.index_cast %186 : i32 to index
        %225 = memref.load %arg4[%c12, %224] : memref<14x64xf32, #tpu.memory_space<smem>>
        %226 = vector.broadcast %188 : f32 to vector<8x256xf32>
        %227 = arith.subf %226, %12 : vector<8x256xf32>
        %228 = vector.broadcast %203 : f32 to vector<8x256xf32>
        %229 = arith.subf %228, %8 : vector<8x256xf32>
        %230 = arith.mulf %227, %227 : vector<8x256xf32>
        %231 = vector.broadcast %205 : f32 to vector<8x256xf32>
        %232 = arith.mulf %231, %230 : vector<8x256xf32>
        %233 = arith.mulf %229, %229 : vector<8x256xf32>
        %234 = vector.broadcast %209 : f32 to vector<8x256xf32>
        %235 = arith.mulf %234, %233 : vector<8x256xf32>
        %236 = arith.addf %232, %235 : vector<8x256xf32>
        %237 = arith.mulf %227, %229 : vector<8x256xf32>
        %238 = vector.broadcast %207 : f32 to vector<8x256xf32>
        %239 = arith.mulf %238, %237 : vector<8x256xf32>
        %240 = arith.addf %236, %239 : vector<8x256xf32>
        %241 = math.exp %240 : vector<8x256xf32>
        %242 = vector.broadcast %211 : f32 to vector<8x256xf32>
        %243 = arith.mulf %242, %241 : vector<8x256xf32>
        %cst_54 = arith.constant 9.900000e-01 : f32
        %244 = vector.broadcast %cst_54 : f32 to vector<8x256xf32>
        %245 = arith.minimumf %244, %243 : vector<8x256xf32>
        %cst_55 = arith.constant 0.000000e+00 : f32
        %246 = vector.broadcast %cst_55 : f32 to vector<8x256xf32>
        %247 = arith.cmpf ogt, %182#0, %246 : vector<8x256xf32>
        %cst_56 = arith.constant 0.000000e+00 : f32
        %248 = vector.broadcast %cst_56 : f32 to vector<8x256xf32>
        %249 = arith.cmpf ole, %240, %248 : vector<8x256xf32>
        %250 = arith.andi %247, %249 : vector<8x256xi1>
        %cst_57 = arith.constant 0.00392156886 : f32
        %251 = vector.broadcast %cst_57 : f32 to vector<8x256xf32>
        %252 = arith.cmpf oge, %245, %251 : vector<8x256xf32>
        %253 = arith.andi %250, %252 : vector<8x256xi1>
        %cst_58 = arith.constant 1.000000e+00 : f32
        %254 = vector.broadcast %cst_58 : f32 to vector<8x256xf32>
        %255 = arith.subf %254, %245 : vector<8x256xf32>
        %256 = arith.mulf %182#0, %255 : vector<8x256xf32>
        %cst_59 = arith.constant 9.99999974E-5 : f32
        %257 = vector.broadcast %cst_59 : f32 to vector<8x256xf32>
        %258 = arith.cmpf oge, %256, %257 : vector<8x256xf32>
        %259 = arith.andi %253, %258 : vector<8x256xi1>
        %cst_60 = arith.constant 9.99999974E-5 : f32
        %260 = vector.broadcast %cst_60 : f32 to vector<8x256xf32>
        %261 = arith.cmpf olt, %256, %260 : vector<8x256xf32>
        %262 = arith.andi %253, %261 : vector<8x256xi1>
        %263 = arith.mulf %245, %182#0 : vector<8x256xf32>
        %cst_61 = arith.constant 0.000000e+00 : f32
        %264 = vector.broadcast %cst_61 : f32 to vector<8x256xf32>
        %265 = arith.select %259, %263, %264 : vector<8x256xi1>, vector<8x256xf32>
        %cst_62 = arith.constant 0.000000e+00 : f32
        %266 = vector.broadcast %cst_62 : f32 to vector<8x256xf32>
        %267 = arith.subf %266, %182#0 : vector<8x256xf32>
        %268 = arith.select %262, %267, %182#0 : vector<8x256xi1>, vector<8x256xf32>
        %269 = arith.select %259, %256, %268 : vector<8x256xi1>, vector<8x256xf32>
        %270 = vector.broadcast %213 : f32 to vector<8x256xf32>
        %271 = arith.mulf %270, %265 : vector<8x256xf32>
        %272 = arith.addf %182#1, %271 : vector<8x256xf32>
        %273 = vector.broadcast %215 : f32 to vector<8x256xf32>
        %274 = arith.mulf %273, %265 : vector<8x256xf32>
        %275 = arith.addf %182#2, %274 : vector<8x256xf32>
        %276 = vector.broadcast %217 : f32 to vector<8x256xf32>
        %277 = arith.mulf %276, %265 : vector<8x256xf32>
        %278 = arith.addf %182#3, %277 : vector<8x256xf32>
        %279 = vector.broadcast %219 : f32 to vector<8x256xf32>
        %280 = arith.mulf %279, %265 : vector<8x256xf32>
        %281 = arith.addf %182#4, %280 : vector<8x256xf32>
        %282 = vector.broadcast %221 : f32 to vector<8x256xf32>
        %283 = arith.mulf %282, %265 : vector<8x256xf32>
        %284 = arith.addf %182#5, %283 : vector<8x256xf32>
        %285 = vector.broadcast %223 : f32 to vector<8x256xf32>
        %286 = arith.mulf %285, %265 : vector<8x256xf32>
        %287 = arith.addf %182#6, %286 : vector<8x256xf32>
        %288 = vector.broadcast %225 : f32 to vector<8x256xf32>
        %289 = arith.mulf %288, %265 : vector<8x256xf32>
        %290 = arith.addf %182#7, %289 : vector<8x256xf32>
        scf.yield %269, %272, %275, %278, %281, %284, %287, %290 : vector<8x256xf32>, vector<8x256xf32>, vector<8x256xf32>, vector<8x256xf32>, vector<8x256xf32>, vector<8x256xf32>, vector<8x256xf32>, vector<8x256xf32>
      } else {
        scf.yield %182#0, %182#1, %182#2, %182#3, %182#4, %182#5, %182#6, %182#7 : vector<8x256xf32>, vector<8x256xf32>, vector<8x256xf32>, vector<8x256xf32>, vector<8x256xf32>, vector<8x256xf32>, vector<8x256xf32>, vector<8x256xf32>
      }
      %c8_i32_51 = arith.constant 8 : i32
      %201 = arith.addi %arg10, %c8_i32_51 : i32
      scf.yield %201, %200#0, %200#1, %200#2, %200#3, %200#4, %200#5, %200#6, %200#7 : i32, vector<8x256xf32>, vector<8x256xf32>, vector<8x256xf32>, vector<8x256xf32>, vector<8x256xf32>, vector<8x256xf32>, vector<8x256xf32>, vector<8x256xf32>
    }
    %18 = math.absf %17#1 : vector<8x256xf32>
    %c0 = arith.constant 0 : index
    %19 = memref.load %arg5[%c0] : memref<3xf32, #tpu.memory_space<smem>>
    %20 = vector.broadcast %19 : f32 to vector<8x256xf32>
    %21 = arith.mulf %18, %20 : vector<8x256xf32>
    %22 = arith.addf %17#2, %21 : vector<8x256xf32>
    %c0_2 = arith.constant 0 : index
    %c0_3 = arith.constant 0 : index
    %c0_4 = arith.constant 0 : index
    %23 = vector.load %arg6[%c0_2, %c0_3, %c0_4] : memref<3x8x256xf32, #tpu.memory_space<vmem>>, vector<1x8x256xf32>
    %24 = vector.shape_cast %23 : vector<1x8x256xf32> to vector<8x256xf32>
    %25 = vector.shape_cast %22 : vector<8x256xf32> to vector<1x8x256xf32>
    tpu.vector_store %arg6[%c0_2, %c0_3, %c0_4], %25 {strides = array<i32>} : memref<3x8x256xf32, #tpu.memory_space<vmem>>, vector<1x8x256xf32>,
    %c1 = arith.constant 1 : index
    %26 = memref.load %arg5[%c1] : memref<3xf32, #tpu.memory_space<smem>>
    %27 = vector.broadcast %26 : f32 to vector<8x256xf32>
    %28 = arith.mulf %18, %27 : vector<8x256xf32>
    %29 = arith.addf %17#3, %28 : vector<8x256xf32>
    %c1_5 = arith.constant 1 : index
    %c0_6 = arith.constant 0 : index
    %c0_7 = arith.constant 0 : index
    %30 = vector.load %arg6[%c1_5, %c0_6, %c0_7] : memref<3x8x256xf32, #tpu.memory_space<vmem>>, vector<1x8x256xf32>
    %31 = vector.shape_cast %30 : vector<1x8x256xf32> to vector<8x256xf32>
    %32 = vector.shape_cast %29 : vector<8x256xf32> to vector<1x8x256xf32>
    tpu.vector_store %arg6[%c1_5, %c0_6, %c0_7], %32 {strides = array<i32>} : memref<3x8x256xf32, #tpu.memory_space<vmem>>, vector<1x8x256xf32>,
    %c2 = arith.constant 2 : index
    %33 = memref.load %arg5[%c2] : memref<3xf32, #tpu.memory_space<smem>>
    %34 = vector.broadcast %33 : f32 to vector<8x256xf32>
    %35 = arith.mulf %18, %34 : vector<8x256xf32>
    %36 = arith.addf %17#4, %35 : vector<8x256xf32>
    %c2_8 = arith.constant 2 : index
    %c0_9 = arith.constant 0 : index
    %c0_10 = arith.constant 0 : index
    %37 = vector.load %arg6[%c2_8, %c0_9, %c0_10] : memref<3x8x256xf32, #tpu.memory_space<vmem>>, vector<1x8x256xf32>
    %38 = vector.shape_cast %37 : vector<1x8x256xf32> to vector<8x256xf32>
    %39 = vector.shape_cast %36 : vector<8x256xf32> to vector<1x8x256xf32>
    tpu.vector_store %arg6[%c2_8, %c0_9, %c0_10], %39 {strides = array<i32>} : memref<3x8x256xf32, #tpu.memory_space<vmem>>, vector<1x8x256xf32>,
    %c0_11 = arith.constant 0 : index
    %c0_12 = arith.constant 0 : index
    %c0_13 = arith.constant 0 : index
    %40 = vector.load %arg7[%c0_11, %c0_12, %c0_13] : memref<1x8x256xf32, #tpu.memory_space<vmem>>, vector<1x8x256xf32>
    %41 = vector.shape_cast %40 : vector<1x8x256xf32> to vector<8x256xf32>
    %42 = vector.shape_cast %17#5 : vector<8x256xf32> to vector<1x8x256xf32>
    tpu.vector_store %arg7[%c0_11, %c0_12, %c0_13], %42 {strides = array<i32>} : memref<1x8x256xf32, #tpu.memory_space<vmem>>, vector<1x8x256xf32>,
    %c0_14 = arith.constant 0 : index
    %c0_15 = arith.constant 0 : index
    %c0_16 = arith.constant 0 : index
    %43 = vector.load %arg8[%c0_14, %c0_15, %c0_16] : memref<3x8x256xf32, #tpu.memory_space<vmem>>, vector<1x8x256xf32>
    %44 = vector.shape_cast %43 : vector<1x8x256xf32> to vector<8x256xf32>
    %45 = vector.shape_cast %17#6 : vector<8x256xf32> to vector<1x8x256xf32>
    tpu.vector_store %arg8[%c0_14, %c0_15, %c0_16], %45 {strides = array<i32>} : memref<3x8x256xf32, #tpu.memory_space<vmem>>, vector<1x8x256xf32>,
    %c1_17 = arith.constant 1 : index
    %c0_18 = arith.constant 0 : index
    %c0_19 = arith.constant 0 : index
    %46 = vector.load %arg8[%c1_17, %c0_18, %c0_19] : memref<3x8x256xf32, #tpu.memory_space<vmem>>, vector<1x8x256xf32>
    %47 = vector.shape_cast %46 : vector<1x8x256xf32> to vector<8x256xf32>
    %48 = vector.shape_cast %17#7 : vector<8x256xf32> to vector<1x8x256xf32>
    tpu.vector_store %arg8[%c1_17, %c0_18, %c0_19], %48 {strides = array<i32>} : memref<3x8x256xf32, #tpu.memory_space<vmem>>, vector<1x8x256xf32>,
    %c2_20 = arith.constant 2 : index
    %c0_21 = arith.constant 0 : index
    %c0_22 = arith.constant 0 : index
    %49 = vector.load %arg8[%c2_20, %c0_21, %c0_22] : memref<3x8x256xf32, #tpu.memory_space<vmem>>, vector<1x8x256xf32>
    %50 = vector.shape_cast %49 : vector<1x8x256xf32> to vector<8x256xf32>
    %51 = vector.shape_cast %17#8 : vector<8x256xf32> to vector<1x8x256xf32>
    tpu.vector_store %arg8[%c2_20, %c0_21, %c0_22], %51 {strides = array<i32>} : memref<3x8x256xf32, #tpu.memory_space<vmem>>, vector<1x8x256xf32>,
    %cst_23 = arith.constant 1.000000e+00 : f32
    %52 = vector.broadcast %cst_23 : f32 to vector<8x256xf32>
    %53 = arith.subf %52, %18 : vector<8x256xf32>
    %c0_24 = arith.constant 0 : index
    %c0_25 = arith.constant 0 : index
    %c0_26 = arith.constant 0 : index
    %54 = vector.load %arg9[%c0_24, %c0_25, %c0_26] : memref<1x8x256xf32, #tpu.memory_space<vmem>>, vector<1x8x256xf32>
    %55 = vector.shape_cast %54 : vector<1x8x256xf32> to vector<8x256xf32>
    %56 = vector.shape_cast %53 : vector<8x256xf32> to vector<1x8x256xf32>
    tpu.vector_store %arg9[%c0_24, %c0_25, %c0_26], %56 {strides = array<i32>} : memref<1x8x256xf32, #tpu.memory_space<vmem>>, vector<1x8x256xf32>,
    return
  }
  func.func @transform_0(%arg0: i32, %arg1: i32, %arg2: memref<4xi32, #tpu.memory_space<smem>>, %arg3: memref<4x64xi32, #tpu.memory_space<smem>>) -> (i32, i32) {
    %c0_i32 = arith.constant 0 : i32
    %c0_i32_0 = arith.constant 0 : i32
    %c0_i32_1 = arith.constant 0 : i32
    return %c0_i32, %c0_i32_0 : i32, i32
  }
  func.func @transform_1(%arg0: i32, %arg1: i32, %arg2: memref<4xi32, #tpu.memory_space<smem>>, %arg3: memref<4x64xi32, #tpu.memory_space<smem>>) -> i32 {
    %c0_i32 = arith.constant 0 : i32
    %c0_i32_0 = arith.constant 0 : i32
    return %c0_i32 : i32
  }
  func.func @transform_2(%arg0: i32, %arg1: i32, %arg2: memref<4xi32, #tpu.memory_space<smem>>, %arg3: memref<4x64xi32, #tpu.memory_space<smem>>) -> (i32, i32, i32) {
    %c0_i32 = arith.constant 0 : i32
    %c0_i32_0 = arith.constant 0 : i32
    return %c0_i32, %arg0, %arg1 : i32, i32, i32
  }
  func.func @transform_3(%arg0: i32, %arg1: i32, %arg2: memref<4xi32, #tpu.memory_space<smem>>, %arg3: memref<4x64xi32, #tpu.memory_space<smem>>) -> (i32, i32, i32) {
    %c0_i32 = arith.constant 0 : i32
    %c0_i32_0 = arith.constant 0 : i32
    return %c0_i32, %arg0, %arg1 : i32, i32, i32
  }
  func.func @transform_4(%arg0: i32, %arg1: i32, %arg2: memref<4xi32, #tpu.memory_space<smem>>, %arg3: memref<4x64xi32, #tpu.memory_space<smem>>) -> (i32, i32, i32) {
    %c0_i32 = arith.constant 0 : i32
    %c0_i32_0 = arith.constant 0 : i32
    return %c0_i32, %arg0, %arg1 : i32, i32, i32
  }
  func.func @transform_5(%arg0: i32, %arg1: i32, %arg2: memref<4xi32, #tpu.memory_space<smem>>, %arg3: memref<4x64xi32, #tpu.memory_space<smem>>) -> (i32, i32, i32) {
    %c0_i32 = arith.constant 0 : i32
    %c0_i32_0 = arith.constant 0 : i32
    return %c0_i32, %arg0, %arg1 : i32, i32, i32
  }
}

</mosaic_0001>

<llo_original>
// kernel: tpu_custom_call.1
$region0: #{tpu_custom_call.1}
  #allocation0 [shape = 'u32[]', space=smem, size = 0x4, offset = 0x4, fixed_abs, tag = 'smem constant byte address 0x4 - core index']
  #allocation1 [shape = 'u32[72,128]{1,0:T(1,128)}', space=vmem, size = 0x9000, scoped, tag = 'internal scratch']
  #allocation2 [shape = 's32[1]{0}', space=sflag, size = 0x4, scoped, tag = 'scoped memory for tpu_custom_call.1']
  #allocation3 [shape = 'u8[512]{0}', space=smem, size = 0x200, scoped, tag = 'prefetched SMEM operand 0']
  #allocation4 [shape = 'u8[2048]{0}', space=smem, size = 0x800, scoped, tag = 'prefetched SMEM operand 1']
  %s0 = inlined_call_operand.hbm [shape: s32[4], index: 0, kind: input, shape index: {}]
  %s1 = inlined_call_operand.hbm [shape: s32[4,64], index: 1, kind: input, shape index: {}]
  %s2 = inlined_call_operand.hbm [shape: f32[14,64], index: 2, kind: input, shape index: {}]
  %s3 = inlined_call_operand.vmem [shape: f32[3], index: 3, kind: input, shape index: {}]
  %s4 = inlined_call_operand.hbm [shape: f32[3,32,256], index: 4, kind: output, shape index: {0}]
  %s5 = inlined_call_operand.hbm [shape: f32[1,32,256], index: 5, kind: output, shape index: {1}]
  %s6 = inlined_call_operand.hbm [shape: f32[3,32,256], index: 6, kind: output, shape index: {2}]
  %s7 = inlined_call_operand.hbm [shape: f32[1,32,256], index: 7, kind: output, shape index: {3}]
  %8 = xla_tuple %s4, %s5, %s6, %s7
  %s9 = sld [smem:[#allocation0]]
  $region144: #{tpu_custom_call.1} parent=0
    _
  %s11 = ssub.s32 1, %s9
  %s12 = scalar_select 0, %s11, %s9
  %s14 = sshll.u32 %s0, 4
  %s15 = int_to_ptr.hbm [resolvable:$true] %s14
  %17 = dma.hbm_to_smem %s15, 16, [#allocation3], [#allocation2]
  %s19 = sshll.u32 %s1, 4
  %s20 = int_to_ptr.hbm [resolvable:$true] %s19
  %22 = dma.hbm_to_smem %s20, 64, [#allocation4], [#allocation2]
  %24 = dma.done [#allocation2], 80
  %25 = sfence
  $region1: #{tpu_custom_call.1} parent=0
    #allocation5 [shape = 'u8[8192]{0}', space=smem, size = 0x2000, scoped, tag = 'input window, operand 2, single buffered']
    #allocation6 [shape = 's32[2]{0}', space=sflag, size = 0x8, scoped, tag = 'scoped memory for tpu_custom_call.1']
    #allocation7 [shape = 's32[2]{0}', space=sflag, size = 0x8, scoped, tag = 'scoped memory for tpu_custom_call.1']
    #allocation8 [shape = 's32[2]{0}', space=sflag, size = 0x8, scoped, tag = 'scoped memory for tpu_custom_call.1']
    #allocation9 [shape = 'u8[512]{0}', space=smem, size = 0x200, scoped, tag = 'input window, operand 3, single buffered']
    #allocation10 [shape = 'u8[49152]{0}', space=vmem, size = 0xc000, scoped, tag = 'output window, operand 0']
    #allocation11 [shape = 'u8[16384]{0}', space=vmem, size = 0x4000, scoped, tag = 'output window, operand 1']
    #allocation12 [shape = 's32[2]{0}', space=sflag, size = 0x8, scoped, tag = 'scoped memory for tpu_custom_call.1']
    #allocation13 [shape = 'u8[49152]{0}', space=vmem, size = 0xc000, scoped, tag = 'output window, operand 2']
    #allocation14 [shape = 'u8[16384]{0}', space=vmem, size = 0x4000, scoped, tag = 'output window, operand 3']
    #allocation15 [shape = 's32[2]{0}', space=sflag, size = 0x8, scoped, tag = 'scoped memory for tpu_custom_call.1']
    %26 = vsyncpa [#allocation7], 0
    %27 = vsyncpa [#allocation8], 0
    %28 = vsyncpa [#allocation6], 0
    %s29 = scalar_lea.sflag [#allocation6], 1
    %30 = vsyncpa %s29, 0
    %31 = vsyncpa [#allocation12], 0
    %s32 = scalar_lea.sflag [#allocation12], 1
    %33 = vsyncpa %s32, 0
    %34 = vsyncpa [#allocation15], 0
    %s35 = scalar_lea.sflag [#allocation15], 1
    %36 = vsyncpa %s35, 0
    loop: start=0, step=1, limit=6
    $region2: #{tpu_custom_call.1} parent=1 // loop_pre_header
      _
    $region3: #{tpu_custom_call.1} parent=1 // loop_header
      %s38 = sphi 0, %s42
      %p39 = scmp.ge.s32.totalorder %s38, 6
      %s45 = sphi 0, %s57
      %s46 = sphi 0, %s53
      %s47 = sphi 0, %s45
      %s48 = sphi 0, %s46
      %s49 = sphi 0, %s47
      %s50 = sphi 0, %s48
      %s58 = sphi 0, %s58
      %s60 = sphi 0, %s58
      %s61 = sphi 0, %s60
      %s75 = sphi 0, %s61
      %s79 = sphi 0, %s79
      %s81 = sphi 0, %s79
      %s82 = sphi 0, %s81
      %s96 = sphi 0, %s82
      %s104 = sphi 0, %s106
      %s107 = sphi 0, %s104
      %s108 = sphi 0, %s107
      %s124 = sphi 0, %s108
      %s132 = sphi 0, %s134
      %s135 = sphi 0, %s132
      %s136 = sphi 0, %s135
      %s152 = sphi 0, %s136
      %s160 = sphi 0, %s162
      %s163 = sphi 0, %s160
      %s164 = sphi 0, %s163
      %s180 = sphi 0, %s164
      %s188 = sphi 0, %s190
      %s191 = sphi 0, %s188
      %s192 = sphi 0, %s191
      %s208 = sphi 0, %s192
    $region4: #{tpu_custom_call.1} parent=1 // loop_header_branch
      %41 = sbr.rel (%p39) target = $region8
    $region5: #{tpu_custom_call.1} parent=1 // loop_body
      %s43 = ssub.s32 %s38, 1
      %s44 = ssub.s32 %s38, 2
      %s51 = sadd.s32 1, %s46
      %p52 = scmp.ge.s32.totalorder %s51, 1
      %s53 = scalar_select %p52, 0, %s51
      %s54 = sadd.s32 1, %s45
      %s55 = scalar_select %p52, %s54, %s45
      %p56 = scmp.ge.s32.totalorder %s55, 4
      %s57 = scalar_select %p56, 0, %s55
      %s59 = sadd.s32 %s58, 1
      %p62 = scmp.eq.s32.totalorder %s38, 3
      %p63 = scmp.ne.s32.totalorder %s58, %s60
      %p64 = scmp.eq.s32.totalorder %s38, 0
      %p65 = por %p63, %p64
      %p66 = scmp.ne.s32.totalorder %s58, %s60
      %p67 = scmp.eq.s32.totalorder %s43, 3
      %p68 = por %p66, %p67
      %p69 = scmp.ne.s32.totalorder %s60, %s61
      %p70 = scmp.eq.s32.totalorder %s43, 0
      %p71 = por %p69, %p70
      %p72 = scmp.ne.s32.totalorder %s60, %s61
      %p73 = scmp.eq.s32.totalorder %s44, 3
      %p74 = por %p72, %p73
      %p76 = scmp.ne.s32.totalorder %s61, %s75
      %p77 = scmp.eq.s32.totalorder %s44, 0
      %p78 = por %p76, %p77
      %s80 = sadd.s32 %s79, 1
      %p83 = scmp.eq.s32.totalorder %s38, 3
      %p84 = scmp.ne.s32.totalorder %s79, %s81
      %p85 = scmp.eq.s32.totalorder %s38, 0
      %p86 = por %p84, %p85
      %p87 = scmp.ne.s32.totalorder %s79, %s81
      %p88 = scmp.eq.s32.totalorder %s43, 3
      %p89 = por %p87, %p88
      %p90 = scmp.ne.s32.totalorder %s81, %s82
      %p91 = scmp.eq.s32.totalorder %s43, 0
      %p92 = por %p90, %p91
      %p93 = scmp.ne.s32.totalorder %s81, %s82
      %p94 = scmp.eq.s32.totalorder %s44, 3
      %p95 = por %p93, %p94
      %p97 = scmp.ne.s32.totalorder %s82, %s96
      %p98 = scmp.eq.s32.totalorder %s44, 0
      %p99 = por %p97, %p98
      %s100 = ssub.s32 %s45, %s57
      %s101 = ssub.s32 %s46, %s53
      %s102 = sor.u32 %s100, %s101
      %p103 = scmp.eq.s32.totalorder %s102, 0
      %s105 = sadd.s32 %s104, 1
      %s106 = scalar_select %p103, %s104, %s105
      %p109 = pneg %p103
      %p110 = scmp.eq.s32.totalorder %s38, 3
      %p111 = por %p109, %p110
      %p112 = scmp.ne.s32.totalorder %s104, %s107
      %p113 = scmp.eq.s32.totalorder %s38, 0
      %p114 = por %p112, %p113
      %p115 = scmp.ne.s32.totalorder %s104, %s107
      %p116 = scmp.eq.s32.totalorder %s43, 3
      %p117 = por %p115, %p116
      %p118 = scmp.ne.s32.totalorder %s107, %s108
      %p119 = scmp.eq.s32.totalorder %s43, 0
      %p120 = por %p118, %p119
      %p121 = scmp.ne.s32.totalorder %s107, %s108
      %p122 = scmp.eq.s32.totalorder %s44, 3
      %p123 = por %p121, %p122
      %p125 = scmp.ne.s32.totalorder %s108, %s124
      %p126 = scmp.eq.s32.totalorder %s44, 0
      %p127 = por %p125, %p126
      %s128 = ssub.s32 %s45, %s57
      %s129 = ssub.s32 %s46, %s53
      %s130 = sor.u32 %s128, %s129
      %p131 = scmp.eq.s32.totalorder %s130, 0
      %s133 = sadd.s32 %s132, 1
      %s134 = scalar_select %p131, %s132, %s133
      %p137 = pneg %p131
      %p138 = scmp.eq.s32.totalorder %s38, 3
      %p139 = por %p137, %p138
      %p140 = scmp.ne.s32.totalorder %s132, %s135
      %p141 = scmp.eq.s32.totalorder %s38, 0
      %p142 = por %p140, %p141
      %p143 = scmp.ne.s32.totalorder %s132, %s135
      %p144 = scmp.eq.s32.totalorder %s43, 3
      %p145 = por %p143, %p144
      %p146 = scmp.ne.s32.totalorder %s135, %s136
      %p147 = scmp.eq.s32.totalorder %s43, 0
      %p148 = por %p146, %p147
      %p149 = scmp.ne.s32.totalorder %s135, %s136
      %p150 = scmp.eq.s32.totalorder %s44, 3
      %p151 = por %p149, %p150
      %p153 = scmp.ne.s32.totalorder %s136, %s152
      %p154 = scmp.eq.s32.totalorder %s44, 0
      %p155 = por %p153, %p154
      %s156 = ssub.s32 %s45, %s57
      %s157 = ssub.s32 %s46, %s53
      %s158 = sor.u32 %s156, %s157
      %p159 = scmp.eq.s32.totalorder %s158, 0
      %s161 = sadd.s32 %s160, 1
      %s162 = scalar_select %p159, %s160, %s161
      %p165 = pneg %p159
      %p166 = scmp.eq.s32.totalorder %s38, 3
      %p167 = por %p165, %p166
      %p168 = scmp.ne.s32.totalorder %s160, %s163
      %p169 = scmp.eq.s32.totalorder %s38, 0
      %p170 = por %p168, %p169
      %p171 = scmp.ne.s32.totalorder %s160, %s163
      %p172 = scmp.eq.s32.totalorder %s43, 3
      %p173 = por %p171, %p172
      %p174 = scmp.ne.s32.totalorder %s163, %s164
      %p175 = scmp.eq.s32.totalorder %s43, 0
      %p176 = por %p174, %p175
      %p177 = scmp.ne.s32.totalorder %s163, %s164
      %p178 = scmp.eq.s32.totalorder %s44, 3
      %p179 = por %p177, %p178
      %p181 = scmp.ne.s32.totalorder %s164, %s180
      %p182 = scmp.eq.s32.totalorder %s44, 0
      %p183 = por %p181, %p182
      %s184 = ssub.s32 %s45, %s57
      %s185 = ssub.s32 %s46, %s53
      %s186 = sor.u32 %s184, %s185
      %p187 = scmp.eq.s32.totalorder %s186, 0
      %s189 = sadd.s32 %s188, 1
      %s190 = scalar_select %p187, %s188, %s189
      %p193 = pneg %p187
      %p194 = scmp.eq.s32.totalorder %s38, 3
      %p195 = por %p193, %p194
      %p196 = scmp.ne.s32.totalorder %s188, %s191
      %p197 = scmp.eq.s32.totalorder %s38, 0
      %p198 = por %p196, %p197
      %p199 = scmp.ne.s32.totalorder %s188, %s191
      %p200 = scmp.eq.s32.totalorder %s43, 3
      %p201 = por %p199, %p200
      %p202 = scmp.ne.s32.totalorder %s191, %s192
      %p203 = scmp.eq.s32.totalorder %s43, 0
      %p204 = por %p202, %p203
      %p205 = scmp.ne.s32.totalorder %s191, %s192
      %p206 = scmp.eq.s32.totalorder %s44, 3
      %p207 = por %p205, %p206
      %p209 = scmp.ne.s32.totalorder %s192, %s208
      %p210 = scmp.eq.s32.totalorder %s44, 0
      %p211 = por %p209, %p210
      %p212 = scmp.le.s32.totalorder 1, %s38
      %p213 = scmp.lt.s32.totalorder %s38, 5
      %p214 = pnand %p212, %p213
      %p215 = pneg %p214
      // Predicated region
      $region9: #{tpu_custom_call.1} parent=5 // pred_check
        _
      $region10: #{tpu_custom_call.1} parent=5 // pred_check_branch
        %217 = sbr.rel (%p214) target = $region12
      $region11: #{tpu_custom_call.1} parent=5 // pred_region
        %s218 = ssub.s32 %s38, 1
        // Predicated region
        $region13: #{tpu_custom_call.1} parent=11 // pred_check
          %p219 = pneg %p71
        $region14: #{tpu_custom_call.1} parent=11 // pred_check_branch
          %221 = sbr.rel (%p219) target = $region16
        $region15: #{tpu_custom_call.1} parent=11 // pred_region
          %223 = vsyncadd [#allocation7], 0
          %s224 = sshll.u32 %s2, 4
          %s225 = int_to_ptr.hbm [resolvable:$true] %s224
          %230 = dma.hbm_to_smem %s225, 256, [#allocation5], [#allocation7], 128, 128, 8
        $region16: #{tpu_custom_call.1} parent=11 // pred_fallthru
          _
        // Predicated region
        $region17: #{tpu_custom_call.1} parent=11 // pred_check
          %p231 = pneg %p92
        $region18: #{tpu_custom_call.1} parent=11 // pred_check_branch
          %233 = sbr.rel (%p231) target = $region20
        $region19: #{tpu_custom_call.1} parent=11 // pred_region
          %235 = vsyncadd [#allocation8], 0
          %s237 = sshll.u32 %s3, 4
          %s238 = int_to_ptr.vmem [resolvable:$true] %s237
          %240 = dma.vmem_to_smem %s238, 16, [#allocation9], [#allocation8]
        $region20: #{tpu_custom_call.1} parent=11 // pred_fallthru
          _
      $region12: #{tpu_custom_call.1} parent=5 // pred_fallthru
        _
      %p241 = scmp.lt.s32.totalorder %s38, 4
      // Predicated region
      $region21: #{tpu_custom_call.1} parent=5 // pred_check
        %p242 = pneg %p241
      $region22: #{tpu_custom_call.1} parent=5 // pred_check_branch
        %244 = sbr.rel (%p242) target = $region24
      $region23: #{tpu_custom_call.1} parent=5 // pred_region
        _
      $region24: #{tpu_custom_call.1} parent=5 // pred_fallthru
        _
      %p245 = scmp.le.s32.totalorder 1, %s38
      %p246 = scmp.lt.s32.totalorder %s38, 5
      %p247 = pnand %p245, %p246
      %p248 = pneg %p247
      // Predicated region
      $region25: #{tpu_custom_call.1} parent=5 // pred_check
        _
      $region26: #{tpu_custom_call.1} parent=5 // pred_check_branch
        %250 = sbr.rel (%p247) target = $region28
      $region27: #{tpu_custom_call.1} parent=5 // pred_region
        %s251 = ssub.s32 %s38, 1
        // Predicated region
        $region29: #{tpu_custom_call.1} parent=27 // pred_check
          %p252 = pneg %p71
        $region30: #{tpu_custom_call.1} parent=27 // pred_check_branch
          %254 = sbr.rel (%p252) target = $region32
        $region31: #{tpu_custom_call.1} parent=27 // pred_region
          %256 = dma.done [#allocation7], 256
        $region32: #{tpu_custom_call.1} parent=27 // pred_fallthru
          _
        // Predicated region
        $region33: #{tpu_custom_call.1} parent=27 // pred_check
          %p257 = pneg %p92
        $region34: #{tpu_custom_call.1} parent=27 // pred_check_branch
          %259 = sbr.rel (%p257) target = $region36
        $region35: #{tpu_custom_call.1} parent=27 // pred_region
          %261 = dma.done [#allocation8], 16
        $region36: #{tpu_custom_call.1} parent=27 // pred_fallthru
          _
        %262 = sfence
        %p263 = pneg %p71
        %p264 = pneg %p68
        %p265 = pneg %p92
        %p266 = pneg %p89
        %p267 = pneg %p120
        %p268 = pneg %p117
        %s269 = sand.u32 %s107, 1
        %s270 = scalar_lea.sflag [#allocation6], %s269
        %s271 = sand.u32 %s107, 1
        %s272 = smul.addr %s271, 48
        %s273 = scalar_lea.vmem [#allocation10], %s272
        %p274 = pneg %p148
        %p275 = pneg %p145
        %s276 = sand.u32 %s43, 1
        %s277 = scalar_lea.sflag [#allocation12], %s276
        %s278 = sand.u32 %s135, 1
        %s279 = smul.addr %s278, 16
        %s280 = scalar_lea.vmem [#allocation11], %s279
        %p281 = pneg %p176
        %p282 = pneg %p173
        %s283 = sand.u32 %s43, 1
        %s284 = scalar_lea.sflag [#allocation12], %s283
        %s285 = sand.u32 %s163, 1
        %s286 = smul.addr %s285, 48
        %s287 = scalar_lea.vmem [#allocation13], %s286
        %p288 = pneg %p204
        %p289 = pneg %p201
        %s290 = sand.u32 %s191, 1
        %s291 = scalar_lea.sflag [#allocation15], %s290
        %s292 = sand.u32 %s191, 1
        %s293 = smul.addr %s292, 16
        %s294 = scalar_lea.vmem [#allocation14], %s293
        %s295 = smul.u32 2, %s48
        %s296 = smul.u32 2, %s48
        %s297 = smul.u32 2, %s48
        %s298 = smul.u32 2, %s48
        %s299 = smul.u32 %s47, 8
        %s300 = scvt.s32.f32 %s299
        %s301 = smul.u32 %s48, 256
        %s302 = scvt.s32.f32 %s301
        %s303 = sadd.f32 %s302, 255.0
        %v304 = vlaneseq
        %v305 = vshrl.u32 %v304, 7
        %v306 = vcvt.s32.f32 %v305
        %v307 = vstv %s300
        %v308 = vadd.f32 %v307, %v306
        %v309 = vlaneseq
        %v310 = vand.u32 %v309, 127
        %v311 = vadd.s32 %v310, 128
        %v312 = vcvt.s32.f32 %v310
        %v313 = vcvt.s32.f32 %v311
        %v314 = vstv %s302
        %v315 = vadd.f32 %v314, %v312
        %v316 = vadd.f32 %v314, %v313
        %s317 = sld [smem:[#allocation3 + %s47]]
        // While loop
        $region37: #{tpu_custom_call.1} parent=27 // loop_pre_header
          _
        $region38: #{tpu_custom_call.1} parent=27 // loop_header
          %s319 = sphi 0, %s2031
          %v320 = vphi 1.0, %v2015
          %v321 = vphi 1.0, %v2016
          %v322 = vphi 0.0, %v2017
          %v323 = vphi 0.0, %v2018
          %v324 = vphi 0.0, %v2019
          %v325 = vphi 0.0, %v2020
          %v326 = vphi 0.0, %v2021
          %v327 = vphi 0.0, %v2022
          %v328 = vphi 0.0, %v2023
          %v329 = vphi 0.0, %v2024
          %v330 = vphi 0.0, %v2025
          %v331 = vphi 0.0, %v2026
          %v332 = vphi 0.0, %v2027
          %v333 = vphi 0.0, %v2028
          %v334 = vphi 0.0, %v2029
          %v335 = vphi 0.0, %v2030
          %p336 = scmp.lt.s32.totalorder %s319, %s317
          %v337 = vmax.f32 %v320, %v321
          %338 = vmax.xlane.f32.xlu0 %v337
          %v339 = vpop.xlane.xlu0 %338
          %v340 = vrot.slane %v339, 4
          %v341 = vmax.f32 %v339, %v340
          %v342 = vrot.slane %v341, 2
          %v343 = vmax.f32 %v341, %v342
          %v344 = vrot.slane %v343, 1
          %v345 = vmax.f32 %v343, %v344
          %s346 = vtos %v345
          %p347 = scmp.gt.f32.partialorder %s346, 0.0
          %p348 = pnand %p336, %p347
          %p349 = pneg %p348
        $region39: #{tpu_custom_call.1} parent=27 // loop_header_branch
          %351 = sbr.rel (%p348) target = $region43
        $region40: #{tpu_custom_call.1} parent=27 // loop_body
          %s352 = sshra.s32 %s319, 7
          %s353 = sand.u32 %s319, 127
          %s354 = sadd.s32 %s352, %s47
          %s355 = smul.u32 %s354, 128
          %s356 = sshra.s32 %s319, 7
          %s357 = sand.u32 %s319, 127
          %s358 = sadd.s32 %s355, %s357
          %s359 = sld [smem:[#allocation4 + %s358]]
          %s360 = sld [smem:[#allocation5 + %s359]]
          %s361 = sshra.s32 %s359, 7
          %s362 = sand.u32 %s359, 127
          %s363 = sadd.s32 %s361, 13
          %s364 = smul.u32 %s363, 128
          %s365 = sshra.s32 %s359, 7
          %s366 = sand.u32 %s359, 127
          %s367 = sadd.s32 %s364, %s366
          %s368 = sld [smem:[#allocation5 + %s367]]
          %p369 = scmp.lt.s32.totalorder %s319, %s317
          %s370 = sadd.f32 %s360, %s368
          %p371 = scmp.ge.f32.partialorder %s370, %s302
          %p372 = pnand %p369, %p371
          %p373 = pneg %p372
          %s374 = ssub.f32 %s360, %s368
          %p375 = scmp.le.f32.partialorder %s374, %s303
          %p376 = pnand %p373, %p375
          %p377 = pneg %p376
          // Predicated region
          $region44: #{tpu_custom_call.1} parent=40 // pred_check
            _
          $region45: #{tpu_custom_call.1} parent=40 // pred_check_branch
            %379 = sbr.rel (%p376) target = $region47
          $region46: #{tpu_custom_call.1} parent=40 // pred_region
            %s380 = sadd.s32 %s361, 1
            %s381 = smul.u32 %s380, 128
            %s382 = sadd.s32 %s381, %s366
            %s383 = sld [smem:[#allocation5 + %s382]]
            %s384 = sadd.s32 %s361, 2
            %s385 = smul.u32 %s384, 128
            %s386 = sadd.s32 %s385, %s366
            %s387 = sld [smem:[#allocation5 + %s386]]
            %s388 = sadd.s32 %s361, 3
            %s389 = smul.u32 %s388, 128
            %s390 = sadd.s32 %s389, %s366
            %s391 = sld [smem:[#allocation5 + %s390]]
            %s392 = sadd.s32 %s361, 4
            %s393 = smul.u32 %s392, 128
            %s394 = sadd.s32 %s393, %s366
            %s395 = sld [smem:[#allocation5 + %s394]]
            %s396 = sadd.s32 %s361, 5
            %s397 = smul.u32 %s396, 128
            %s398 = sadd.s32 %s397, %s366
            %s399 = sld [smem:[#allocation5 + %s398]]
            %s400 = sadd.s32 %s361, 6
            %s401 = smul.u32 %s400, 128
            %s402 = sadd.s32 %s401, %s366
            %s403 = sld [smem:[#allocation5 + %s402]]
            %s404 = sadd.s32 %s361, 7
            %s405 = smul.u32 %s404, 128
            %s406 = sadd.s32 %s405, %s366
            %s407 = sld [smem:[#allocation5 + %s406]]
            %s408 = sadd.s32 %s361, 8
            %s409 = smul.u32 %s408, 128
            %s410 = sadd.s32 %s409, %s366
            %s411 = sld [smem:[#allocation5 + %s410]]
            %s412 = sadd.s32 %s361, 9
            %s413 = smul.u32 %s412, 128
            %s414 = sadd.s32 %s413, %s366
            %s415 = sld [smem:[#allocation5 + %s414]]
            %s416 = sadd.s32 %s361, 10
            %s417 = smul.u32 %s416, 128
            %s418 = sadd.s32 %s417, %s366
            %s419 = sld [smem:[#allocation5 + %s418]]
            %s420 = sadd.s32 %s361, 11
            %s421 = smul.u32 %s420, 128
            %s422 = sadd.s32 %s421, %s366
            %s423 = sld [smem:[#allocation5 + %s422]]
            %s424 = sadd.s32 %s361, 12
            %s425 = smul.u32 %s424, 128
            %s426 = sadd.s32 %s425, %s366
            %s427 = sld [smem:[#allocation5 + %s426]]
            %v428 = vstv %s360
            %v429 = vsub.f32 %v428, %v315
            %v430 = vsub.f32 %v428, %v316
            %v431 = vstv %s383
            %v432 = vsub.f32 %v431, %v308
            %v433 = vmul.f32 %v429, %v429
            %v434 = vmul.f32 %v430, %v430
            %v435 = vstv %s387
            %v436 = vmul.f32 %v435, %v433
            %v437 = vmul.f32 %v435, %v434
            %v438 = vmul.f32 %v432, %v432
            %v439 = vstv %s395
            %v440 = vmul.f32 %v439, %v438
            %v441 = vadd.f32 %v436, %v440
            %v442 = vadd.f32 %v437, %v440
            %v443 = vmul.f32 %v429, %v432
            %v444 = vmul.f32 %v430, %v432
            %v445 = vstv %s391
            %v446 = vmul.f32 %v445, %v443
            %v447 = vmul.f32 %v445, %v444
            %v448 = vadd.f32 %v441, %v446
            %v449 = vadd.f32 %v442, %v447
            %v450 = vmul.f32 %v448, 1.442695
            %v451 = vpow.pop %v450
            %v452 = vmul.f32 %v449, 1.442695
            %v453 = vpow.pop %v452
            %v454 = vstv %s399
            %v455 = vmul.f32 %v454, %v451
            %v456 = vmul.f32 %v454, %v453
            %v457 = vmin.f32 %v455, 0.99
            %v458 = vmin.f32 %v456, 0.99
            %vm459 = vcmp.gt.f32.partialorder %v320, 0.0
            %vm460 = vcmp.gt.f32.partialorder %v321, 0.0
            %vm461 = vcmp.le.f32.partialorder %v448, 0.0
            %vm462 = vcmp.le.f32.partialorder %v449, 0.0
            %vm463 = vmand %vm459, %vm461
            %vm464 = vmand %vm460, %vm462
            %vm465 = vcmp.ge.f32.partialorder %v457, 0.003921569
            %vm466 = vcmp.ge.f32.partialorder %v458, 0.003921569
            %vm467 = vmand %vm463, %vm465
            %vm468 = vmand %vm464, %vm466
            %v469 = vsub.f32 1.0, %v457
            %v470 = vsub.f32 1.0, %v458
            %v471 = vmul.f32 %v320, %v469
            %v472 = vmul.f32 %v321, %v470
            %vm473 = vcmp.ge.f32.partialorder %v471, 0.0001
            %vm474 = vcmp.ge.f32.partialorder %v472, 0.0001
            %vm475 = vmand %vm467, %vm473
            %vm476 = vmand %vm468, %vm474
            %vm477 = vcmp.lt.f32.partialorder %v471, 0.0001
            %vm478 = vcmp.lt.f32.partialorder %v472, 0.0001
            %vm479 = vmand %vm467, %vm477
            %vm480 = vmand %vm468, %vm478
            %v481 = vmul.f32 %v457, %v320
            %v482 = vmul.f32 %v458, %v321
            %v483 = vsel %vm475, %v481, 0.0
            %v484 = vsel %vm476, %v482, 0.0
            %v485 = vsub.f32 0.0, %v320
            %v486 = vsub.f32 0.0, %v321
            %v487 = vsel %vm479, %v485, %v320
            %v488 = vsel %vm480, %v486, %v321
            %v489 = vsel %vm475, %v471, %v487
            %v490 = vsel %vm476, %v472, %v488
            %v491 = vstv %s403
            %v492 = vmul.f32 %v491, %v483
            %v493 = vmul.f32 %v491, %v484
            %v494 = vadd.f32 %v322, %v492
            %v495 = vadd.f32 %v323, %v493
            %v496 = vstv %s407
            %v497 = vmul.f32 %v496, %v483
            %v498 = vmul.f32 %v496, %v484
            %v499 = vadd.f32 %v324, %v497
            %v500 = vadd.f32 %v325, %v498
            %v501 = vstv %s411
            %v502 = vmul.f32 %v501, %v483
            %v503 = vmul.f32 %v501, %v484
            %v504 = vadd.f32 %v326, %v502
            %v505 = vadd.f32 %v327, %v503
            %v506 = vstv %s415
            %v507 = vmul.f32 %v506, %v483
            %v508 = vmul.f32 %v506, %v484
            %v509 = vadd.f32 %v328, %v507
            %v510 = vadd.f32 %v329, %v508
            %v511 = vstv %s419
            %v512 = vmul.f32 %v511, %v483
            %v513 = vmul.f32 %v511, %v484
            %v514 = vadd.f32 %v330, %v512
            %v515 = vadd.f32 %v331, %v513
            %v516 = vstv %s423
            %v517 = vmul.f32 %v516, %v483
            %v518 = vmul.f32 %v516, %v484
            %v519 = vadd.f32 %v332, %v517
            %v520 = vadd.f32 %v333, %v518
            %v521 = vstv %s427
            %v522 = vmul.f32 %v521, %v483
            %v523 = vmul.f32 %v521, %v484
            %v524 = vadd.f32 %v334, %v522
            %v525 = vadd.f32 %v335, %v523
          $region47: #{tpu_custom_call.1} parent=40 // pred_fallthru
            %v526 = vphi 0, %v489
            %v527 = vphi 0, %v490
            %v528 = vphi 0, %v494
            %v529 = vphi 0, %v495
            %v530 = vphi 0, %v499
            %v531 = vphi 0, %v500
            %v532 = vphi 0, %v504
            %v533 = vphi 0, %v505
            %v534 = vphi 0, %v509
            %v535 = vphi 0, %v510
            %v536 = vphi 0, %v514
            %v537 = vphi 0, %v515
            %v538 = vphi 0, %v519
            %v539 = vphi 0, %v520
            %v540 = vphi 0, %v524
            %v541 = vphi 0, %v525
          // Predicated region
          $region48: #{tpu_custom_call.1} parent=40 // pred_check
            %p542 = pneg %p376
          $region49: #{tpu_custom_call.1} parent=40 // pred_check_branch
            %544 = sbr.rel (%p542) target = $region51
          $region50: #{tpu_custom_call.1} parent=40 // pred_region
            _
          $region51: #{tpu_custom_call.1} parent=40 // pred_fallthru
            %v545 = vphi %v526, %v320
            %v546 = vphi %v527, %v321
            %v547 = vphi %v528, %v322
            %v548 = vphi %v529, %v323
            %v549 = vphi %v530, %v324
            %v550 = vphi %v531, %v325
            %v551 = vphi %v532, %v326
            %v552 = vphi %v533, %v327
            %v553 = vphi %v534, %v328
            %v554 = vphi %v535, %v329
            %v555 = vphi %v536, %v330
            %v556 = vphi %v537, %v331
            %v557 = vphi %v538, %v332
            %v558 = vphi %v539, %v333
            %v559 = vphi %v540, %v334
            %v560 = vphi %v541, %v335
          %s561 = sadd.s32 %s319, 1
          %s562 = sshra.s32 %s561, 7
          %s563 = sand.u32 %s561, 127
          %s564 = sadd.s32 %s562, %s47
          %s565 = smul.u32 %s564, 128
          %s566 = sshra.s32 %s561, 7
          %s567 = sand.u32 %s561, 127
          %s568 = sadd.s32 %s565, %s567
          %s569 = sld [smem:[#allocation4 + %s568]]
          %s570 = sld [smem:[#allocation5 + %s569]]
          %s571 = sshra.s32 %s569, 7
          %s572 = sand.u32 %s569, 127
          %s573 = sadd.s32 %s571, 13
          %s574 = smul.u32 %s573, 128
          %s575 = sshra.s32 %s569, 7
          %s576 = sand.u32 %s569, 127
          %s577 = sadd.s32 %s574, %s576
          %s578 = sld [smem:[#allocation5 + %s577]]
          %p579 = scmp.lt.s32.totalorder %s561, %s317
          %s580 = sadd.f32 %s570, %s578
          %p581 = scmp.ge.f32.partialorder %s580, %s302
          %p582 = pnand %p579, %p581
          %p583 = pneg %p582
          %s584 = ssub.f32 %s570, %s578
          %p585 = scmp.le.f32.partialorder %s584, %s303
          %p586 = pnand %p583, %p585
          %p587 = pneg %p586
          // Predicated region
          $region52: #{tpu_custom_call.1} parent=40 // pred_check
            _
          $region53: #{tpu_custom_call.1} parent=40 // pred_check_branch
            %589 = sbr.rel (%p586) target = $region55
          $region54: #{tpu_custom_call.1} parent=40 // pred_region
            %s590 = sadd.s32 %s571, 1
            %s591 = smul.u32 %s590, 128
            %s592 = sadd.s32 %s591, %s576
            %s593 = sld [smem:[#allocation5 + %s592]]
            %s594 = sadd.s32 %s571, 2
            %s595 = smul.u32 %s594, 128
            %s596 = sadd.s32 %s595, %s576
            %s597 = sld [smem:[#allocation5 + %s596]]
            %s598 = sadd.s32 %s571, 3
            %s599 = smul.u32 %s598, 128
            %s600 = sadd.s32 %s599, %s576
            %s601 = sld [smem:[#allocation5 + %s600]]
            %s602 = sadd.s32 %s571, 4
            %s603 = smul.u32 %s602, 128
            %s604 = sadd.s32 %s603, %s576
            %s605 = sld [smem:[#allocation5 + %s604]]
            %s606 = sadd.s32 %s571, 5
            %s607 = smul.u32 %s606, 128
            %s608 = sadd.s32 %s607, %s576
            %s609 = sld [smem:[#allocation5 + %s608]]
            %s610 = sadd.s32 %s571, 6
            %s611 = smul.u32 %s610, 128
            %s612 = sadd.s32 %s611, %s576
            %s613 = sld [smem:[#allocation5 + %s612]]
            %s614 = sadd.s32 %s571, 7
            %s615 = smul.u32 %s614, 128
            %s616 = sadd.s32 %s615, %s576
            %s617 = sld [smem:[#allocation5 + %s616]]
            %s618 = sadd.s32 %s571, 8
            %s619 = smul.u32 %s618, 128
            %s620 = sadd.s32 %s619, %s576
            %s621 = sld [smem:[#allocation5 + %s620]]
            %s622 = sadd.s32 %s571, 9
            %s623 = smul.u32 %s622, 128
            %s624 = sadd.s32 %s623, %s576
            %s625 = sld [smem:[#allocation5 + %s624]]
            %s626 = sadd.s32 %s571, 10
            %s627 = smul.u32 %s626, 128
            %s628 = sadd.s32 %s627, %s576
            %s629 = sld [smem:[#allocation5 + %s628]]
            %s630 = sadd.s32 %s571, 11
            %s631 = smul.u32 %s630, 128
            %s632 = sadd.s32 %s631, %s576
            %s633 = sld [smem:[#allocation5 + %s632]]
            %s634 = sadd.s32 %s571, 12
            %s635 = smul.u32 %s634, 128
            %s636 = sadd.s32 %s635, %s576
            %s637 = sld [smem:[#allocation5 + %s636]]
            %v638 = vstv %s570
            %v639 = vsub.f32 %v638, %v315
            %v640 = vsub.f32 %v638, %v316
            %v641 = vstv %s593
            %v642 = vsub.f32 %v641, %v308
            %v643 = vmul.f32 %v639, %v639
            %v644 = vmul.f32 %v640, %v640
            %v645 = vstv %s597
            %v646 = vmul.f32 %v645, %v643
            %v647 = vmul.f32 %v645, %v644
            %v648 = vmul.f32 %v642, %v642
            %v649 = vstv %s605
            %v650 = vmul.f32 %v649, %v648
            %v651 = vadd.f32 %v646, %v650
            %v652 = vadd.f32 %v647, %v650
            %v653 = vmul.f32 %v639, %v642
            %v654 = vmul.f32 %v640, %v642
            %v655 = vstv %s601
            %v656 = vmul.f32 %v655, %v653
            %v657 = vmul.f32 %v655, %v654
            %v658 = vadd.f32 %v651, %v656
            %v659 = vadd.f32 %v652, %v657
            %v660 = vmul.f32 %v658, 1.442695
            %v661 = vpow.pop %v660
            %v662 = vmul.f32 %v659, 1.442695
            %v663 = vpow.pop %v662
            %v664 = vstv %s609
            %v665 = vmul.f32 %v664, %v661
            %v666 = vmul.f32 %v664, %v663
            %v667 = vmin.f32 %v665, 0.99
            %v668 = vmin.f32 %v666, 0.99
            %vm669 = vcmp.gt.f32.partialorder %v545, 0.0
            %vm670 = vcmp.gt.f32.partialorder %v546, 0.0
            %vm671 = vcmp.le.f32.partialorder %v658, 0.0
            %vm672 = vcmp.le.f32.partialorder %v659, 0.0
            %vm673 = vmand %vm669, %vm671
            %vm674 = vmand %vm670, %vm672
            %vm675 = vcmp.ge.f32.partialorder %v667, 0.003921569
            %vm676 = vcmp.ge.f32.partialorder %v668, 0.003921569
            %vm677 = vmand %vm673, %vm675
            %vm678 = vmand %vm674, %vm676
            %v679 = vsub.f32 1.0, %v667
            %v680 = vsub.f32 1.0, %v668
            %v681 = vmul.f32 %v545, %v679
            %v682 = vmul.f32 %v546, %v680
            %vm683 = vcmp.ge.f32.partialorder %v681, 0.0001
            %vm684 = vcmp.ge.f32.partialorder %v682, 0.0001
            %vm685 = vmand %vm677, %vm683
            %vm686 = vmand %vm678, %vm684
            %vm687 = vcmp.lt.f32.partialorder %v681, 0.0001
            %vm688 = vcmp.lt.f32.partialorder %v682, 0.0001
            %vm689 = vmand %vm677, %vm687
            %vm690 = vmand %vm678, %vm688
            %v691 = vmul.f32 %v667, %v545
            %v692 = vmul.f32 %v668, %v546
            %v693 = vsel %vm685, %v691, 0.0
            %v694 = vsel %vm686, %v692, 0.0
            %v695 = vsub.f32 0.0, %v545
            %v696 = vsub.f32 0.0, %v546
            %v697 = vsel %vm689, %v695, %v545
            %v698 = vsel %vm690, %v696, %v546
            %v699 = vsel %vm685, %v681, %v697
            %v700 = vsel %vm686, %v682, %v698
            %v701 = vstv %s613
            %v702 = vmul.f32 %v701, %v693
            %v703 = vmul.f32 %v701, %v694
            %v704 = vadd.f32 %v547, %v702
            %v705 = vadd.f32 %v548, %v703
            %v706 = vstv %s617
            %v707 = vmul.f32 %v706, %v693
            %v708 = vmul.f32 %v706, %v694
            %v709 = vadd.f32 %v549, %v707
            %v710 = vadd.f32 %v550, %v708
            %v711 = vstv %s621
            %v712 = vmul.f32 %v711, %v693
            %v713 = vmul.f32 %v711, %v694
            %v714 = vadd.f32 %v551, %v712
            %v715 = vadd.f32 %v552, %v713
            %v716 = vstv %s625
            %v717 = vmul.f32 %v716, %v693
            %v718 = vmul.f32 %v716, %v694
            %v719 = vadd.f32 %v553, %v717
            %v720 = vadd.f32 %v554, %v718
            %v721 = vstv %s629
            %v722 = vmul.f32 %v721, %v693
            %v723 = vmul.f32 %v721, %v694
            %v724 = vadd.f32 %v555, %v722
            %v725 = vadd.f32 %v556, %v723
            %v726 = vstv %s633
            %v727 = vmul.f32 %v726, %v693
            %v728 = vmul.f32 %v726, %v694
            %v729 = vadd.f32 %v557, %v727
            %v730 = vadd.f32 %v558, %v728
            %v731 = vstv %s637
            %v732 = vmul.f32 %v731, %v693
            %v733 = vmul.f32 %v731, %v694
            %v734 = vadd.f32 %v559, %v732
            %v735 = vadd.f32 %v560, %v733
          $region55: #{tpu_custom_call.1} parent=40 // pred_fallthru
            %v736 = vphi 0, %v699
            %v737 = vphi 0, %v700
            %v738 = vphi 0, %v704
            %v739 = vphi 0, %v705
            %v740 = vphi 0, %v709
            %v741 = vphi 0, %v710
            %v742 = vphi 0, %v714
            %v743 = vphi 0, %v715
            %v744 = vphi 0, %v719
            %v745 = vphi 0, %v720
            %v746 = vphi 0, %v724
            %v747 = vphi 0, %v725
            %v748 = vphi 0, %v729
            %v749 = vphi 0, %v730
            %v750 = vphi 0, %v734
            %v751 = vphi 0, %v735
          // Predicated region
          $region56: #{tpu_custom_call.1} parent=40 // pred_check
            %p752 = pneg %p586
          $region57: #{tpu_custom_call.1} parent=40 // pred_check_branch
            %754 = sbr.rel (%p752) target = $region59
          $region58: #{tpu_custom_call.1} parent=40 // pred_region
            _
          $region59: #{tpu_custom_call.1} parent=40 // pred_fallthru
            %v755 = vphi %v736, %v545
            %v756 = vphi %v737, %v546
            %v757 = vphi %v738, %v547
            %v758 = vphi %v739, %v548
            %v759 = vphi %v740, %v549
            %v760 = vphi %v741, %v550
            %v761 = vphi %v742, %v551
            %v762 = vphi %v743, %v552
            %v763 = vphi %v744, %v553
            %v764 = vphi %v745, %v554
            %v765 = vphi %v746, %v555
            %v766 = vphi %v747, %v556
            %v767 = vphi %v748, %v557
            %v768 = vphi %v749, %v558
            %v769 = vphi %v750, %v559
            %v770 = vphi %v751, %v560
          %s771 = sadd.s32 %s319, 2
          %s772 = sshra.s32 %s771, 7
          %s773 = sand.u32 %s771, 127
          %s774 = sadd.s32 %s772, %s47
          %s775 = smul.u32 %s774, 128
          %s776 = sshra.s32 %s771, 7
          %s777 = sand.u32 %s771, 127
          %s778 = sadd.s32 %s775, %s777
          %s779 = sld [smem:[#allocation4 + %s778]]
          %s780 = sld [smem:[#allocation5 + %s779]]
          %s781 = sshra.s32 %s779, 7
          %s782 = sand.u32 %s779, 127
          %s783 = sadd.s32 %s781, 13
          %s784 = smul.u32 %s783, 128
          %s785 = sshra.s32 %s779, 7
          %s786 = sand.u32 %s779, 127
          %s787 = sadd.s32 %s784, %s786
          %s788 = sld [smem:[#allocation5 + %s787]]
          %p789 = scmp.lt.s32.totalorder %s771, %s317
          %s790 = sadd.f32 %s780, %s788
          %p791 = scmp.ge.f32.partialorder %s790, %s302
          %p792 = pnand %p789, %p791
          %p793 = pneg %p792
          %s794 = ssub.f32 %s780, %s788
          %p795 = scmp.le.f32.partialorder %s794, %s303
          %p796 = pnand %p793, %p795
          %p797 = pneg %p796
          // Predicated region
          $region60: #{tpu_custom_call.1} parent=40 // pred_check
            _
          $region61: #{tpu_custom_call.1} parent=40 // pred_check_branch
            %799 = sbr.rel (%p796) target = $region63
          $region62: #{tpu_custom_call.1} parent=40 // pred_region
            %s800 = sadd.s32 %s781, 1
            %s801 = smul.u32 %s800, 128
            %s802 = sadd.s32 %s801, %s786
            %s803 = sld [smem:[#allocation5 + %s802]]
            %s804 = sadd.s32 %s781, 2
            %s805 = smul.u32 %s804, 128
            %s806 = sadd.s32 %s805, %s786
            %s807 = sld [smem:[#allocation5 + %s806]]
            %s808 = sadd.s32 %s781, 3
            %s809 = smul.u32 %s808, 128
            %s810 = sadd.s32 %s809, %s786
            %s811 = sld [smem:[#allocation5 + %s810]]
            %s812 = sadd.s32 %s781, 4
            %s813 = smul.u32 %s812, 128
            %s814 = sadd.s32 %s813, %s786
            %s815 = sld [smem:[#allocation5 + %s814]]
            %s816 = sadd.s32 %s781, 5
            %s817 = smul.u32 %s816, 128
            %s818 = sadd.s32 %s817, %s786
            %s819 = sld [smem:[#allocation5 + %s818]]
            %s820 = sadd.s32 %s781, 6
            %s821 = smul.u32 %s820, 128
            %s822 = sadd.s32 %s821, %s786
            %s823 = sld [smem:[#allocation5 + %s822]]
            %s824 = sadd.s32 %s781, 7
            %s825 = smul.u32 %s824, 128
            %s826 = sadd.s32 %s825, %s786
            %s827 = sld [smem:[#allocation5 + %s826]]
            %s828 = sadd.s32 %s781, 8
            %s829 = smul.u32 %s828, 128
            %s830 = sadd.s32 %s829, %s786
            %s831 = sld [smem:[#allocation5 + %s830]]
            %s832 = sadd.s32 %s781, 9
            %s833 = smul.u32 %s832, 128
            %s834 = sadd.s32 %s833, %s786
            %s835 = sld [smem:[#allocation5 + %s834]]
            %s836 = sadd.s32 %s781, 10
            %s837 = smul.u32 %s836, 128
            %s838 = sadd.s32 %s837, %s786
            %s839 = sld [smem:[#allocation5 + %s838]]
            %s840 = sadd.s32 %s781, 11
            %s841 = smul.u32 %s840, 128
            %s842 = sadd.s32 %s841, %s786
            %s843 = sld [smem:[#allocation5 + %s842]]
            %s844 = sadd.s32 %s781, 12
            %s845 = smul.u32 %s844, 128
            %s846 = sadd.s32 %s845, %s786
            %s847 = sld [smem:[#allocation5 + %s846]]
            %v848 = vstv %s780
            %v849 = vsub.f32 %v848, %v315
            %v850 = vsub.f32 %v848, %v316
            %v851 = vstv %s803
            %v852 = vsub.f32 %v851, %v308
            %v853 = vmul.f32 %v849, %v849
            %v854 = vmul.f32 %v850, %v850
            %v855 = vstv %s807
            %v856 = vmul.f32 %v855, %v853
            %v857 = vmul.f32 %v855, %v854
            %v858 = vmul.f32 %v852, %v852
            %v859 = vstv %s815
            %v860 = vmul.f32 %v859, %v858
            %v861 = vadd.f32 %v856, %v860
            %v862 = vadd.f32 %v857, %v860
            %v863 = vmul.f32 %v849, %v852
            %v864 = vmul.f32 %v850, %v852
            %v865 = vstv %s811
            %v866 = vmul.f32 %v865, %v863
            %v867 = vmul.f32 %v865, %v864
            %v868 = vadd.f32 %v861, %v866
            %v869 = vadd.f32 %v862, %v867
            %v870 = vmul.f32 %v868, 1.442695
            %v871 = vpow.pop %v870
            %v872 = vmul.f32 %v869, 1.442695
            %v873 = vpow.pop %v872
            %v874 = vstv %s819
            %v875 = vmul.f32 %v874, %v871
            %v876 = vmul.f32 %v874, %v873
            %v877 = vmin.f32 %v875, 0.99
            %v878 = vmin.f32 %v876, 0.99
            %vm879 = vcmp.gt.f32.partialorder %v755, 0.0
            %vm880 = vcmp.gt.f32.partialorder %v756, 0.0
            %vm881 = vcmp.le.f32.partialorder %v868, 0.0
            %vm882 = vcmp.le.f32.partialorder %v869, 0.0
            %vm883 = vmand %vm879, %vm881
            %vm884 = vmand %vm880, %vm882
            %vm885 = vcmp.ge.f32.partialorder %v877, 0.003921569
            %vm886 = vcmp.ge.f32.partialorder %v878, 0.003921569
            %vm887 = vmand %vm883, %vm885
            %vm888 = vmand %vm884, %vm886
            %v889 = vsub.f32 1.0, %v877
            %v890 = vsub.f32 1.0, %v878
            %v891 = vmul.f32 %v755, %v889
            %v892 = vmul.f32 %v756, %v890
            %vm893 = vcmp.ge.f32.partialorder %v891, 0.0001
            %vm894 = vcmp.ge.f32.partialorder %v892, 0.0001
            %vm895 = vmand %vm887, %vm893
            %vm896 = vmand %vm888, %vm894
            %vm897 = vcmp.lt.f32.partialorder %v891, 0.0001
            %vm898 = vcmp.lt.f32.partialorder %v892, 0.0001
            %vm899 = vmand %vm887, %vm897
            %vm900 = vmand %vm888, %vm898
            %v901 = vmul.f32 %v877, %v755
            %v902 = vmul.f32 %v878, %v756
            %v903 = vsel %vm895, %v901, 0.0
            %v904 = vsel %vm896, %v902, 0.0
            %v905 = vsub.f32 0.0, %v755
            %v906 = vsub.f32 0.0, %v756
            %v907 = vsel %vm899, %v905, %v755
            %v908 = vsel %vm900, %v906, %v756
            %v909 = vsel %vm895, %v891, %v907
            %v910 = vsel %vm896, %v892, %v908
            %v911 = vstv %s823
            %v912 = vmul.f32 %v911, %v903
            %v913 = vmul.f32 %v911, %v904
            %v914 = vadd.f32 %v757, %v912
            %v915 = vadd.f32 %v758, %v913
            %v916 = vstv %s827
            %v917 = vmul.f32 %v916, %v903
            %v918 = vmul.f32 %v916, %v904
            %v919 = vadd.f32 %v759, %v917
            %v920 = vadd.f32 %v760, %v918
            %v921 = vstv %s831
            %v922 = vmul.f32 %v921, %v903
            %v923 = vmul.f32 %v921, %v904
            %v924 = vadd.f32 %v761, %v922
            %v925 = vadd.f32 %v762, %v923
            %v926 = vstv %s835
            %v927 = vmul.f32 %v926, %v903
            %v928 = vmul.f32 %v926, %v904
            %v929 = vadd.f32 %v763, %v927
            %v930 = vadd.f32 %v764, %v928
            %v931 = vstv %s839
            %v932 = vmul.f32 %v931, %v903
            %v933 = vmul.f32 %v931, %v904
            %v934 = vadd.f32 %v765, %v932
            %v935 = vadd.f32 %v766, %v933
            %v936 = vstv %s843
            %v937 = vmul.f32 %v936, %v903
            %v938 = vmul.f32 %v936, %v904
            %v939 = vadd.f32 %v767, %v937
            %v940 = vadd.f32 %v768, %v938
            %v941 = vstv %s847
            %v942 = vmul.f32 %v941, %v903
            %v943 = vmul.f32 %v941, %v904
            %v944 = vadd.f32 %v769, %v942
            %v945 = vadd.f32 %v770, %v943
          $region63: #{tpu_custom_call.1} parent=40 // pred_fallthru
            %v946 = vphi 0, %v909
            %v947 = vphi 0, %v910
            %v948 = vphi 0, %v914
            %v949 = vphi 0, %v915
            %v950 = vphi 0, %v919
            %v951 = vphi 0, %v920
            %v952 = vphi 0, %v924
            %v953 = vphi 0, %v925
            %v954 = vphi 0, %v929
            %v955 = vphi 0, %v930
            %v956 = vphi 0, %v934
            %v957 = vphi 0, %v935
            %v958 = vphi 0, %v939
            %v959 = vphi 0, %v940
            %v960 = vphi 0, %v944
            %v961 = vphi 0, %v945
          // Predicated region
          $region64: #{tpu_custom_call.1} parent=40 // pred_check
            %p962 = pneg %p796
          $region65: #{tpu_custom_call.1} parent=40 // pred_check_branch
            %964 = sbr.rel (%p962) target = $region67
          $region66: #{tpu_custom_call.1} parent=40 // pred_region
            _
          $region67: #{tpu_custom_call.1} parent=40 // pred_fallthru
            %v965 = vphi %v946, %v755
            %v966 = vphi %v947, %v756
            %v967 = vphi %v948, %v757
            %v968 = vphi %v949, %v758
            %v969 = vphi %v950, %v759
            %v970 = vphi %v951, %v760
            %v971 = vphi %v952, %v761
            %v972 = vphi %v953, %v762
            %v973 = vphi %v954, %v763
            %v974 = vphi %v955, %v764
            %v975 = vphi %v956, %v765
            %v976 = vphi %v957, %v766
            %v977 = vphi %v958, %v767
            %v978 = vphi %v959, %v768
            %v979 = vphi %v960, %v769
            %v980 = vphi %v961, %v770
          %s981 = sadd.s32 %s319, 3
          %s982 = sshra.s32 %s981, 7
          %s983 = sand.u32 %s981, 127
          %s984 = sadd.s32 %s982, %s47
          %s985 = smul.u32 %s984, 128
          %s986 = sshra.s32 %s981, 7
          %s987 = sand.u32 %s981, 127
          %s988 = sadd.s32 %s985, %s987
          %s989 = sld [smem:[#allocation4 + %s988]]
          %s990 = sld [smem:[#allocation5 + %s989]]
          %s991 = sshra.s32 %s989, 7
          %s992 = sand.u32 %s989, 127
          %s993 = sadd.s32 %s991, 13
          %s994 = smul.u32 %s993, 128
          %s995 = sshra.s32 %s989, 7
          %s996 = sand.u32 %s989, 127
          %s997 = sadd.s32 %s994, %s996
          %s998 = sld [smem:[#allocation5 + %s997]]
          %p999 = scmp.lt.s32.totalorder %s981, %s317
          %s1000 = sadd.f32 %s990, %s998
          %p1001 = scmp.ge.f32.partialorder %s1000, %s302
          %p1002 = pnand %p999, %p1001
          %p1003 = pneg %p1002
          %s1004 = ssub.f32 %s990, %s998
          %p1005 = scmp.le.f32.partialorder %s1004, %s303
          %p1006 = pnand %p1003, %p1005
          %p1007 = pneg %p1006
          // Predicated region
          $region68: #{tpu_custom_call.1} parent=40 // pred_check
            _
          $region69: #{tpu_custom_call.1} parent=40 // pred_check_branch
            %1009 = sbr.rel (%p1006) target = $region71
          $region70: #{tpu_custom_call.1} parent=40 // pred_region
            %s1010 = sadd.s32 %s991, 1
            %s1011 = smul.u32 %s1010, 128
            %s1012 = sadd.s32 %s1011, %s996
            %s1013 = sld [smem:[#allocation5 + %s1012]]
            %s1014 = sadd.s32 %s991, 2
            %s1015 = smul.u32 %s1014, 128
            %s1016 = sadd.s32 %s1015, %s996
            %s1017 = sld [smem:[#allocation5 + %s1016]]
            %s1018 = sadd.s32 %s991, 3
            %s1019 = smul.u32 %s1018, 128
            %s1020 = sadd.s32 %s1019, %s996
            %s1021 = sld [smem:[#allocation5 + %s1020]]
            %s1022 = sadd.s32 %s991, 4
            %s1023 = smul.u32 %s1022, 128
            %s1024 = sadd.s32 %s1023, %s996
            %s1025 = sld [smem:[#allocation5 + %s1024]]
            %s1026 = sadd.s32 %s991, 5
            %s1027 = smul.u32 %s1026, 128
            %s1028 = sadd.s32 %s1027, %s996
            %s1029 = sld [smem:[#allocation5 + %s1028]]
            %s1030 = sadd.s32 %s991, 6
            %s1031 = smul.u32 %s1030, 128
            %s1032 = sadd.s32 %s1031, %s996
            %s1033 = sld [smem:[#allocation5 + %s1032]]
            %s1034 = sadd.s32 %s991, 7
            %s1035 = smul.u32 %s1034, 128
            %s1036 = sadd.s32 %s1035, %s996
            %s1037 = sld [smem:[#allocation5 + %s1036]]
            %s1038 = sadd.s32 %s991, 8
            %s1039 = smul.u32 %s1038, 128
            %s1040 = sadd.s32 %s1039, %s996
            %s1041 = sld [smem:[#allocation5 + %s1040]]
            %s1042 = sadd.s32 %s991, 9
            %s1043 = smul.u32 %s1042, 128
            %s1044 = sadd.s32 %s1043, %s996
            %s1045 = sld [smem:[#allocation5 + %s1044]]
            %s1046 = sadd.s32 %s991, 10
            %s1047 = smul.u32 %s1046, 128
            %s1048 = sadd.s32 %s1047, %s996
            %s1049 = sld [smem:[#allocation5 + %s1048]]
            %s1050 = sadd.s32 %s991, 11
            %s1051 = smul.u32 %s1050, 128
            %s1052 = sadd.s32 %s1051, %s996
            %s1053 = sld [smem:[#allocation5 + %s1052]]
            %s1054 = sadd.s32 %s991, 12
            %s1055 = smul.u32 %s1054, 128
            %s1056 = sadd.s32 %s1055, %s996
            %s1057 = sld [smem:[#allocation5 + %s1056]]
            %v1058 = vstv %s990
            %v1059 = vsub.f32 %v1058, %v315
            %v1060 = vsub.f32 %v1058, %v316
            %v1061 = vstv %s1013
            %v1062 = vsub.f32 %v1061, %v308
            %v1063 = vmul.f32 %v1059, %v1059
            %v1064 = vmul.f32 %v1060, %v1060
            %v1065 = vstv %s1017
            %v1066 = vmul.f32 %v1065, %v1063
            %v1067 = vmul.f32 %v1065, %v1064
            %v1068 = vmul.f32 %v1062, %v1062
            %v1069 = vstv %s1025
            %v1070 = vmul.f32 %v1069, %v1068
            %v1071 = vadd.f32 %v1066, %v1070
            %v1072 = vadd.f32 %v1067, %v1070
            %v1073 = vmul.f32 %v1059, %v1062
            %v1074 = vmul.f32 %v1060, %v1062
            %v1075 = vstv %s1021
            %v1076 = vmul.f32 %v1075, %v1073
            %v1077 = vmul.f32 %v1075, %v1074
            %v1078 = vadd.f32 %v1071, %v1076
            %v1079 = vadd.f32 %v1072, %v1077
            %v1080 = vmul.f32 %v1078, 1.442695
            %v1081 = vpow.pop %v1080
            %v1082 = vmul.f32 %v1079, 1.442695
            %v1083 = vpow.pop %v1082
            %v1084 = vstv %s1029
            %v1085 = vmul.f32 %v1084, %v1081
            %v1086 = vmul.f32 %v1084, %v1083
            %v1087 = vmin.f32 %v1085, 0.99
            %v1088 = vmin.f32 %v1086, 0.99
            %vm1089 = vcmp.gt.f32.partialorder %v965, 0.0
            %vm1090 = vcmp.gt.f32.partialorder %v966, 0.0
            %vm1091 = vcmp.le.f32.partialorder %v1078, 0.0
            %vm1092 = vcmp.le.f32.partialorder %v1079, 0.0
            %vm1093 = vmand %vm1089, %vm1091
            %vm1094 = vmand %vm1090, %vm1092
            %vm1095 = vcmp.ge.f32.partialorder %v1087, 0.003921569
            %vm1096 = vcmp.ge.f32.partialorder %v1088, 0.003921569
            %vm1097 = vmand %vm1093, %vm1095
            %vm1098 = vmand %vm1094, %vm1096
            %v1099 = vsub.f32 1.0, %v1087
            %v1100 = vsub.f32 1.0, %v1088
            %v1101 = vmul.f32 %v965, %v1099
            %v1102 = vmul.f32 %v966, %v1100
            %vm1103 = vcmp.ge.f32.partialorder %v1101, 0.0001
            %vm1104 = vcmp.ge.f32.partialorder %v1102, 0.0001
            %vm1105 = vmand %vm1097, %vm1103
            %vm1106 = vmand %vm1098, %vm1104
            %vm1107 = vcmp.lt.f32.partialorder %v1101, 0.0001
            %vm1108 = vcmp.lt.f32.partialorder %v1102, 0.0001
            %vm1109 = vmand %vm1097, %vm1107
            %vm1110 = vmand %vm1098, %vm1108
            %v1111 = vmul.f32 %v1087, %v965
            %v1112 = vmul.f32 %v1088, %v966
            %v1113 = vsel %vm1105, %v1111, 0.0
            %v1114 = vsel %vm1106, %v1112, 0.0
            %v1115 = vsub.f32 0.0, %v965
            %v1116 = vsub.f32 0.0, %v966
            %v1117 = vsel %vm1109, %v1115, %v965
            %v1118 = vsel %vm1110, %v1116, %v966
            %v1119 = vsel %vm1105, %v1101, %v1117
            %v1120 = vsel %vm1106, %v1102, %v1118
            %v1121 = vstv %s1033
            %v1122 = vmul.f32 %v1121, %v1113
            %v1123 = vmul.f32 %v1121, %v1114
            %v1124 = vadd.f32 %v967, %v1122
            %v1125 = vadd.f32 %v968, %v1123
            %v1126 = vstv %s1037
            %v1127 = vmul.f32 %v1126, %v1113
            %v1128 = vmul.f32 %v1126, %v1114
            %v1129 = vadd.f32 %v969, %v1127
            %v1130 = vadd.f32 %v970, %v1128
            %v1131 = vstv %s1041
            %v1132 = vmul.f32 %v1131, %v1113
            %v1133 = vmul.f32 %v1131, %v1114
            %v1134 = vadd.f32 %v971, %v1132
            %v1135 = vadd.f32 %v972, %v1133
            %v1136 = vstv %s1045
            %v1137 = vmul.f32 %v1136, %v1113
            %v1138 = vmul.f32 %v1136, %v1114
            %v1139 = vadd.f32 %v973, %v1137
            %v1140 = vadd.f32 %v974, %v1138
            %v1141 = vstv %s1049
            %v1142 = vmul.f32 %v1141, %v1113
            %v1143 = vmul.f32 %v1141, %v1114
            %v1144 = vadd.f32 %v975, %v1142
            %v1145 = vadd.f32 %v976, %v1143
            %v1146 = vstv %s1053
            %v1147 = vmul.f32 %v1146, %v1113
            %v1148 = vmul.f32 %v1146, %v1114
            %v1149 = vadd.f32 %v977, %v1147
            %v1150 = vadd.f32 %v978, %v1148
            %v1151 = vstv %s1057
            %v1152 = vmul.f32 %v1151, %v1113
            %v1153 = vmul.f32 %v1151, %v1114
            %v1154 = vadd.f32 %v979, %v1152
            %v1155 = vadd.f32 %v980, %v1153
          $region71: #{tpu_custom_call.1} parent=40 // pred_fallthru
            %v1156 = vphi 0, %v1119
            %v1157 = vphi 0, %v1120
            %v1158 = vphi 0, %v1124
            %v1159 = vphi 0, %v1125
            %v1160 = vphi 0, %v1129
            %v1161 = vphi 0, %v1130
            %v1162 = vphi 0, %v1134
            %v1163 = vphi 0, %v1135
            %v1164 = vphi 0, %v1139
            %v1165 = vphi 0, %v1140
            %v1166 = vphi 0, %v1144
            %v1167 = vphi 0, %v1145
            %v1168 = vphi 0, %v1149
            %v1169 = vphi 0, %v1150
            %v1170 = vphi 0, %v1154
            %v1171 = vphi 0, %v1155
          // Predicated region
          $region72: #{tpu_custom_call.1} parent=40 // pred_check
            %p1172 = pneg %p1006
          $region73: #{tpu_custom_call.1} parent=40 // pred_check_branch
            %1174 = sbr.rel (%p1172) target = $region75
          $region74: #{tpu_custom_call.1} parent=40 // pred_region
            _
          $region75: #{tpu_custom_call.1} parent=40 // pred_fallthru
            %v1175 = vphi %v1156, %v965
            %v1176 = vphi %v1157, %v966
            %v1177 = vphi %v1158, %v967
            %v1178 = vphi %v1159, %v968
            %v1179 = vphi %v1160, %v969
            %v1180 = vphi %v1161, %v970
            %v1181 = vphi %v1162, %v971
            %v1182 = vphi %v1163, %v972
            %v1183 = vphi %v1164, %v973
            %v1184 = vphi %v1165, %v974
            %v1185 = vphi %v1166, %v975
            %v1186 = vphi %v1167, %v976
            %v1187 = vphi %v1168, %v977
            %v1188 = vphi %v1169, %v978
            %v1189 = vphi %v1170, %v979
            %v1190 = vphi %v1171, %v980
          %s1191 = sadd.s32 %s319, 4
          %s1192 = sshra.s32 %s1191, 7
          %s1193 = sand.u32 %s1191, 127
          %s1194 = sadd.s32 %s1192, %s47
          %s1195 = smul.u32 %s1194, 128
          %s1196 = sshra.s32 %s1191, 7
          %s1197 = sand.u32 %s1191, 127
          %s1198 = sadd.s32 %s1195, %s1197
          %s1199 = sld [smem:[#allocation4 + %s1198]]
          %s1200 = sld [smem:[#allocation5 + %s1199]]
          %s1201 = sshra.s32 %s1199, 7
          %s1202 = sand.u32 %s1199, 127
          %s1203 = sadd.s32 %s1201, 13
          %s1204 = smul.u32 %s1203, 128
          %s1205 = sshra.s32 %s1199, 7
          %s1206 = sand.u32 %s1199, 127
          %s1207 = sadd.s32 %s1204, %s1206
          %s1208 = sld [smem:[#allocation5 + %s1207]]
          %p1209 = scmp.lt.s32.totalorder %s1191, %s317
          %s1210 = sadd.f32 %s1200, %s1208
          %p1211 = scmp.ge.f32.partialorder %s1210, %s302
          %p1212 = pnand %p1209, %p1211
          %p1213 = pneg %p1212
          %s1214 = ssub.f32 %s1200, %s1208
          %p1215 = scmp.le.f32.partialorder %s1214, %s303
          %p1216 = pnand %p1213, %p1215
          %p1217 = pneg %p1216
          // Predicated region
          $region76: #{tpu_custom_call.1} parent=40 // pred_check
            _
          $region77: #{tpu_custom_call.1} parent=40 // pred_check_branch
            %1219 = sbr.rel (%p1216) target = $region79
          $region78: #{tpu_custom_call.1} parent=40 // pred_region
            %s1220 = sadd.s32 %s1201, 1
            %s1221 = smul.u32 %s1220, 128
            %s1222 = sadd.s32 %s1221, %s1206
            %s1223 = sld [smem:[#allocation5 + %s1222]]
            %s1224 = sadd.s32 %s1201, 2
            %s1225 = smul.u32 %s1224, 128
            %s1226 = sadd.s32 %s1225, %s1206
            %s1227 = sld [smem:[#allocation5 + %s1226]]
            %s1228 = sadd.s32 %s1201, 3
            %s1229 = smul.u32 %s1228, 128
            %s1230 = sadd.s32 %s1229, %s1206
            %s1231 = sld [smem:[#allocation5 + %s1230]]
            %s1232 = sadd.s32 %s1201, 4
            %s1233 = smul.u32 %s1232, 128
            %s1234 = sadd.s32 %s1233, %s1206
            %s1235 = sld [smem:[#allocation5 + %s1234]]
            %s1236 = sadd.s32 %s1201, 5
            %s1237 = smul.u32 %s1236, 128
            %s1238 = sadd.s32 %s1237, %s1206
            %s1239 = sld [smem:[#allocation5 + %s1238]]
            %s1240 = sadd.s32 %s1201, 6
            %s1241 = smul.u32 %s1240, 128
            %s1242 = sadd.s32 %s1241, %s1206
            %s1243 = sld [smem:[#allocation5 + %s1242]]
            %s1244 = sadd.s32 %s1201, 7
            %s1245 = smul.u32 %s1244, 128
            %s1246 = sadd.s32 %s1245, %s1206
            %s1247 = sld [smem:[#allocation5 + %s1246]]
            %s1248 = sadd.s32 %s1201, 8
            %s1249 = smul.u32 %s1248, 128
            %s1250 = sadd.s32 %s1249, %s1206
            %s1251 = sld [smem:[#allocation5 + %s1250]]
            %s1252 = sadd.s32 %s1201, 9
            %s1253 = smul.u32 %s1252, 128
            %s1254 = sadd.s32 %s1253, %s1206
            %s1255 = sld [smem:[#allocation5 + %s1254]]
            %s1256 = sadd.s32 %s1201, 10
            %s1257 = smul.u32 %s1256, 128
            %s1258 = sadd.s32 %s1257, %s1206
            %s1259 = sld [smem:[#allocation5 + %s1258]]
            %s1260 = sadd.s32 %s1201, 11
            %s1261 = smul.u32 %s1260, 128
            %s1262 = sadd.s32 %s1261, %s1206
            %s1263 = sld [smem:[#allocation5 + %s1262]]
            %s1264 = sadd.s32 %s1201, 12
            %s1265 = smul.u32 %s1264, 128
            %s1266 = sadd.s32 %s1265, %s1206
            %s1267 = sld [smem:[#allocation5 + %s1266]]
            %v1268 = vstv %s1200
            %v1269 = vsub.f32 %v1268, %v315
            %v1270 = vsub.f32 %v1268, %v316
            %v1271 = vstv %s1223
            %v1272 = vsub.f32 %v1271, %v308
            %v1273 = vmul.f32 %v1269, %v1269
            %v1274 = vmul.f32 %v1270, %v1270
            %v1275 = vstv %s1227
            %v1276 = vmul.f32 %v1275, %v1273
            %v1277 = vmul.f32 %v1275, %v1274
            %v1278 = vmul.f32 %v1272, %v1272
            %v1279 = vstv %s1235
            %v1280 = vmul.f32 %v1279, %v1278
            %v1281 = vadd.f32 %v1276, %v1280
            %v1282 = vadd.f32 %v1277, %v1280
            %v1283 = vmul.f32 %v1269, %v1272
            %v1284 = vmul.f32 %v1270, %v1272
            %v1285 = vstv %s1231
            %v1286 = vmul.f32 %v1285, %v1283
            %v1287 = vmul.f32 %v1285, %v1284
            %v1288 = vadd.f32 %v1281, %v1286
            %v1289 = vadd.f32 %v1282, %v1287
            %v1290 = vmul.f32 %v1288, 1.442695
            %v1291 = vpow.pop %v1290
            %v1292 = vmul.f32 %v1289, 1.442695
            %v1293 = vpow.pop %v1292
            %v1294 = vstv %s1239
            %v1295 = vmul.f32 %v1294, %v1291
            %v1296 = vmul.f32 %v1294, %v1293
            %v1297 = vmin.f32 %v1295, 0.99
            %v1298 = vmin.f32 %v1296, 0.99
            %vm1299 = vcmp.gt.f32.partialorder %v1175, 0.0
            %vm1300 = vcmp.gt.f32.partialorder %v1176, 0.0
            %vm1301 = vcmp.le.f32.partialorder %v1288, 0.0
            %vm1302 = vcmp.le.f32.partialorder %v1289, 0.0
            %vm1303 = vmand %vm1299, %vm1301
            %vm1304 = vmand %vm1300, %vm1302
            %vm1305 = vcmp.ge.f32.partialorder %v1297, 0.003921569
            %vm1306 = vcmp.ge.f32.partialorder %v1298, 0.003921569
            %vm1307 = vmand %vm1303, %vm1305
            %vm1308 = vmand %vm1304, %vm1306
            %v1309 = vsub.f32 1.0, %v1297
            %v1310 = vsub.f32 1.0, %v1298
            %v1311 = vmul.f32 %v1175, %v1309
            %v1312 = vmul.f32 %v1176, %v1310
            %vm1313 = vcmp.ge.f32.partialorder %v1311, 0.0001
            %vm1314 = vcmp.ge.f32.partialorder %v1312, 0.0001
            %vm1315 = vmand %vm1307, %vm1313
            %vm1316 = vmand %vm1308, %vm1314
            %vm1317 = vcmp.lt.f32.partialorder %v1311, 0.0001
            %vm1318 = vcmp.lt.f32.partialorder %v1312, 0.0001
            %vm1319 = vmand %vm1307, %vm1317
            %vm1320 = vmand %vm1308, %vm1318
            %v1321 = vmul.f32 %v1297, %v1175
            %v1322 = vmul.f32 %v1298, %v1176
            %v1323 = vsel %vm1315, %v1321, 0.0
            %v1324 = vsel %vm1316, %v1322, 0.0
            %v1325 = vsub.f32 0.0, %v1175
            %v1326 = vsub.f32 0.0, %v1176
            %v1327 = vsel %vm1319, %v1325, %v1175
            %v1328 = vsel %vm1320, %v1326, %v1176
            %v1329 = vsel %vm1315, %v1311, %v1327
            %v1330 = vsel %vm1316, %v1312, %v1328
            %v1331 = vstv %s1243
            %v1332 = vmul.f32 %v1331, %v1323
            %v1333 = vmul.f32 %v1331, %v1324
            %v1334 = vadd.f32 %v1177, %v1332
            %v1335 = vadd.f32 %v1178, %v1333
            %v1336 = vstv %s1247
            %v1337 = vmul.f32 %v1336, %v1323
            %v1338 = vmul.f32 %v1336, %v1324
            %v1339 = vadd.f32 %v1179, %v1337
            %v1340 = vadd.f32 %v1180, %v1338
            %v1341 = vstv %s1251
            %v1342 = vmul.f32 %v1341, %v1323
            %v1343 = vmul.f32 %v1341, %v1324
            %v1344 = vadd.f32 %v1181, %v1342
            %v1345 = vadd.f32 %v1182, %v1343
            %v1346 = vstv %s1255
            %v1347 = vmul.f32 %v1346, %v1323
            %v1348 = vmul.f32 %v1346, %v1324
            %v1349 = vadd.f32 %v1183, %v1347
            %v1350 = vadd.f32 %v1184, %v1348
            %v1351 = vstv %s1259
            %v1352 = vmul.f32 %v1351, %v1323
            %v1353 = vmul.f32 %v1351, %v1324
            %v1354 = vadd.f32 %v1185, %v1352
            %v1355 = vadd.f32 %v1186, %v1353
            %v1356 = vstv %s1263
            %v1357 = vmul.f32 %v1356, %v1323
            %v1358 = vmul.f32 %v1356, %v1324
            %v1359 = vadd.f32 %v1187, %v1357
            %v1360 = vadd.f32 %v1188, %v1358
            %v1361 = vstv %s1267
            %v1362 = vmul.f32 %v1361, %v1323
            %v1363 = vmul.f32 %v1361, %v1324
            %v1364 = vadd.f32 %v1189, %v1362
            %v1365 = vadd.f32 %v1190, %v1363
          $region79: #{tpu_custom_call.1} parent=40 // pred_fallthru
            %v1366 = vphi 0, %v1329
            %v1367 = vphi 0, %v1330
            %v1368 = vphi 0, %v1334
            %v1369 = vphi 0, %v1335
            %v1370 = vphi 0, %v1339
            %v1371 = vphi 0, %v1340
            %v1372 = vphi 0, %v1344
            %v1373 = vphi 0, %v1345
            %v1374 = vphi 0, %v1349
            %v1375 = vphi 0, %v1350
            %v1376 = vphi 0, %v1354
            %v1377 = vphi 0, %v1355
            %v1378 = vphi 0, %v1359
            %v1379 = vphi 0, %v1360
            %v1380 = vphi 0, %v1364
            %v1381 = vphi 0, %v1365
          // Predicated region
          $region80: #{tpu_custom_call.1} parent=40 // pred_check
            %p1382 = pneg %p1216
          $region81: #{tpu_custom_call.1} parent=40 // pred_check_branch
            %1384 = sbr.rel (%p1382) target = $region83
          $region82: #{tpu_custom_call.1} parent=40 // pred_region
            _
          $region83: #{tpu_custom_call.1} parent=40 // pred_fallthru
            %v1385 = vphi %v1366, %v1175
            %v1386 = vphi %v1367, %v1176
            %v1387 = vphi %v1368, %v1177
            %v1388 = vphi %v1369, %v1178
            %v1389 = vphi %v1370, %v1179
            %v1390 = vphi %v1371, %v1180
            %v1391 = vphi %v1372, %v1181
            %v1392 = vphi %v1373, %v1182
            %v1393 = vphi %v1374, %v1183
            %v1394 = vphi %v1375, %v1184
            %v1395 = vphi %v1376, %v1185
            %v1396 = vphi %v1377, %v1186
            %v1397 = vphi %v1378, %v1187
            %v1398 = vphi %v1379, %v1188
            %v1399 = vphi %v1380, %v1189
            %v1400 = vphi %v1381, %v1190
          %s1401 = sadd.s32 %s319, 5
          %s1402 = sshra.s32 %s1401, 7
          %s1403 = sand.u32 %s1401, 127
          %s1404 = sadd.s32 %s1402, %s47
          %s1405 = smul.u32 %s1404, 128
          %s1406 = sshra.s32 %s1401, 7
          %s1407 = sand.u32 %s1401, 127
          %s1408 = sadd.s32 %s1405, %s1407
          %s1409 = sld [smem:[#allocation4 + %s1408]]
          %s1410 = sld [smem:[#allocation5 + %s1409]]
          %s1411 = sshra.s32 %s1409, 7
          %s1412 = sand.u32 %s1409, 127
          %s1413 = sadd.s32 %s1411, 13
          %s1414 = smul.u32 %s1413, 128
          %s1415 = sshra.s32 %s1409, 7
          %s1416 = sand.u32 %s1409, 127
          %s1417 = sadd.s32 %s1414, %s1416
          %s1418 = sld [smem:[#allocation5 + %s1417]]
          %p1419 = scmp.lt.s32.totalorder %s1401, %s317
          %s1420 = sadd.f32 %s1410, %s1418
          %p1421 = scmp.ge.f32.partialorder %s1420, %s302
          %p1422 = pnand %p1419, %p1421
          %p1423 = pneg %p1422
          %s1424 = ssub.f32 %s1410, %s1418
          %p1425 = scmp.le.f32.partialorder %s1424, %s303
          %p1426 = pnand %p1423, %p1425
          %p1427 = pneg %p1426
          // Predicated region
          $region84: #{tpu_custom_call.1} parent=40 // pred_check
            _
          $region85: #{tpu_custom_call.1} parent=40 // pred_check_branch
            %1429 = sbr.rel (%p1426) target = $region87
          $region86: #{tpu_custom_call.1} parent=40 // pred_region
            %s1430 = sadd.s32 %s1411, 1
            %s1431 = smul.u32 %s1430, 128
            %s1432 = sadd.s32 %s1431, %s1416
            %s1433 = sld [smem:[#allocation5 + %s1432]]
            %s1434 = sadd.s32 %s1411, 2
            %s1435 = smul.u32 %s1434, 128
            %s1436 = sadd.s32 %s1435, %s1416
            %s1437 = sld [smem:[#allocation5 + %s1436]]
            %s1438 = sadd.s32 %s1411, 3
            %s1439 = smul.u32 %s1438, 128
            %s1440 = sadd.s32 %s1439, %s1416
            %s1441 = sld [smem:[#allocation5 + %s1440]]
            %s1442 = sadd.s32 %s1411, 4
            %s1443 = smul.u32 %s1442, 128
            %s1444 = sadd.s32 %s1443, %s1416
            %s1445 = sld [smem:[#allocation5 + %s1444]]
            %s1446 = sadd.s32 %s1411, 5
            %s1447 = smul.u32 %s1446, 128
            %s1448 = sadd.s32 %s1447, %s1416
            %s1449 = sld [smem:[#allocation5 + %s1448]]
            %s1450 = sadd.s32 %s1411, 6
            %s1451 = smul.u32 %s1450, 128
            %s1452 = sadd.s32 %s1451, %s1416
            %s1453 = sld [smem:[#allocation5 + %s1452]]
            %s1454 = sadd.s32 %s1411, 7
            %s1455 = smul.u32 %s1454, 128
            %s1456 = sadd.s32 %s1455, %s1416
            %s1457 = sld [smem:[#allocation5 + %s1456]]
            %s1458 = sadd.s32 %s1411, 8
            %s1459 = smul.u32 %s1458, 128
            %s1460 = sadd.s32 %s1459, %s1416
            %s1461 = sld [smem:[#allocation5 + %s1460]]
            %s1462 = sadd.s32 %s1411, 9
            %s1463 = smul.u32 %s1462, 128
            %s1464 = sadd.s32 %s1463, %s1416
            %s1465 = sld [smem:[#allocation5 + %s1464]]
            %s1466 = sadd.s32 %s1411, 10
            %s1467 = smul.u32 %s1466, 128
            %s1468 = sadd.s32 %s1467, %s1416
            %s1469 = sld [smem:[#allocation5 + %s1468]]
            %s1470 = sadd.s32 %s1411, 11
            %s1471 = smul.u32 %s1470, 128
            %s1472 = sadd.s32 %s1471, %s1416
            %s1473 = sld [smem:[#allocation5 + %s1472]]
            %s1474 = sadd.s32 %s1411, 12
            %s1475 = smul.u32 %s1474, 128
            %s1476 = sadd.s32 %s1475, %s1416
            %s1477 = sld [smem:[#allocation5 + %s1476]]
            %v1478 = vstv %s1410
            %v1479 = vsub.f32 %v1478, %v315
            %v1480 = vsub.f32 %v1478, %v316
            %v1481 = vstv %s1433
            %v1482 = vsub.f32 %v1481, %v308
            %v1483 = vmul.f32 %v1479, %v1479
            %v1484 = vmul.f32 %v1480, %v1480
            %v1485 = vstv %s1437
            %v1486 = vmul.f32 %v1485, %v1483
            %v1487 = vmul.f32 %v1485, %v1484
            %v1488 = vmul.f32 %v1482, %v1482
            %v1489 = vstv %s1445
            %v1490 = vmul.f32 %v1489, %v1488
            %v1491 = vadd.f32 %v1486, %v1490
            %v1492 = vadd.f32 %v1487, %v1490
            %v1493 = vmul.f32 %v1479, %v1482
            %v1494 = vmul.f32 %v1480, %v1482
            %v1495 = vstv %s1441
            %v1496 = vmul.f32 %v1495, %v1493
            %v1497 = vmul.f32 %v1495, %v1494
            %v1498 = vadd.f32 %v1491, %v1496
            %v1499 = vadd.f32 %v1492, %v1497
            %v1500 = vmul.f32 %v1498, 1.442695
            %v1501 = vpow.pop %v1500
            %v1502 = vmul.f32 %v1499, 1.442695
            %v1503 = vpow.pop %v1502
            %v1504 = vstv %s1449
            %v1505 = vmul.f32 %v1504, %v1501
            %v1506 = vmul.f32 %v1504, %v1503
            %v1507 = vmin.f32 %v1505, 0.99
            %v1508 = vmin.f32 %v1506, 0.99
            %vm1509 = vcmp.gt.f32.partialorder %v1385, 0.0
            %vm1510 = vcmp.gt.f32.partialorder %v1386, 0.0
            %vm1511 = vcmp.le.f32.partialorder %v1498, 0.0
            %vm1512 = vcmp.le.f32.partialorder %v1499, 0.0
            %vm1513 = vmand %vm1509, %vm1511
            %vm1514 = vmand %vm1510, %vm1512
            %vm1515 = vcmp.ge.f32.partialorder %v1507, 0.003921569
            %vm1516 = vcmp.ge.f32.partialorder %v1508, 0.003921569
            %vm1517 = vmand %vm1513, %vm1515
            %vm1518 = vmand %vm1514, %vm1516
            %v1519 = vsub.f32 1.0, %v1507
            %v1520 = vsub.f32 1.0, %v1508
            %v1521 = vmul.f32 %v1385, %v1519
            %v1522 = vmul.f32 %v1386, %v1520
            %vm1523 = vcmp.ge.f32.partialorder %v1521, 0.0001
            %vm1524 = vcmp.ge.f32.partialorder %v1522, 0.0001
            %vm1525 = vmand %vm1517, %vm1523
            %vm1526 = vmand %vm1518, %vm1524
            %vm1527 = vcmp.lt.f32.partialorder %v1521, 0.0001
            %vm1528 = vcmp.lt.f32.partialorder %v1522, 0.0001
            %vm1529 = vmand %vm1517, %vm1527
            %vm1530 = vmand %vm1518, %vm1528
            %v1531 = vmul.f32 %v1507, %v1385
            %v1532 = vmul.f32 %v1508, %v1386
            %v1533 = vsel %vm1525, %v1531, 0.0
            %v1534 = vsel %vm1526, %v1532, 0.0
            %v1535 = vsub.f32 0.0, %v1385
            %v1536 = vsub.f32 0.0, %v1386
            %v1537 = vsel %vm1529, %v1535, %v1385
            %v1538 = vsel %vm1530, %v1536, %v1386
            %v1539 = vsel %vm1525, %v1521, %v1537
            %v1540 = vsel %vm1526, %v1522, %v1538
            %v1541 = vstv %s1453
            %v1542 = vmul.f32 %v1541, %v1533
            %v1543 = vmul.f32 %v1541, %v1534
            %v1544 = vadd.f32 %v1387, %v1542
            %v1545 = vadd.f32 %v1388, %v1543
            %v1546 = vstv %s1457
            %v1547 = vmul.f32 %v1546, %v1533
            %v1548 = vmul.f32 %v1546, %v1534
            %v1549 = vadd.f32 %v1389, %v1547
            %v1550 = vadd.f32 %v1390, %v1548
            %v1551 = vstv %s1461
            %v1552 = vmul.f32 %v1551, %v1533
            %v1553 = vmul.f32 %v1551, %v1534
            %v1554 = vadd.f32 %v1391, %v1552
            %v1555 = vadd.f32 %v1392, %v1553
            %v1556 = vstv %s1465
            %v1557 = vmul.f32 %v1556, %v1533
            %v1558 = vmul.f32 %v1556, %v1534
            %v1559 = vadd.f32 %v1393, %v1557
            %v1560 = vadd.f32 %v1394, %v1558
            %v1561 = vstv %s1469
            %v1562 = vmul.f32 %v1561, %v1533
            %v1563 = vmul.f32 %v1561, %v1534
            %v1564 = vadd.f32 %v1395, %v1562
            %v1565 = vadd.f32 %v1396, %v1563
            %v1566 = vstv %s1473
            %v1567 = vmul.f32 %v1566, %v1533
            %v1568 = vmul.f32 %v1566, %v1534
            %v1569 = vadd.f32 %v1397, %v1567
            %v1570 = vadd.f32 %v1398, %v1568
            %v1571 = vstv %s1477
            %v1572 = vmul.f32 %v1571, %v1533
            %v1573 = vmul.f32 %v1571, %v1534
            %v1574 = vadd.f32 %v1399, %v1572
            %v1575 = vadd.f32 %v1400, %v1573
          $region87: #{tpu_custom_call.1} parent=40 // pred_fallthru
            %v1576 = vphi 0, %v1539
            %v1577 = vphi 0, %v1540
            %v1578 = vphi 0, %v1544
            %v1579 = vphi 0, %v1545
            %v1580 = vphi 0, %v1549
            %v1581 = vphi 0, %v1550
            %v1582 = vphi 0, %v1554
            %v1583 = vphi 0, %v1555
            %v1584 = vphi 0, %v1559
            %v1585 = vphi 0, %v1560
            %v1586 = vphi 0, %v1564
            %v1587 = vphi 0, %v1565
            %v1588 = vphi 0, %v1569
            %v1589 = vphi 0, %v1570
            %v1590 = vphi 0, %v1574
            %v1591 = vphi 0, %v1575
          // Predicated region
          $region88: #{tpu_custom_call.1} parent=40 // pred_check
            %p1592 = pneg %p1426
          $region89: #{tpu_custom_call.1} parent=40 // pred_check_branch
            %1594 = sbr.rel (%p1592) target = $region91
          $region90: #{tpu_custom_call.1} parent=40 // pred_region
            _
          $region91: #{tpu_custom_call.1} parent=40 // pred_fallthru
            %v1595 = vphi %v1576, %v1385
            %v1596 = vphi %v1577, %v1386
            %v1597 = vphi %v1578, %v1387
            %v1598 = vphi %v1579, %v1388
            %v1599 = vphi %v1580, %v1389
            %v1600 = vphi %v1581, %v1390
            %v1601 = vphi %v1582, %v1391
            %v1602 = vphi %v1583, %v1392
            %v1603 = vphi %v1584, %v1393
            %v1604 = vphi %v1585, %v1394
            %v1605 = vphi %v1586, %v1395
            %v1606 = vphi %v1587, %v1396
            %v1607 = vphi %v1588, %v1397
            %v1608 = vphi %v1589, %v1398
            %v1609 = vphi %v1590, %v1399
            %v1610 = vphi %v1591, %v1400
          %s1611 = sadd.s32 %s319, 6
          %s1612 = sshra.s32 %s1611, 7
          %s1613 = sand.u32 %s1611, 127
          %s1614 = sadd.s32 %s1612, %s47
          %s1615 = smul.u32 %s1614, 128
          %s1616 = sshra.s32 %s1611, 7
          %s1617 = sand.u32 %s1611, 127
          %s1618 = sadd.s32 %s1615, %s1617
          %s1619 = sld [smem:[#allocation4 + %s1618]]
          %s1620 = sld [smem:[#allocation5 + %s1619]]
          %s1621 = sshra.s32 %s1619, 7
          %s1622 = sand.u32 %s1619, 127
          %s1623 = sadd.s32 %s1621, 13
          %s1624 = smul.u32 %s1623, 128
          %s1625 = sshra.s32 %s1619, 7
          %s1626 = sand.u32 %s1619, 127
          %s1627 = sadd.s32 %s1624, %s1626
          %s1628 = sld [smem:[#allocation5 + %s1627]]
          %p1629 = scmp.lt.s32.totalorder %s1611, %s317
          %s1630 = sadd.f32 %s1620, %s1628
          %p1631 = scmp.ge.f32.partialorder %s1630, %s302
          %p1632 = pnand %p1629, %p1631
          %p1633 = pneg %p1632
          %s1634 = ssub.f32 %s1620, %s1628
          %p1635 = scmp.le.f32.partialorder %s1634, %s303
          %p1636 = pnand %p1633, %p1635
          %p1637 = pneg %p1636
          // Predicated region
          $region92: #{tpu_custom_call.1} parent=40 // pred_check
            _
          $region93: #{tpu_custom_call.1} parent=40 // pred_check_branch
            %1639 = sbr.rel (%p1636) target = $region95
          $region94: #{tpu_custom_call.1} parent=40 // pred_region
            %s1640 = sadd.s32 %s1621, 1
            %s1641 = smul.u32 %s1640, 128
            %s1642 = sadd.s32 %s1641, %s1626
            %s1643 = sld [smem:[#allocation5 + %s1642]]
            %s1644 = sadd.s32 %s1621, 2
            %s1645 = smul.u32 %s1644, 128
            %s1646 = sadd.s32 %s1645, %s1626
            %s1647 = sld [smem:[#allocation5 + %s1646]]
            %s1648 = sadd.s32 %s1621, 3
            %s1649 = smul.u32 %s1648, 128
            %s1650 = sadd.s32 %s1649, %s1626
            %s1651 = sld [smem:[#allocation5 + %s1650]]
            %s1652 = sadd.s32 %s1621, 4
            %s1653 = smul.u32 %s1652, 128
            %s1654 = sadd.s32 %s1653, %s1626
            %s1655 = sld [smem:[#allocation5 + %s1654]]
            %s1656 = sadd.s32 %s1621, 5
            %s1657 = smul.u32 %s1656, 128
            %s1658 = sadd.s32 %s1657, %s1626
            %s1659 = sld [smem:[#allocation5 + %s1658]]
            %s1660 = sadd.s32 %s1621, 6
            %s1661 = smul.u32 %s1660, 128
            %s1662 = sadd.s32 %s1661, %s1626
            %s1663 = sld [smem:[#allocation5 + %s1662]]
            %s1664 = sadd.s32 %s1621, 7
            %s1665 = smul.u32 %s1664, 128
            %s1666 = sadd.s32 %s1665, %s1626
            %s1667 = sld [smem:[#allocation5 + %s1666]]
            %s1668 = sadd.s32 %s1621, 8
            %s1669 = smul.u32 %s1668, 128
            %s1670 = sadd.s32 %s1669, %s1626
            %s1671 = sld [smem:[#allocation5 + %s1670]]
            %s1672 = sadd.s32 %s1621, 9
            %s1673 = smul.u32 %s1672, 128
            %s1674 = sadd.s32 %s1673, %s1626
            %s1675 = sld [smem:[#allocation5 + %s1674]]
            %s1676 = sadd.s32 %s1621, 10
            %s1677 = smul.u32 %s1676, 128
            %s1678 = sadd.s32 %s1677, %s1626
            %s1679 = sld [smem:[#allocation5 + %s1678]]
            %s1680 = sadd.s32 %s1621, 11
            %s1681 = smul.u32 %s1680, 128
            %s1682 = sadd.s32 %s1681, %s1626
            %s1683 = sld [smem:[#allocation5 + %s1682]]
            %s1684 = sadd.s32 %s1621, 12
            %s1685 = smul.u32 %s1684, 128
            %s1686 = sadd.s32 %s1685, %s1626
            %s1687 = sld [smem:[#allocation5 + %s1686]]
            %v1688 = vstv %s1620
            %v1689 = vsub.f32 %v1688, %v315
            %v1690 = vsub.f32 %v1688, %v316
            %v1691 = vstv %s1643
            %v1692 = vsub.f32 %v1691, %v308
            %v1693 = vmul.f32 %v1689, %v1689
            %v1694 = vmul.f32 %v1690, %v1690
            %v1695 = vstv %s1647
            %v1696 = vmul.f32 %v1695, %v1693
            %v1697 = vmul.f32 %v1695, %v1694
            %v1698 = vmul.f32 %v1692, %v1692
            %v1699 = vstv %s1655
            %v1700 = vmul.f32 %v1699, %v1698
            %v1701 = vadd.f32 %v1696, %v1700
            %v1702 = vadd.f32 %v1697, %v1700
            %v1703 = vmul.f32 %v1689, %v1692
            %v1704 = vmul.f32 %v1690, %v1692
            %v1705 = vstv %s1651
            %v1706 = vmul.f32 %v1705, %v1703
            %v1707 = vmul.f32 %v1705, %v1704
            %v1708 = vadd.f32 %v1701, %v1706
            %v1709 = vadd.f32 %v1702, %v1707
            %v1710 = vmul.f32 %v1708, 1.442695
            %v1711 = vpow.pop %v1710
            %v1712 = vmul.f32 %v1709, 1.442695
            %v1713 = vpow.pop %v1712
            %v1714 = vstv %s1659
            %v1715 = vmul.f32 %v1714, %v1711
            %v1716 = vmul.f32 %v1714, %v1713
            %v1717 = vmin.f32 %v1715, 0.99
            %v1718 = vmin.f32 %v1716, 0.99
            %vm1719 = vcmp.gt.f32.partialorder %v1595, 0.0
            %vm1720 = vcmp.gt.f32.partialorder %v1596, 0.0
            %vm1721 = vcmp.le.f32.partialorder %v1708, 0.0
            %vm1722 = vcmp.le.f32.partialorder %v1709, 0.0
            %vm1723 = vmand %vm1719, %vm1721
            %vm1724 = vmand %vm1720, %vm1722
            %vm1725 = vcmp.ge.f32.partialorder %v1717, 0.003921569
            %vm1726 = vcmp.ge.f32.partialorder %v1718, 0.003921569
            %vm1727 = vmand %vm1723, %vm1725
            %vm1728 = vmand %vm1724, %vm1726
            %v1729 = vsub.f32 1.0, %v1717
            %v1730 = vsub.f32 1.0, %v1718
            %v1731 = vmul.f32 %v1595, %v1729
            %v1732 = vmul.f32 %v1596, %v1730
            %vm1733 = vcmp.ge.f32.partialorder %v1731, 0.0001
            %vm1734 = vcmp.ge.f32.partialorder %v1732, 0.0001
            %vm1735 = vmand %vm1727, %vm1733
            %vm1736 = vmand %vm1728, %vm1734
            %vm1737 = vcmp.lt.f32.partialorder %v1731, 0.0001
            %vm1738 = vcmp.lt.f32.partialorder %v1732, 0.0001
            %vm1739 = vmand %vm1727, %vm1737
            %vm1740 = vmand %vm1728, %vm1738
            %v1741 = vmul.f32 %v1717, %v1595
            %v1742 = vmul.f32 %v1718, %v1596
            %v1743 = vsel %vm1735, %v1741, 0.0
            %v1744 = vsel %vm1736, %v1742, 0.0
            %v1745 = vsub.f32 0.0, %v1595
            %v1746 = vsub.f32 0.0, %v1596
            %v1747 = vsel %vm1739, %v1745, %v1595
            %v1748 = vsel %vm1740, %v1746, %v1596
            %v1749 = vsel %vm1735, %v1731, %v1747
            %v1750 = vsel %vm1736, %v1732, %v1748
            %v1751 = vstv %s1663
            %v1752 = vmul.f32 %v1751, %v1743
            %v1753 = vmul.f32 %v1751, %v1744
            %v1754 = vadd.f32 %v1597, %v1752
            %v1755 = vadd.f32 %v1598, %v1753
            %v1756 = vstv %s1667
            %v1757 = vmul.f32 %v1756, %v1743
            %v1758 = vmul.f32 %v1756, %v1744
            %v1759 = vadd.f32 %v1599, %v1757
            %v1760 = vadd.f32 %v1600, %v1758
            %v1761 = vstv %s1671
            %v1762 = vmul.f32 %v1761, %v1743
            %v1763 = vmul.f32 %v1761, %v1744
            %v1764 = vadd.f32 %v1601, %v1762
            %v1765 = vadd.f32 %v1602, %v1763
            %v1766 = vstv %s1675
            %v1767 = vmul.f32 %v1766, %v1743
            %v1768 = vmul.f32 %v1766, %v1744
            %v1769 = vadd.f32 %v1603, %v1767
            %v1770 = vadd.f32 %v1604, %v1768
            %v1771 = vstv %s1679
            %v1772 = vmul.f32 %v1771, %v1743
            %v1773 = vmul.f32 %v1771, %v1744
            %v1774 = vadd.f32 %v1605, %v1772
            %v1775 = vadd.f32 %v1606, %v1773
            %v1776 = vstv %s1683
            %v1777 = vmul.f32 %v1776, %v1743
            %v1778 = vmul.f32 %v1776, %v1744
            %v1779 = vadd.f32 %v1607, %v1777
            %v1780 = vadd.f32 %v1608, %v1778
            %v1781 = vstv %s1687
            %v1782 = vmul.f32 %v1781, %v1743
            %v1783 = vmul.f32 %v1781, %v1744
            %v1784 = vadd.f32 %v1609, %v1782
            %v1785 = vadd.f32 %v1610, %v1783
          $region95: #{tpu_custom_call.1} parent=40 // pred_fallthru
            %v1786 = vphi 0, %v1749
            %v1787 = vphi 0, %v1750
            %v1788 = vphi 0, %v1754
            %v1789 = vphi 0, %v1755
            %v1790 = vphi 0, %v1759
            %v1791 = vphi 0, %v1760
            %v1792 = vphi 0, %v1764
            %v1793 = vphi 0, %v1765
            %v1794 = vphi 0, %v1769
            %v1795 = vphi 0, %v1770
            %v1796 = vphi 0, %v1774
            %v1797 = vphi 0, %v1775
            %v1798 = vphi 0, %v1779
            %v1799 = vphi 0, %v1780
            %v1800 = vphi 0, %v1784
            %v1801 = vphi 0, %v1785
          // Predicated region
          $region96: #{tpu_custom_call.1} parent=40 // pred_check
            %p1802 = pneg %p1636
          $region97: #{tpu_custom_call.1} parent=40 // pred_check_branch
            %1804 = sbr.rel (%p1802) target = $region99
          $region98: #{tpu_custom_call.1} parent=40 // pred_region
            _
          $region99: #{tpu_custom_call.1} parent=40 // pred_fallthru
            %v1805 = vphi %v1786, %v1595
            %v1806 = vphi %v1787, %v1596
            %v1807 = vphi %v1788, %v1597
            %v1808 = vphi %v1789, %v1598
            %v1809 = vphi %v1790, %v1599
            %v1810 = vphi %v1791, %v1600
            %v1811 = vphi %v1792, %v1601
            %v1812 = vphi %v1793, %v1602
            %v1813 = vphi %v1794, %v1603
            %v1814 = vphi %v1795, %v1604
            %v1815 = vphi %v1796, %v1605
            %v1816 = vphi %v1797, %v1606
            %v1817 = vphi %v1798, %v1607
            %v1818 = vphi %v1799, %v1608
            %v1819 = vphi %v1800, %v1609
            %v1820 = vphi %v1801, %v1610
          %s1821 = sadd.s32 %s319, 7
          %s1822 = sshra.s32 %s1821, 7
          %s1823 = sand.u32 %s1821, 127
          %s1824 = sadd.s32 %s1822, %s47
          %s1825 = smul.u32 %s1824, 128
          %s1826 = sshra.s32 %s1821, 7
          %s1827 = sand.u32 %s1821, 127
          %s1828 = sadd.s32 %s1825, %s1827
          %s1829 = sld [smem:[#allocation4 + %s1828]]
          %s1830 = sld [smem:[#allocation5 + %s1829]]
          %s1831 = sshra.s32 %s1829, 7
          %s1832 = sand.u32 %s1829, 127
          %s1833 = sadd.s32 %s1831, 13
          %s1834 = smul.u32 %s1833, 128
          %s1835 = sshra.s32 %s1829, 7
          %s1836 = sand.u32 %s1829, 127
          %s1837 = sadd.s32 %s1834, %s1836
          %s1838 = sld [smem:[#allocation5 + %s1837]]
          %p1839 = scmp.lt.s32.totalorder %s1821, %s317
          %s1840 = sadd.f32 %s1830, %s1838
          %p1841 = scmp.ge.f32.partialorder %s1840, %s302
          %p1842 = pnand %p1839, %p1841
          %p1843 = pneg %p1842
          %s1844 = ssub.f32 %s1830, %s1838
          %p1845 = scmp.le.f32.partialorder %s1844, %s303
          %p1846 = pnand %p1843, %p1845
          %p1847 = pneg %p1846
          // Predicated region
          $region100: #{tpu_custom_call.1} parent=40 // pred_check
            _
          $region101: #{tpu_custom_call.1} parent=40 // pred_check_branch
            %1849 = sbr.rel (%p1846) target = $region103
          $region102: #{tpu_custom_call.1} parent=40 // pred_region
            %s1850 = sadd.s32 %s1831, 1
            %s1851 = smul.u32 %s1850, 128
            %s1852 = sadd.s32 %s1851, %s1836
            %s1853 = sld [smem:[#allocation5 + %s1852]]
            %s1854 = sadd.s32 %s1831, 2
            %s1855 = smul.u32 %s1854, 128
            %s1856 = sadd.s32 %s1855, %s1836
            %s1857 = sld [smem:[#allocation5 + %s1856]]
            %s1858 = sadd.s32 %s1831, 3
            %s1859 = smul.u32 %s1858, 128
            %s1860 = sadd.s32 %s1859, %s1836
            %s1861 = sld [smem:[#allocation5 + %s1860]]
            %s1862 = sadd.s32 %s1831, 4
            %s1863 = smul.u32 %s1862, 128
            %s1864 = sadd.s32 %s1863, %s1836
            %s1865 = sld [smem:[#allocation5 + %s1864]]
            %s1866 = sadd.s32 %s1831, 5
            %s1867 = smul.u32 %s1866, 128
            %s1868 = sadd.s32 %s1867, %s1836
            %s1869 = sld [smem:[#allocation5 + %s1868]]
            %s1870 = sadd.s32 %s1831, 6
            %s1871 = smul.u32 %s1870, 128
            %s1872 = sadd.s32 %s1871, %s1836
            %s1873 = sld [smem:[#allocation5 + %s1872]]
            %s1874 = sadd.s32 %s1831, 7
            %s1875 = smul.u32 %s1874, 128
            %s1876 = sadd.s32 %s1875, %s1836
            %s1877 = sld [smem:[#allocation5 + %s1876]]
            %s1878 = sadd.s32 %s1831, 8
            %s1879 = smul.u32 %s1878, 128
            %s1880 = sadd.s32 %s1879, %s1836
            %s1881 = sld [smem:[#allocation5 + %s1880]]
            %s1882 = sadd.s32 %s1831, 9
            %s1883 = smul.u32 %s1882, 128
            %s1884 = sadd.s32 %s1883, %s1836
            %s1885 = sld [smem:[#allocation5 + %s1884]]
            %s1886 = sadd.s32 %s1831, 10
            %s1887 = smul.u32 %s1886, 128
            %s1888 = sadd.s32 %s1887, %s1836
            %s1889 = sld [smem:[#allocation5 + %s1888]]
            %s1890 = sadd.s32 %s1831, 11
            %s1891 = smul.u32 %s1890, 128
            %s1892 = sadd.s32 %s1891, %s1836
            %s1893 = sld [smem:[#allocation5 + %s1892]]
            %s1894 = sadd.s32 %s1831, 12
            %s1895 = smul.u32 %s1894, 128
            %s1896 = sadd.s32 %s1895, %s1836
            %s1897 = sld [smem:[#allocation5 + %s1896]]
            %v1898 = vstv %s1830
            %v1899 = vsub.f32 %v1898, %v315
            %v1900 = vsub.f32 %v1898, %v316
            %v1901 = vstv %s1853
            %v1902 = vsub.f32 %v1901, %v308
            %v1903 = vmul.f32 %v1899, %v1899
            %v1904 = vmul.f32 %v1900, %v1900
            %v1905 = vstv %s1857
            %v1906 = vmul.f32 %v1905, %v1903
            %v1907 = vmul.f32 %v1905, %v1904
            %v1908 = vmul.f32 %v1902, %v1902
            %v1909 = vstv %s1865
            %v1910 = vmul.f32 %v1909, %v1908
            %v1911 = vadd.f32 %v1906, %v1910
            %v1912 = vadd.f32 %v1907, %v1910
            %v1913 = vmul.f32 %v1899, %v1902
            %v1914 = vmul.f32 %v1900, %v1902
            %v1915 = vstv %s1861
            %v1916 = vmul.f32 %v1915, %v1913
            %v1917 = vmul.f32 %v1915, %v1914
            %v1918 = vadd.f32 %v1911, %v1916
            %v1919 = vadd.f32 %v1912, %v1917
            %v1920 = vmul.f32 %v1918, 1.442695
            %v1921 = vpow.pop %v1920
            %v1922 = vmul.f32 %v1919, 1.442695
            %v1923 = vpow.pop %v1922
            %v1924 = vstv %s1869
            %v1925 = vmul.f32 %v1924, %v1921
            %v1926 = vmul.f32 %v1924, %v1923
            %v1927 = vmin.f32 %v1925, 0.99
            %v1928 = vmin.f32 %v1926, 0.99
            %vm1929 = vcmp.gt.f32.partialorder %v1805, 0.0
            %vm1930 = vcmp.gt.f32.partialorder %v1806, 0.0
            %vm1931 = vcmp.le.f32.partialorder %v1918, 0.0
            %vm1932 = vcmp.le.f32.partialorder %v1919, 0.0
            %vm1933 = vmand %vm1929, %vm1931
            %vm1934 = vmand %vm1930, %vm1932
            %vm1935 = vcmp.ge.f32.partialorder %v1927, 0.003921569
            %vm1936 = vcmp.ge.f32.partialorder %v1928, 0.003921569
            %vm1937 = vmand %vm1933, %vm1935
            %vm1938 = vmand %vm1934, %vm1936
            %v1939 = vsub.f32 1.0, %v1927
            %v1940 = vsub.f32 1.0, %v1928
            %v1941 = vmul.f32 %v1805, %v1939
            %v1942 = vmul.f32 %v1806, %v1940
            %vm1943 = vcmp.ge.f32.partialorder %v1941, 0.0001
            %vm1944 = vcmp.ge.f32.partialorder %v1942, 0.0001
            %vm1945 = vmand %vm1937, %vm1943
            %vm1946 = vmand %vm1938, %vm1944
            %vm1947 = vcmp.lt.f32.partialorder %v1941, 0.0001
            %vm1948 = vcmp.lt.f32.partialorder %v1942, 0.0001
            %vm1949 = vmand %vm1937, %vm1947
            %vm1950 = vmand %vm1938, %vm1948
            %v1951 = vmul.f32 %v1927, %v1805
            %v1952 = vmul.f32 %v1928, %v1806
            %v1953 = vsel %vm1945, %v1951, 0.0
            %v1954 = vsel %vm1946, %v1952, 0.0
            %v1955 = vsub.f32 0.0, %v1805
            %v1956 = vsub.f32 0.0, %v1806
            %v1957 = vsel %vm1949, %v1955, %v1805
            %v1958 = vsel %vm1950, %v1956, %v1806
            %v1959 = vsel %vm1945, %v1941, %v1957
            %v1960 = vsel %vm1946, %v1942, %v1958
            %v1961 = vstv %s1873
            %v1962 = vmul.f32 %v1961, %v1953
            %v1963 = vmul.f32 %v1961, %v1954
            %v1964 = vadd.f32 %v1807, %v1962
            %v1965 = vadd.f32 %v1808, %v1963
            %v1966 = vstv %s1877
            %v1967 = vmul.f32 %v1966, %v1953
            %v1968 = vmul.f32 %v1966, %v1954
            %v1969 = vadd.f32 %v1809, %v1967
            %v1970 = vadd.f32 %v1810, %v1968
            %v1971 = vstv %s1881
            %v1972 = vmul.f32 %v1971, %v1953
            %v1973 = vmul.f32 %v1971, %v1954
            %v1974 = vadd.f32 %v1811, %v1972
            %v1975 = vadd.f32 %v1812, %v1973
            %v1976 = vstv %s1885
            %v1977 = vmul.f32 %v1976, %v1953
            %v1978 = vmul.f32 %v1976, %v1954
            %v1979 = vadd.f32 %v1813, %v1977
            %v1980 = vadd.f32 %v1814, %v1978
            %v1981 = vstv %s1889
            %v1982 = vmul.f32 %v1981, %v1953
            %v1983 = vmul.f32 %v1981, %v1954
            %v1984 = vadd.f32 %v1815, %v1982
            %v1985 = vadd.f32 %v1816, %v1983
            %v1986 = vstv %s1893
            %v1987 = vmul.f32 %v1986, %v1953
            %v1988 = vmul.f32 %v1986, %v1954
            %v1989 = vadd.f32 %v1817, %v1987
            %v1990 = vadd.f32 %v1818, %v1988
            %v1991 = vstv %s1897
            %v1992 = vmul.f32 %v1991, %v1953
            %v1993 = vmul.f32 %v1991, %v1954
            %v1994 = vadd.f32 %v1819, %v1992
            %v1995 = vadd.f32 %v1820, %v1993
          $region103: #{tpu_custom_call.1} parent=40 // pred_fallthru
            %v1996 = vphi 0, %v1959
            %v1997 = vphi 0, %v1960
            %v1998 = vphi 0, %v1964
            %v1999 = vphi 0, %v1965
            %v2000 = vphi 0, %v1969
            %v2001 = vphi 0, %v1970
            %v2002 = vphi 0, %v1974
            %v2003 = vphi 0, %v1975
            %v2004 = vphi 0, %v1979
            %v2005 = vphi 0, %v1980
            %v2006 = vphi 0, %v1984
            %v2007 = vphi 0, %v1985
            %v2008 = vphi 0, %v1989
            %v2009 = vphi 0, %v1990
            %v2010 = vphi 0, %v1994
            %v2011 = vphi 0, %v1995
          // Predicated region
          $region104: #{tpu_custom_call.1} parent=40 // pred_check
            %p2012 = pneg %p1846
          $region105: #{tpu_custom_call.1} parent=40 // pred_check_branch
            %2014 = sbr.rel (%p2012) target = $region107
          $region106: #{tpu_custom_call.1} parent=40 // pred_region
            _
          $region107: #{tpu_custom_call.1} parent=40 // pred_fallthru
            %v2015 = vphi %v1996, %v1805
            %v2016 = vphi %v1997, %v1806
            %v2017 = vphi %v1998, %v1807
            %v2018 = vphi %v1999, %v1808
            %v2019 = vphi %v2000, %v1809
            %v2020 = vphi %v2001, %v1810
            %v2021 = vphi %v2002, %v1811
            %v2022 = vphi %v2003, %v1812
            %v2023 = vphi %v2004, %v1813
            %v2024 = vphi %v2005, %v1814
            %v2025 = vphi %v2006, %v1815
            %v2026 = vphi %v2007, %v1816
            %v2027 = vphi %v2008, %v1817
            %v2028 = vphi %v2009, %v1818
            %v2029 = vphi %v2010, %v1819
            %v2030 = vphi %v2011, %v1820
          %s2031 = sadd.s32 %s319, 8
        $region41: #{tpu_custom_call.1} parent=27 // loop_footer
          _
        $region42: #{tpu_custom_call.1} parent=27 // loop_footer_branch
          %318 = sbr.rel target = $region38
        $region43: #{tpu_custom_call.1} parent=27 // loop_exit
          _
        %v2032 = vand.u32 2147483647, %v320
        %v2033 = vand.u32 2147483647, %v321
        %s2034 = sld [smem:[#allocation9]]
        %v2035 = vstv %s2034
        %v2036 = vmul.f32 %v2032, %v2035
        %v2037 = vmul.f32 %v2033, %v2035
        %v2038 = vadd.f32 %v322, %v2036
        %v2039 = vadd.f32 %v323, %v2037
        %2040 = vst [vmem:[%s273] sm:$0xff] %v2038
        %2041 = vst [vmem:[%s273 + $0x8] sm:$0xff] %v2039
        %s2042 = sld [smem:[#allocation9 + $0x1]]
        %v2043 = vstv %s2042
        %v2044 = vmul.f32 %v2032, %v2043
        %v2045 = vmul.f32 %v2033, %v2043
        %v2046 = vadd.f32 %v324, %v2044
        %v2047 = vadd.f32 %v325, %v2045
        %s2048 = scalar_lea.vmem %s273, 16 [#allocation10]
        %2049 = vst [vmem:[%s2048] sm:$0xff] %v2046
        %2050 = vst [vmem:[%s2048 + $0x8] sm:$0xff] %v2047
        %s2051 = sld [smem:[#allocation9 + $0x2]]
        %v2052 = vstv %s2051
        %v2053 = vmul.f32 %v2032, %v2052
        %v2054 = vmul.f32 %v2033, %v2052
        %v2055 = vadd.f32 %v326, %v2053
        %v2056 = vadd.f32 %v327, %v2054
        %s2057 = scalar_lea.vmem %s273, 32 [#allocation10]
        %2058 = vst [vmem:[%s2057] sm:$0xff] %v2055
        %2059 = vst [vmem:[%s2057 + $0x8] sm:$0xff] %v2056
        %2060 = vst [vmem:[%s280] sm:$0xff] %v328
        %2061 = vst [vmem:[%s280 + $0x8] sm:$0xff] %v329
        %2062 = vst [vmem:[%s287] sm:$0xff] %v330
        %2063 = vst [vmem:[%s287 + $0x8] sm:$0xff] %v331
        %s2064 = scalar_lea.vmem %s287, 16 [#allocation13]
        %2065 = vst [vmem:[%s2064] sm:$0xff] %v332
        %2066 = vst [vmem:[%s2064 + $0x8] sm:$0xff] %v333
        %s2067 = scalar_lea.vmem %s287, 32 [#allocation13]
        %2068 = vst [vmem:[%s2067] sm:$0xff] %v334
        %2069 = vst [vmem:[%s2067 + $0x8] sm:$0xff] %v335
        %v2070 = vsub.f32 1.0, %v2032
        %v2071 = vsub.f32 1.0, %v2033
        %2072 = vst [vmem:[%s294] sm:$0xff] %v2070
        %2073 = vst [vmem:[%s294 + $0x8] sm:$0xff] %v2071
        %s2074 = sand.u32 %s107, 1
        %s2075 = scalar_lea.sflag [#allocation6], %s2074
        %s2076 = sand.u32 %s107, 1
        %s2077 = smul.addr %s2076, 48
        %s2078 = scalar_lea.vmem [#allocation10], %s2077
        %s2079 = sand.u32 %s43, 1
        %s2080 = scalar_lea.sflag [#allocation12], %s2079
        %s2081 = sand.u32 %s135, 1
        %s2082 = smul.addr %s2081, 16
        %s2083 = scalar_lea.vmem [#allocation11], %s2082
        %s2084 = sand.u32 %s43, 1
        %s2085 = scalar_lea.sflag [#allocation12], %s2084
        %s2086 = sand.u32 %s163, 1
        %s2087 = smul.addr %s2086, 48
        %s2088 = scalar_lea.vmem [#allocation13], %s2087
        %s2089 = sand.u32 %s191, 1
        %s2090 = scalar_lea.sflag [#allocation15], %s2089
        %s2091 = sand.u32 %s191, 1
        %s2092 = smul.addr %s2091, 16
        %s2093 = scalar_lea.vmem [#allocation14], %s2092
        // Predicated region
        $region108: #{tpu_custom_call.1} parent=27 // pred_check
          %p2094 = pneg %p117
        $region109: #{tpu_custom_call.1} parent=27 // pred_check_branch
          %2096 = sbr.rel (%p2094) target = $region111
        $region110: #{tpu_custom_call.1} parent=27 // pred_region
          %s2097 = smul.u32 2, %s48
          %2099 = vsyncadd %s2075, 0
          %s2100 = smul.addr %s47, 2
          %s2101 = sadd.s32 %s2097, %s2100
          %s2102 = smul.addr %s2101, 8
          %s2103 = scalar_lea.hbm %s4, %s2102
          %s2104 = sshll.u32 %s2078, 4
          %s2105 = int_to_ptr.vmem [resolvable:$true] %s2104
          %s2106 = sshll.u32 %s2103, 4
          %s2107 = int_to_ptr.hbm [resolvable:$true] %s2106
          %2112 = dma.vmem_to_hbm [thread:$0]  %s2105, 768, %s2107, %s2075, 256, 1024, 16
        $region111: #{tpu_custom_call.1} parent=27 // pred_fallthru
          _
        // Predicated region
        $region112: #{tpu_custom_call.1} parent=27 // pred_check
          %p2113 = pneg %p145
        $region113: #{tpu_custom_call.1} parent=27 // pred_check_branch
          %2115 = sbr.rel (%p2113) target = $region115
        $region114: #{tpu_custom_call.1} parent=27 // pred_region
          %s2116 = smul.u32 2, %s48
          %2118 = vsyncadd %s2080, 0
          %s2119 = smul.addr %s47, 2
          %s2120 = sadd.s32 %s2116, %s2119
          %s2121 = smul.addr %s2120, 8
          %s2122 = scalar_lea.hbm %s5, %s2121
          %s2124 = sshll.u32 %s2083, 4
          %s2125 = int_to_ptr.vmem [resolvable:$true] %s2124
          %s2126 = sshll.u32 %s2122, 4
          %s2127 = int_to_ptr.hbm [resolvable:$true] %s2126
          %2129 = dma.vmem_to_hbm [thread:$0]  %s2125, 256, %s2127, %s2080
        $region115: #{tpu_custom_call.1} parent=27 // pred_fallthru
          _
        // Predicated region
        $region116: #{tpu_custom_call.1} parent=27 // pred_check
          %p2130 = pneg %p173
        $region117: #{tpu_custom_call.1} parent=27 // pred_check_branch
          %2132 = sbr.rel (%p2130) target = $region119
        $region118: #{tpu_custom_call.1} parent=27 // pred_region
          %s2133 = smul.u32 2, %s48
          %2135 = vsyncadd %s2085, 0
          %s2136 = smul.addr %s47, 2
          %s2137 = sadd.s32 %s2133, %s2136
          %s2138 = smul.addr %s2137, 8
          %s2139 = scalar_lea.hbm %s6, %s2138
          %s2140 = sshll.u32 %s2088, 4
          %s2141 = int_to_ptr.vmem [resolvable:$true] %s2140
          %s2142 = sshll.u32 %s2139, 4
          %s2143 = int_to_ptr.hbm [resolvable:$true] %s2142
          %2148 = dma.vmem_to_hbm [thread:$0]  %s2141, 768, %s2143, %s2085, 256, 1024, 16
        $region119: #{tpu_custom_call.1} parent=27 // pred_fallthru
          _
        // Predicated region
        $region120: #{tpu_custom_call.1} parent=27 // pred_check
          %p2149 = pneg %p201
        $region121: #{tpu_custom_call.1} parent=27 // pred_check_branch
          %2151 = sbr.rel (%p2149) target = $region123
        $region122: #{tpu_custom_call.1} parent=27 // pred_region
          %s2152 = smul.u32 2, %s48
          %2154 = vsyncadd %s2090, 0
          %s2155 = smul.addr %s47, 2
          %s2156 = sadd.s32 %s2152, %s2155
          %s2157 = smul.addr %s2156, 8
          %s2158 = scalar_lea.hbm %s7, %s2157
          %s2160 = sshll.u32 %s2093, 4
          %s2161 = int_to_ptr.vmem [resolvable:$true] %s2160
          %s2162 = sshll.u32 %s2158, 4
          %s2163 = int_to_ptr.hbm [resolvable:$true] %s2162
          %2165 = dma.vmem_to_hbm [thread:$0]  %s2161, 256, %s2163, %s2090
        $region123: #{tpu_custom_call.1} parent=27 // pred_fallthru
          _
      $region28: #{tpu_custom_call.1} parent=5 // pred_fallthru
        _
      %p2166 = scmp.le.s32.totalorder 2, %s38
      // Predicated region
      $region124: #{tpu_custom_call.1} parent=5 // pred_check
        %p2167 = pneg %p2166
      $region125: #{tpu_custom_call.1} parent=5 // pred_check_branch
        %2169 = sbr.rel (%p2167) target = $region127
      $region126: #{tpu_custom_call.1} parent=5 // pred_region
        %s2170 = ssub.s32 %s38, 2
        // Predicated region
        $region128: #{tpu_custom_call.1} parent=126 // pred_check
          %p2171 = pneg %p123
        $region129: #{tpu_custom_call.1} parent=126 // pred_check_branch
          %2173 = sbr.rel (%p2171) target = $region131
        $region130: #{tpu_custom_call.1} parent=126 // pred_region
          %s2174 = sand.u32 %s108, 1
          %s2175 = scalar_lea.sflag [#allocation6], %s2174
          %s2176 = sand.u32 %s108, 1
          %s2177 = smul.addr %s2176, 48
          %s2178 = scalar_lea.vmem [#allocation10], %s2177
          %2180 = dma.done %s2175, 768
        $region131: #{tpu_custom_call.1} parent=126 // pred_fallthru
          _
        // Predicated region
        $region132: #{tpu_custom_call.1} parent=126 // pred_check
          %p2181 = pneg %p151
        $region133: #{tpu_custom_call.1} parent=126 // pred_check_branch
          %2183 = sbr.rel (%p2181) target = $region135
        $region134: #{tpu_custom_call.1} parent=126 // pred_region
          %s2184 = sand.u32 %s44, 1
          %s2185 = scalar_lea.sflag [#allocation12], %s2184
          %s2186 = sand.u32 %s136, 1
          %s2187 = smul.addr %s2186, 16
          %s2188 = scalar_lea.vmem [#allocation11], %s2187
          %2190 = dma.done %s2185, 256
        $region135: #{tpu_custom_call.1} parent=126 // pred_fallthru
          _
        // Predicated region
        $region136: #{tpu_custom_call.1} parent=126 // pred_check
          %p2191 = pneg %p179
        $region137: #{tpu_custom_call.1} parent=126 // pred_check_branch
          %2193 = sbr.rel (%p2191) target = $region139
        $region138: #{tpu_custom_call.1} parent=126 // pred_region
          %s2194 = sand.u32 %s44, 1
          %s2195 = scalar_lea.sflag [#allocation12], %s2194
          %s2196 = sand.u32 %s164, 1
          %s2197 = smul.addr %s2196, 48
          %s2198 = scalar_lea.vmem [#allocation13], %s2197
          %2200 = dma.done %s2195, 768
        $region139: #{tpu_custom_call.1} parent=126 // pred_fallthru
          _
        // Predicated region
        $region140: #{tpu_custom_call.1} parent=126 // pred_check
          %p2201 = pneg %p207
        $region141: #{tpu_custom_call.1} parent=126 // pred_check_branch
          %2203 = sbr.rel (%p2201) target = $region143
        $region142: #{tpu_custom_call.1} parent=126 // pred_region
          %s2204 = sand.u32 %s192, 1
          %s2205 = scalar_lea.sflag [#allocation15], %s2204
          %s2206 = sand.u32 %s192, 1
          %s2207 = smul.addr %s2206, 16
          %s2208 = scalar_lea.vmem [#allocation14], %s2207
          %2210 = dma.done %s2205, 256
        $region143: #{tpu_custom_call.1} parent=126 // pred_fallthru
          _
      $region127: #{tpu_custom_call.1} parent=5 // pred_fallthru
        _
    $region6: #{tpu_custom_call.1} parent=1 // loop_footer
      %s42 = sadd.s32 1, %s38
    $region7: #{tpu_custom_call.1} parent=1 // loop_footer_branch
      %37 = sbr.rel target = $region3
    $region8: #{tpu_custom_call.1} parent=1 // loop_exit
      _
    %2211 = vsyncpa [#allocation6], 1
    %s2212 = scalar_lea.sflag [#allocation6], 1
    %2213 = vsyncpa %s2212, 1
    %2214 = vsyncpa [#allocation12], 1
    %s2215 = scalar_lea.sflag [#allocation12], 1
    %2216 = vsyncpa %s2215, 1
    %2217 = vsyncpa [#allocation15], 1
    %s2218 = scalar_lea.sflag [#allocation15], 1
    %2219 = vsyncpa %s2218, 1
    %2220 = vsyncpa [#allocation7], 1
    %s2221 = scalar_lea.sflag [#allocation7], 1
    %2222 = vsyncpa %s2221, 1
    %2223 = vsyncpa [#allocation8], 1
    %s2224 = scalar_lea.sflag [#allocation8], 1
    %2225 = vsyncpa %s2224, 1

</llo_original>
